<compile_context>
chip_gen: v7x
topology: tpu7x:2x2x1
jax: 0.10.0
libtpu: 0.0.40
codegen_flags: <defaults>
</compile_context>

<pallas_src>
import math
import jax
import jax.numpy as jnp
from jax.experimental import pallas as pl
from jax.experimental.pallas import tpu as pltpu

# ---- model hyper-parameters (small, consistent with the module's forward) ----
B, T, S, D, H, FF = 2, 8, 8, 32, 4, 64
NUM_LAYERS = 2
HD = D // H
EPS = 1e-5  # PyTorch LayerNorm default eps


# ----------------------------- kernel helpers --------------------------------
def _layer_norm(x, g, b):
    # var = E[x^2] - mu^2: the two reductions are independent (no serial chain).
    mu = jnp.mean(x, axis=-1, keepdims=True)
    ex2 = jnp.mean(x * x, axis=-1, keepdims=True)
    return (x - mu) * jax.lax.rsqrt(ex2 - mu * mu + EPS) * g + b


def _attend(q2, kv2, wo, bo, mask_big):
    """Multi-head attention over the folded batch.

    q2       : (B*Lq, D)   f32 queries (1/sqrt(HD) already folded into Wq)
    kv2      : (B*Lk, 2D)  f32 packed [K | V]
    wo       : (D, D)      bf16 output projection
    bo       : (1, D)      f32 output bias
    mask_big : (H*B*Lq, B*Lk) f32 additive mask, block-diagonal over the batch
               (cross-batch entries = -1e9) and pre-tiled over the H heads.
    Returns (B*Lq, D) f32.
    """
    n_q = q2.shape[0]
    qb = q2.astype(jnp.bfloat16)
    kvb = kv2.astype(jnp.bfloat16)

    # Per-head folded-batch scores (q @ k.T), sublane-stacked so ONE softmax
    # chain serves all heads.
    scores = [
        jax.lax.dot_general(qb[:, h * HD:(h + 1) * HD],
                            kvb[:, h * HD:(h + 1) * HD],
                            (((1,), (1,)), ((), ())),
                            preferred_element_type=jnp.float32)
        for h in range(H)]                                  # H x (n_q, n_k)
    s = jnp.concatenate(scores, axis=0) + mask_big          # (H*n_q, n_k)
    s = s - jnp.max(s, axis=-1, keepdims=True)
    p = jnp.exp(s)
    p = p * pl.reciprocal(jnp.sum(p, axis=-1, keepdims=True), approx=True)

    pb = p.astype(jnp.bfloat16)
    heads = [
        jnp.dot(pb[h * n_q:(h + 1) * n_q, :],
                kvb[:, D + h * HD:D + (h + 1) * HD],
                preferred_element_type=jnp.float32)
        for h in range(H)]                                  # H x (n_q, HD)
    o = jnp.concatenate(heads, axis=1)                      # (n_q, D)
    # concat-of-heads @ Wo as ONE matmul with a D-wide contraction.
    return jnp.dot(o.astype(jnp.bfloat16), wo,
                   preferred_element_type=jnp.float32) + bo


# ------------------------------ Pallas kernel ---------------------------------
def fused_decoder_kernel(x_ref, mem_ref, tmask_ref, smask_ref,
                         w_qkv_s_ref, w_q_c_ref, w_kv_c_ref, w_o_ref,
                         w_ff1_ref, w_ff2_ref, vec_d_ref, out_ref):
    x = x_ref[...]                                   # (B*T, D) f32
    tmask = tmask_ref[...]                           # (H*B*T, B*T)
    smask = smask_ref[...]                           # (H*B*T, B*S)

    # Layer-invariant cross-attention K/V for ALL layers: one lane-dense matmul.
    kv_c_all = jnp.dot(mem_ref[...].astype(jnp.bfloat16), w_kv_c_ref[...],
                       preferred_element_type=jnp.float32)   # (B*S, L*2D)

    for l in range(NUM_LAYERS):                      # static unroll over layers
        # per-layer (1, D) vectors: [bo_s, bo_c, b_ff2, g1, be1, g2, be2, g3, be3]
        vd = vec_d_ref[l]

        # --- masked self-attention + residual + LayerNorm (post-norm) ---
        qkv = jnp.dot(x.astype(jnp.bfloat16), w_qkv_s_ref[l],
                      preferred_element_type=jnp.float32)    # (B*T, 3D) = [Q|K|V]
        sa = _attend(qkv[:, :D], qkv[:, D:], w_o_ref[l, 0], vd[0:1], tmask)
        x = _layer_norm(x + sa, vd[3:4], vd[4:5])

        # --- cross-attention over encoder memory + residual + LayerNorm ---
        qc = jnp.dot(x.astype(jnp.bfloat16), w_q_c_ref[l],
                     preferred_element_type=jnp.float32)     # (B*T, D)
        ca = _attend(qc, kv_c_all[:, l * 2 * D:(l + 1) * 2 * D],
                     w_o_ref[l, 1], vd[1:2], smask)
        x = _layer_norm(x + ca, vd[5:6], vd[6:7])

        # --- position-wise feed-forward (ReLU) + residual + LayerNorm ---
        h1 = jnp.maximum(
            jnp.dot(x.astype(jnp.bfloat16), w_ff1_ref[l],
                    preferred_element_type=jnp.float32), 0.0)
        ff = jnp.dot(h1.astype(jnp.bfloat16), w_ff2_ref[l],
                     preferred_element_type=jnp.float32) + vd[2:3]
        x = _layer_norm(x + ff, vd[7:8], vd[8:9])

    out_ref[...] = x.astype(out_ref.dtype)


# ------------------------------ wrapper / glue --------------------------------
def _build_big_masks(tgt_mask, src_mask):
    """Folded-batch additive masks: block-diagonal over the batch (cross-batch
    entries = -1e9, so their softmax weight underflows to exactly 0) and
    pre-tiled over the H heads to match the sublane-stacked score layout."""
    neg = jnp.float32(-1e9)
    bq = jnp.repeat(jnp.arange(B), T)                       # batch id per query row
    bk_t = jnp.repeat(jnp.arange(B), T)
    bk_s = jnp.repeat(jnp.arange(B), S)
    tmask_big = jnp.where(bq[:, None] == bk_t[None, :],
                          jnp.tile(tgt_mask, (B, B)), neg)  # (B*T, B*T)
    smask_big = jnp.where(bq[:, None] == bk_s[None, :],
                          jnp.tile(src_mask, (B, B)), neg)  # (B*T, B*S)
    return jnp.tile(tmask_big, (H, 1)), jnp.tile(smask_big, (H, 1))


def manual_transformer_decoder(x, memory, src_mask, tgt_mask, packed_params):
    # matches: for layer in self.layers: x = layer(x, memory, src_mask, tgt_mask)
    # (tgt_mask gates self-attention, src_mask gates cross-attention over memory)
    tmask_big, smask_big = _build_big_masks(tgt_mask=tgt_mask, src_mask=src_mask)
    vmem = pltpu.MemorySpace.VMEM
    inputs = (x.reshape(B * T, D), memory.reshape(B * S, D),
              tmask_big, smask_big) + tuple(packed_params)
    out2 = pl.pallas_call(
        fused_decoder_kernel,
        out_shape=jax.ShapeDtypeStruct((B * T, D), jnp.float32),
        in_specs=[pl.BlockSpec(memory_space=vmem)] * len(inputs),
        out_specs=pl.BlockSpec(memory_space=vmem),
    )(*inputs)
    return out2.reshape(B, T, D)


def _init_layer_params(key):
    """Deterministic per-layer parameters (weights ~ N(0, 0.05^2), biases 0)."""
    ks = iter(jax.random.split(key, 10))

    def W(shape):
        return jax.random.normal(next(ks), shape, jnp.float32) * 0.05

    return dict(
        wq_s=W((D, D)), wk_s=W((D, D)), wv_s=W((D, D)), wo_s=W((D, D)),
        wq_c=W((D, D)), wk_c=W((D, D)), wv_c=W((D, D)), wo_c=W((D, D)),
        w1=W((D, FF)), w2=W((FF, D)),
    )


def _pack_params(layers):
    """Pack all layers into a few bf16 weight slabs + one f32 vector slab.

    The 1/sqrt(HD) attention scale is folded into the Q weights, and the
    cross-attention K|V weights of all layers are lane-concatenated so the
    layer-invariant memory projection is one (B*S, D) @ (D, L*2D) matmul.
    All-zero QKV / FF1 bias slabs are dropped entirely.
    """
    # TODO(synk): re-add in-projection / FF1 bias slabs (and the matching adds
    # in the kernel) if the real decoder layer has nonzero biases there.
    bf = jnp.bfloat16
    scale = 1.0 / math.sqrt(HD)
    zD = jnp.zeros((D,), jnp.float32)
    oD = jnp.ones((D,), jnp.float32)
    w_qkv_s = jnp.stack([jnp.concatenate(
        [p["wq_s"] * scale, p["wk_s"], p["wv_s"]], axis=1)
        for p in layers]).astype(bf)                                 # (L, D, 3D)
    w_q_c = jnp.stack([p["wq_c"] * scale for p in layers]).astype(bf)  # (L, D, D)
    w_kv_c = jnp.concatenate(
        [jnp.concatenate([p["wk_c"], p["wv_c"]], axis=1) for p in layers],
        axis=1).astype(bf)                                           # (D, L*2D)
    w_o = jnp.stack([jnp.stack([p["wo_s"], p["wo_c"]])
                     for p in layers]).astype(bf)                    # (L, 2, D, D)
    w_ff1 = jnp.stack([p["w1"] for p in layers]).astype(bf)          # (L, D, FF)
    w_ff2 = jnp.stack([p["w2"] for p in layers]).astype(bf)          # (L, FF, D)
    # per-layer (1, D) vectors: bo_s, bo_c, b_ff2, g1, be1, g2, be2, g3, be3
    vec_d = jnp.stack([jnp.stack([zD, zD, zD, oD, zD, oD, zD, oD, zD])
                       for _ in layers])                             # (L, 9, D)
    return [w_qkv_s, w_q_c, w_kv_c, w_o, w_ff1, w_ff2, vec_d]


# ---------------------------------- main --------------------------------------
if __name__ == "__main__":
    key = jax.random.PRNGKey(0)
    keys = jax.random.split(key, 2 + NUM_LAYERS)
    kx, km, layer_keys = keys[0], keys[1], keys[2:]

    x = jax.random.normal(kx, (B, T, D), jnp.float32)
    memory = jax.random.normal(km, (B, S, D), jnp.float32)

    # additive causal mask for self-attention, no masking for cross-attention
    row = jnp.arange(T)[:, None]
    col = jnp.arange(T)[None, :]
    tgt_mask = jnp.where(col > row, -1e9, 0.0).astype(jnp.float32)   # (T, T)
    src_mask = jnp.zeros((T, S), jnp.float32)                        # (T, S)

    packed = _pack_params([_init_layer_params(k) for k in layer_keys])

    out = manual_transformer_decoder(x, memory, src_mask, tgt_mask, packed)
    jax.block_until_ready(out)
    assert out.shape == (B, T, D)
    print("KERNEL_OK")
</pallas_src>

<mosaic_0001>
module attributes {stable_mosaic.version = 11 : i64} {
  func.func @fused_decoder_kernel(%arg0: memref<16x32xf32, #tpu.memory_space<vmem>>, %arg1: memref<16x32xf32, #tpu.memory_space<vmem>>, %arg2: memref<64x16xf32, #tpu.memory_space<vmem>>, %arg3: memref<64x16xf32, #tpu.memory_space<vmem>>, %arg4: memref<2x32x96xbf16, #tpu.memory_space<vmem>>, %arg5: memref<2x32x32xbf16, #tpu.memory_space<vmem>>, %arg6: memref<32x128xbf16, #tpu.memory_space<vmem>>, %arg7: memref<2x2x32x32xbf16, #tpu.memory_space<vmem>>, %arg8: memref<2x32x64xbf16, #tpu.memory_space<vmem>>, %arg9: memref<2x64x32xbf16, #tpu.memory_space<vmem>>, %arg10: memref<2x9x32xf32, #tpu.memory_space<vmem>>, %arg11: memref<16x32xf32, #tpu.memory_space<vmem>>) attributes {dimension_semantics = [], scalar_prefetch = 0 : i64, scratch_operands = 0 : i64, tpu.core_type = #tpu.core_type<tc>} {
    %c0 = arith.constant 0 : index
    %c0_0 = arith.constant 0 : index
    %0 = vector.load %arg0[%c0, %c0_0] : memref<16x32xf32, #tpu.memory_space<vmem>>, vector<16x32xf32>
    %c0_1 = arith.constant 0 : index
    %c0_2 = arith.constant 0 : index
    %1 = vector.load %arg2[%c0_1, %c0_2] : memref<64x16xf32, #tpu.memory_space<vmem>>, vector<64x16xf32>
    %c0_3 = arith.constant 0 : index
    %c0_4 = arith.constant 0 : index
    %2 = vector.load %arg3[%c0_3, %c0_4] : memref<64x16xf32, #tpu.memory_space<vmem>>, vector<64x16xf32>
    %c0_5 = arith.constant 0 : index
    %c0_6 = arith.constant 0 : index
    %3 = vector.load %arg1[%c0_5, %c0_6] : memref<16x32xf32, #tpu.memory_space<vmem>>, vector<16x32xf32>
    %4 = arith.truncf %3 : vector<16x32xf32> to vector<16x32xbf16>
    %c0_7 = arith.constant 0 : index
    %c0_8 = arith.constant 0 : index
    %5 = vector.load %arg6[%c0_7, %c0_8] : memref<32x128xbf16, #tpu.memory_space<vmem>>, vector<32x128xbf16>
    %cst = arith.constant dense<0.000000e+00> : vector<16x128xf32>
    %6 = tpu.matmul %4, %5, %cst {dimension_numbers = #tpu.dot_dimension_numbers<[1], [0], [0], [1], [0, 0, 1, 1], [], []>} : vector<16x32xbf16>, vector<32x128xbf16>, vector<16x128xf32> -> vector<16x128xf32>
    %c0_9 = arith.constant 0 : index
    %c0_10 = arith.constant 0 : index
    %c0_11 = arith.constant 0 : index
    %7 = vector.load %arg10[%c0_9, %c0_10, %c0_11] : memref<2x9x32xf32, #tpu.memory_space<vmem>>, vector<1x9x32xf32>
    %8 = vector.shape_cast %7 : vector<1x9x32xf32> to vector<9x32xf32>
    %9 = arith.truncf %0 : vector<16x32xf32> to vector<16x32xbf16>
    %c0_12 = arith.constant 0 : index
    %c0_13 = arith.constant 0 : index
    %c0_14 = arith.constant 0 : index
    %10 = vector.load %arg4[%c0_12, %c0_13, %c0_14] : memref<2x32x96xbf16, #tpu.memory_space<vmem>>, vector<1x32x96xbf16>
    %11 = vector.shape_cast %10 : vector<1x32x96xbf16> to vector<32x96xbf16>
    %cst_15 = arith.constant dense<0.000000e+00> : vector<16x96xf32>
    %12 = tpu.matmul %9, %11, %cst_15 {dimension_numbers = #tpu.dot_dimension_numbers<[1], [0], [0], [1], [0, 0, 1, 1], [], []>} : vector<16x32xbf16>, vector<32x96xbf16>, vector<16x96xf32> -> vector<16x96xf32>
    %13 = vector.extract_strided_slice %12 {offsets = [0, 0], sizes = [16, 32], strides = [1, 1]} : vector<16x96xf32> to vector<16x32xf32>
    %14 = vector.extract_strided_slice %12 {offsets = [0, 32], sizes = [16, 64], strides = [1, 1]} : vector<16x96xf32> to vector<16x64xf32>
    %c0_16 = arith.constant 0 : index
    %c0_17 = arith.constant 0 : index
    %c0_18 = arith.constant 0 : index
    %c0_19 = arith.constant 0 : index
    %15 = vector.load %arg7[%c0_16, %c0_17, %c0_18, %c0_19] : memref<2x2x32x32xbf16, #tpu.memory_space<vmem>>, vector<1x1x32x32xbf16>
    %16 = vector.shape_cast %15 : vector<1x1x32x32xbf16> to vector<32x32xbf16>
    %17 = vector.extract_strided_slice %8 {offsets = [0, 0], sizes = [1, 32], strides = [1, 1]} : vector<9x32xf32> to vector<1x32xf32>
    %18 = arith.truncf %13 : vector<16x32xf32> to vector<16x32xbf16>
    %19 = arith.truncf %14 : vector<16x64xf32> to vector<16x64xbf16>
    %20 = vector.extract_strided_slice %18 {offsets = [0, 0], sizes = [16, 8], strides = [1, 1]} : vector<16x32xbf16> to vector<16x8xbf16>
    %21 = vector.extract_strided_slice %19 {offsets = [0, 0], sizes = [16, 8], strides = [1, 1]} : vector<16x64xbf16> to vector<16x8xbf16>
    %cst_20 = arith.constant dense<0.000000e+00> : vector<16x16xf32>
    %22 = tpu.matmul %20, %21, %cst_20 {dimension_numbers = #tpu.dot_dimension_numbers<[1], [1], [0], [0], [0, 0, 1, 0], [], []>} : vector<16x8xbf16>, vector<16x8xbf16>, vector<16x16xf32> -> vector<16x16xf32>
    %23 = vector.extract_strided_slice %18 {offsets = [0, 8], sizes = [16, 8], strides = [1, 1]} : vector<16x32xbf16> to vector<16x8xbf16>
    %24 = vector.extract_strided_slice %19 {offsets = [0, 8], sizes = [16, 8], strides = [1, 1]} : vector<16x64xbf16> to vector<16x8xbf16>
    %cst_21 = arith.constant dense<0.000000e+00> : vector<16x16xf32>
    %25 = tpu.matmul %23, %24, %cst_21 {dimension_numbers = #tpu.dot_dimension_numbers<[1], [1], [0], [0], [0, 0, 1, 0], [], []>} : vector<16x8xbf16>, vector<16x8xbf16>, vector<16x16xf32> -> vector<16x16xf32>
    %26 = vector.extract_strided_slice %18 {offsets = [0, 16], sizes = [16, 8], strides = [1, 1]} : vector<16x32xbf16> to vector<16x8xbf16>
    %27 = vector.extract_strided_slice %19 {offsets = [0, 16], sizes = [16, 8], strides = [1, 1]} : vector<16x64xbf16> to vector<16x8xbf16>
    %cst_22 = arith.constant dense<0.000000e+00> : vector<16x16xf32>
    %28 = tpu.matmul %26, %27, %cst_22 {dimension_numbers = #tpu.dot_dimension_numbers<[1], [1], [0], [0], [0, 0, 1, 0], [], []>} : vector<16x8xbf16>, vector<16x8xbf16>, vector<16x16xf32> -> vector<16x16xf32>
    %29 = vector.extract_strided_slice %18 {offsets = [0, 24], sizes = [16, 8], strides = [1, 1]} : vector<16x32xbf16> to vector<16x8xbf16>
    %30 = vector.extract_strided_slice %19 {offsets = [0, 24], sizes = [16, 8], strides = [1, 1]} : vector<16x64xbf16> to vector<16x8xbf16>
    %cst_23 = arith.constant dense<0.000000e+00> : vector<16x16xf32>
    %31 = tpu.matmul %29, %30, %cst_23 {dimension_numbers = #tpu.dot_dimension_numbers<[1], [1], [0], [0], [0, 0, 1, 0], [], []>} : vector<16x8xbf16>, vector<16x8xbf16>, vector<16x16xf32> -> vector<16x16xf32>
    %32 = tpu.concatenate %22, %25, %28, %31 in 0 : vector<16x16xf32>, vector<16x16xf32>, vector<16x16xf32>, vector<16x16xf32> -> vector<64x16xf32>
    %33 = arith.addf %32, %1 : vector<64x16xf32>
    %cst_24 = arith.constant dense<0xFF800000> : vector<64xf32>
    %34 = vector.multi_reduction <maximumf>, %33, %cst_24 [1] : vector<64x16xf32> to vector<64xf32>
    %35 = vector.shape_cast %34 : vector<64xf32> to vector<64x1xf32>
    %36 = vector.broadcast %35 : vector<64x1xf32> to vector<64x16xf32>
    %37 = arith.subf %33, %36 : vector<64x16xf32>
    %38 = math.exp %37 : vector<64x16xf32>
    %cst_25 = arith.constant dense<0.000000e+00> : vector<64xf32>
    %39 = vector.multi_reduction <add>, %38, %cst_25 [1] : vector<64x16xf32> to vector<64xf32>
    %40 = vector.shape_cast %39 : vector<64xf32> to vector<64x1xf32>
    %41 = tpu.reciprocal %40 {approx = true} : vector<64x1xf32> -> vector<64x1xf32>
    %42 = vector.broadcast %41 : vector<64x1xf32> to vector<64x16xf32>
    %43 = arith.mulf %38, %42 : vector<64x16xf32>
    %44 = arith.truncf %43 : vector<64x16xf32> to vector<64x16xbf16>
    %45 = vector.extract_strided_slice %44 {offsets = [0, 0], sizes = [16, 16], strides = [1, 1]} : vector<64x16xbf16> to vector<16x16xbf16>
    %46 = vector.extract_strided_slice %19 {offsets = [0, 32], sizes = [16, 8], strides = [1, 1]} : vector<16x64xbf16> to vector<16x8xbf16>
    %cst_26 = arith.constant dense<0.000000e+00> : vector<16x8xf32>
    %47 = tpu.matmul %45, %46, %cst_26 {dimension_numbers = #tpu.dot_dimension_numbers<[1], [0], [0], [1], [0, 0, 1, 1], [], []>} : vector<16x16xbf16>, vector<16x8xbf16>, vector<16x8xf32> -> vector<16x8xf32>
    %48 = vector.extract_strided_slice %44 {offsets = [16, 0], sizes = [16, 16], strides = [1, 1]} : vector<64x16xbf16> to vector<16x16xbf16>
    %49 = vector.extract_strided_slice %19 {offsets = [0, 40], sizes = [16, 8], strides = [1, 1]} : vector<16x64xbf16> to vector<16x8xbf16>
    %cst_27 = arith.constant dense<0.000000e+00> : vector<16x8xf32>
    %50 = tpu.matmul %48, %49, %cst_27 {dimension_numbers = #tpu.dot_dimension_numbers<[1], [0], [0], [1], [0, 0, 1, 1], [], []>} : vector<16x16xbf16>, vector<16x8xbf16>, vector<16x8xf32> -> vector<16x8xf32>
    %51 = vector.extract_strided_slice %44 {offsets = [32, 0], sizes = [16, 16], strides = [1, 1]} : vector<64x16xbf16> to vector<16x16xbf16>
    %52 = vector.extract_strided_slice %19 {offsets = [0, 48], sizes = [16, 8], strides = [1, 1]} : vector<16x64xbf16> to vector<16x8xbf16>
    %cst_28 = arith.constant dense<0.000000e+00> : vector<16x8xf32>
    %53 = tpu.matmul %51, %52, %cst_28 {dimension_numbers = #tpu.dot_dimension_numbers<[1], [0], [0], [1], [0, 0, 1, 1], [], []>} : vector<16x16xbf16>, vector<16x8xbf16>, vector<16x8xf32> -> vector<16x8xf32>
    %54 = vector.extract_strided_slice %44 {offsets = [48, 0], sizes = [16, 16], strides = [1, 1]} : vector<64x16xbf16> to vector<16x16xbf16>
    %55 = vector.extract_strided_slice %19 {offsets = [0, 56], sizes = [16, 8], strides = [1, 1]} : vector<16x64xbf16> to vector<16x8xbf16>
    %cst_29 = arith.constant dense<0.000000e+00> : vector<16x8xf32>
    %56 = tpu.matmul %54, %55, %cst_29 {dimension_numbers = #tpu.dot_dimension_numbers<[1], [0], [0], [1], [0, 0, 1, 1], [], []>} : vector<16x16xbf16>, vector<16x8xbf16>, vector<16x8xf32> -> vector<16x8xf32>
    %57 = tpu.concatenate %47, %50, %53, %56 in 1 : vector<16x8xf32>, vector<16x8xf32>, vector<16x8xf32>, vector<16x8xf32> -> vector<16x32xf32>
    %58 = arith.truncf %57 : vector<16x32xf32> to vector<16x32xbf16>
    %cst_30 = arith.constant dense<0.000000e+00> : vector<16x32xf32>
    %59 = tpu.matmul %58, %16, %cst_30 {dimension_numbers = #tpu.dot_dimension_numbers<[1], [0], [0], [1], [0, 0, 1, 1], [], []>} : vector<16x32xbf16>, vector<32x32xbf16>, vector<16x32xf32> -> vector<16x32xf32>
    %60 = vector.broadcast %17 : vector<1x32xf32> to vector<16x32xf32>
    %61 = arith.addf %59, %60 : vector<16x32xf32>
    %62 = arith.addf %0, %61 : vector<16x32xf32>
    %63 = vector.extract_strided_slice %8 {offsets = [3, 0], sizes = [1, 32], strides = [1, 1]} : vector<9x32xf32> to vector<1x32xf32>
    %64 = vector.extract_strided_slice %8 {offsets = [4, 0], sizes = [1, 32], strides = [1, 1]} : vector<9x32xf32> to vector<1x32xf32>
    %cst_31 = arith.constant dense<0.000000e+00> : vector<16xf32>
    %65 = vector.multi_reduction <add>, %62, %cst_31 [1] : vector<16x32xf32> to vector<16xf32>
    %66 = vector.shape_cast %65 : vector<16xf32> to vector<16x1xf32>
    %cst_32 = arith.constant 3.200000e+01 : f32
    %67 = vector.broadcast %cst_32 : f32 to vector<16x1xf32>
    %68 = arith.divf %66, %67 : vector<16x1xf32>
    %69 = arith.mulf %62, %62 : vector<16x32xf32>
    %cst_33 = arith.constant dense<0.000000e+00> : vector<16xf32>
    %70 = vector.multi_reduction <add>, %69, %cst_33 [1] : vector<16x32xf32> to vector<16xf32>
    %71 = vector.shape_cast %70 : vector<16xf32> to vector<16x1xf32>
    %cst_34 = arith.constant 3.200000e+01 : f32
    %72 = vector.broadcast %cst_34 : f32 to vector<16x1xf32>
    %73 = arith.divf %71, %72 : vector<16x1xf32>
    %74 = vector.broadcast %68 : vector<16x1xf32> to vector<16x32xf32>
    %75 = arith.subf %62, %74 : vector<16x32xf32>
    %76 = arith.mulf %68, %68 : vector<16x1xf32>
    %77 = arith.subf %73, %76 : vector<16x1xf32>
    %cst_35 = arith.constant 9.99999974E-6 : f32
    %78 = vector.broadcast %cst_35 : f32 to vector<16x1xf32>
    %79 = arith.addf %77, %78 : vector<16x1xf32>
    %80 = math.rsqrt %79 : vector<16x1xf32>
    %81 = vector.broadcast %80 : vector<16x1xf32> to vector<16x32xf32>
    %82 = arith.mulf %75, %81 : vector<16x32xf32>
    %83 = vector.broadcast %63 : vector<1x32xf32> to vector<16x32xf32>
    %84 = arith.mulf %82, %83 : vector<16x32xf32>
    %85 = vector.broadcast %64 : vector<1x32xf32> to vector<16x32xf32>
    %86 = arith.addf %84, %85 : vector<16x32xf32>
    %87 = arith.truncf %86 : vector<16x32xf32> to vector<16x32xbf16>
    %c0_36 = arith.constant 0 : index
    %c0_37 = arith.constant 0 : index
    %c0_38 = arith.constant 0 : index
    %88 = vector.load %arg5[%c0_36, %c0_37, %c0_38] : memref<2x32x32xbf16, #tpu.memory_space<vmem>>, vector<1x32x32xbf16>
    %89 = vector.shape_cast %88 : vector<1x32x32xbf16> to vector<32x32xbf16>
    %cst_39 = arith.constant dense<0.000000e+00> : vector<16x32xf32>
    %90 = tpu.matmul %87, %89, %cst_39 {dimension_numbers = #tpu.dot_dimension_numbers<[1], [0], [0], [1], [0, 0, 1, 1], [], []>} : vector<16x32xbf16>, vector<32x32xbf16>, vector<16x32xf32> -> vector<16x32xf32>
    %91 = vector.extract_strided_slice %6 {offsets = [0, 0], sizes = [16, 64], strides = [1, 1]} : vector<16x128xf32> to vector<16x64xf32>
    %c0_40 = arith.constant 0 : index
    %c1 = arith.constant 1 : index
    %c0_41 = arith.constant 0 : index
    %c0_42 = arith.constant 0 : index
    %92 = vector.load %arg7[%c0_40, %c1, %c0_41, %c0_42] : memref<2x2x32x32xbf16, #tpu.memory_space<vmem>>, vector<1x1x32x32xbf16>
    %93 = vector.shape_cast %92 : vector<1x1x32x32xbf16> to vector<32x32xbf16>
    %94 = vector.extract_strided_slice %8 {offsets = [1, 0], sizes = [1, 32], strides = [1, 1]} : vector<9x32xf32> to vector<1x32xf32>
    %95 = arith.truncf %90 : vector<16x32xf32> to vector<16x32xbf16>
    %96 = arith.truncf %91 : vector<16x64xf32> to vector<16x64xbf16>
    %97 = vector.extract_strided_slice %95 {offsets = [0, 0], sizes = [16, 8], strides = [1, 1]} : vector<16x32xbf16> to vector<16x8xbf16>
    %98 = vector.extract_strided_slice %96 {offsets = [0, 0], sizes = [16, 8], strides = [1, 1]} : vector<16x64xbf16> to vector<16x8xbf16>
    %cst_43 = arith.constant dense<0.000000e+00> : vector<16x16xf32>
    %99 = tpu.matmul %97, %98, %cst_43 {dimension_numbers = #tpu.dot_dimension_numbers<[1], [1], [0], [0], [0, 0, 1, 0], [], []>} : vector<16x8xbf16>, vector<16x8xbf16>, vector<16x16xf32> -> vector<16x16xf32>
    %100 = vector.extract_strided_slice %95 {offsets = [0, 8], sizes = [16, 8], strides = [1, 1]} : vector<16x32xbf16> to vector<16x8xbf16>
    %101 = vector.extract_strided_slice %96 {offsets = [0, 8], sizes = [16, 8], strides = [1, 1]} : vector<16x64xbf16> to vector<16x8xbf16>
    %cst_44 = arith.constant dense<0.000000e+00> : vector<16x16xf32>
    %102 = tpu.matmul %100, %101, %cst_44 {dimension_numbers = #tpu.dot_dimension_numbers<[1], [1], [0], [0], [0, 0, 1, 0], [], []>} : vector<16x8xbf16>, vector<16x8xbf16>, vector<16x16xf32> -> vector<16x16xf32>
    %103 = vector.extract_strided_slice %95 {offsets = [0, 16], sizes = [16, 8], strides = [1, 1]} : vector<16x32xbf16> to vector<16x8xbf16>
    %104 = vector.extract_strided_slice %96 {offsets = [0, 16], sizes = [16, 8], strides = [1, 1]} : vector<16x64xbf16> to vector<16x8xbf16>
    %cst_45 = arith.constant dense<0.000000e+00> : vector<16x16xf32>
    %105 = tpu.matmul %103, %104, %cst_45 {dimension_numbers = #tpu.dot_dimension_numbers<[1], [1], [0], [0], [0, 0, 1, 0], [], []>} : vector<16x8xbf16>, vector<16x8xbf16>, vector<16x16xf32> -> vector<16x16xf32>
    %106 = vector.extract_strided_slice %95 {offsets = [0, 24], sizes = [16, 8], strides = [1, 1]} : vector<16x32xbf16> to vector<16x8xbf16>
    %107 = vector.extract_strided_slice %96 {offsets = [0, 24], sizes = [16, 8], strides = [1, 1]} : vector<16x64xbf16> to vector<16x8xbf16>
    %cst_46 = arith.constant dense<0.000000e+00> : vector<16x16xf32>
    %108 = tpu.matmul %106, %107, %cst_46 {dimension_numbers = #tpu.dot_dimension_numbers<[1], [1], [0], [0], [0, 0, 1, 0], [], []>} : vector<16x8xbf16>, vector<16x8xbf16>, vector<16x16xf32> -> vector<16x16xf32>
    %109 = tpu.concatenate %99, %102, %105, %108 in 0 : vector<16x16xf32>, vector<16x16xf32>, vector<16x16xf32>, vector<16x16xf32> -> vector<64x16xf32>
    %110 = arith.addf %109, %2 : vector<64x16xf32>
    %cst_47 = arith.constant dense<0xFF800000> : vector<64xf32>
    %111 = vector.multi_reduction <maximumf>, %110, %cst_47 [1] : vector<64x16xf32> to vector<64xf32>
    %112 = vector.shape_cast %111 : vector<64xf32> to vector<64x1xf32>
    %113 = vector.broadcast %112 : vector<64x1xf32> to vector<64x16xf32>
    %114 = arith.subf %110, %113 : vector<64x16xf32>
    %115 = math.exp %114 : vector<64x16xf32>
    %cst_48 = arith.constant dense<0.000000e+00> : vector<64xf32>
    %116 = vector.multi_reduction <add>, %115, %cst_48 [1] : vector<64x16xf32> to vector<64xf32>
    %117 = vector.shape_cast %116 : vector<64xf32> to vector<64x1xf32>
    %118 = tpu.reciprocal %117 {approx = true} : vector<64x1xf32> -> vector<64x1xf32>
    %119 = vector.broadcast %118 : vector<64x1xf32> to vector<64x16xf32>
    %120 = arith.mulf %115, %119 : vector<64x16xf32>
    %121 = arith.truncf %120 : vector<64x16xf32> to vector<64x16xbf16>
    %122 = vector.extract_strided_slice %121 {offsets = [0, 0], sizes = [16, 16], strides = [1, 1]} : vector<64x16xbf16> to vector<16x16xbf16>
    %123 = vector.extract_strided_slice %96 {offsets = [0, 32], sizes = [16, 8], strides = [1, 1]} : vector<16x64xbf16> to vector<16x8xbf16>
    %cst_49 = arith.constant dense<0.000000e+00> : vector<16x8xf32>
    %124 = tpu.matmul %122, %123, %cst_49 {dimension_numbers = #tpu.dot_dimension_numbers<[1], [0], [0], [1], [0, 0, 1, 1], [], []>} : vector<16x16xbf16>, vector<16x8xbf16>, vector<16x8xf32> -> vector<16x8xf32>
    %125 = vector.extract_strided_slice %121 {offsets = [16, 0], sizes = [16, 16], strides = [1, 1]} : vector<64x16xbf16> to vector<16x16xbf16>
    %126 = vector.extract_strided_slice %96 {offsets = [0, 40], sizes = [16, 8], strides = [1, 1]} : vector<16x64xbf16> to vector<16x8xbf16>
    %cst_50 = arith.constant dense<0.000000e+00> : vector<16x8xf32>
    %127 = tpu.matmul %125, %126, %cst_50 {dimension_numbers = #tpu.dot_dimension_numbers<[1], [0], [0], [1], [0, 0, 1, 1], [], []>} : vector<16x16xbf16>, vector<16x8xbf16>, vector<16x8xf32> -> vector<16x8xf32>
    %128 = vector.extract_strided_slice %121 {offsets = [32, 0], sizes = [16, 16], strides = [1, 1]} : vector<64x16xbf16> to vector<16x16xbf16>
    %129 = vector.extract_strided_slice %96 {offsets = [0, 48], sizes = [16, 8], strides = [1, 1]} : vector<16x64xbf16> to vector<16x8xbf16>
    %cst_51 = arith.constant dense<0.000000e+00> : vector<16x8xf32>
    %130 = tpu.matmul %128, %129, %cst_51 {dimension_numbers = #tpu.dot_dimension_numbers<[1], [0], [0], [1], [0, 0, 1, 1], [], []>} : vector<16x16xbf16>, vector<16x8xbf16>, vector<16x8xf32> -> vector<16x8xf32>
    %131 = vector.extract_strided_slice %121 {offsets = [48, 0], sizes = [16, 16], strides = [1, 1]} : vector<64x16xbf16> to vector<16x16xbf16>
    %132 = vector.extract_strided_slice %96 {offsets = [0, 56], sizes = [16, 8], strides = [1, 1]} : vector<16x64xbf16> to vector<16x8xbf16>
    %cst_52 = arith.constant dense<0.000000e+00> : vector<16x8xf32>
    %133 = tpu.matmul %131, %132, %cst_52 {dimension_numbers = #tpu.dot_dimension_numbers<[1], [0], [0], [1], [0, 0, 1, 1], [], []>} : vector<16x16xbf16>, vector<16x8xbf16>, vector<16x8xf32> -> vector<16x8xf32>
    %134 = tpu.concatenate %124, %127, %130, %133 in 1 : vector<16x8xf32>, vector<16x8xf32>, vector<16x8xf32>, vector<16x8xf32> -> vector<16x32xf32>
    %135 = arith.truncf %134 : vector<16x32xf32> to vector<16x32xbf16>
    %cst_53 = arith.constant dense<0.000000e+00> : vector<16x32xf32>
    %136 = tpu.matmul %135, %93, %cst_53 {dimension_numbers = #tpu.dot_dimension_numbers<[1], [0], [0], [1], [0, 0, 1, 1], [], []>} : vector<16x32xbf16>, vector<32x32xbf16>, vector<16x32xf32> -> vector<16x32xf32>
    %137 = vector.broadcast %94 : vector<1x32xf32> to vector<16x32xf32>
    %138 = arith.addf %136, %137 : vector<16x32xf32>
    %139 = arith.addf %86, %138 : vector<16x32xf32>
    %140 = vector.extract_strided_slice %8 {offsets = [5, 0], sizes = [1, 32], strides = [1, 1]} : vector<9x32xf32> to vector<1x32xf32>
    %141 = vector.extract_strided_slice %8 {offsets = [6, 0], sizes = [1, 32], strides = [1, 1]} : vector<9x32xf32> to vector<1x32xf32>
    %cst_54 = arith.constant dense<0.000000e+00> : vector<16xf32>
    %142 = vector.multi_reduction <add>, %139, %cst_54 [1] : vector<16x32xf32> to vector<16xf32>
    %143 = vector.shape_cast %142 : vector<16xf32> to vector<16x1xf32>
    %cst_55 = arith.constant 3.200000e+01 : f32
    %144 = vector.broadcast %cst_55 : f32 to vector<16x1xf32>
    %145 = arith.divf %143, %144 : vector<16x1xf32>
    %146 = arith.mulf %139, %139 : vector<16x32xf32>
    %cst_56 = arith.constant dense<0.000000e+00> : vector<16xf32>
    %147 = vector.multi_reduction <add>, %146, %cst_56 [1] : vector<16x32xf32> to vector<16xf32>
    %148 = vector.shape_cast %147 : vector<16xf32> to vector<16x1xf32>
    %cst_57 = arith.constant 3.200000e+01 : f32
    %149 = vector.broadcast %cst_57 : f32 to vector<16x1xf32>
    %150 = arith.divf %148, %149 : vector<16x1xf32>
    %151 = vector.broadcast %145 : vector<16x1xf32> to vector<16x32xf32>
    %152 = arith.subf %139, %151 : vector<16x32xf32>
    %153 = arith.mulf %145, %145 : vector<16x1xf32>
    %154 = arith.subf %150, %153 : vector<16x1xf32>
    %cst_58 = arith.constant 9.99999974E-6 : f32
    %155 = vector.broadcast %cst_58 : f32 to vector<16x1xf32>
    %156 = arith.addf %154, %155 : vector<16x1xf32>
    %157 = math.rsqrt %156 : vector<16x1xf32>
    %158 = vector.broadcast %157 : vector<16x1xf32> to vector<16x32xf32>
    %159 = arith.mulf %152, %158 : vector<16x32xf32>
    %160 = vector.broadcast %140 : vector<1x32xf32> to vector<16x32xf32>
    %161 = arith.mulf %159, %160 : vector<16x32xf32>
    %162 = vector.broadcast %141 : vector<1x32xf32> to vector<16x32xf32>
    %163 = arith.addf %161, %162 : vector<16x32xf32>
    %164 = arith.truncf %163 : vector<16x32xf32> to vector<16x32xbf16>
    %c0_59 = arith.constant 0 : index
    %c0_60 = arith.constant 0 : index
    %c0_61 = arith.constant 0 : index
    %165 = vector.load %arg8[%c0_59, %c0_60, %c0_61] : memref<2x32x64xbf16, #tpu.memory_space<vmem>>, vector<1x32x64xbf16>
    %166 = vector.shape_cast %165 : vector<1x32x64xbf16> to vector<32x64xbf16>
    %cst_62 = arith.constant dense<0.000000e+00> : vector<16x64xf32>
    %167 = tpu.matmul %164, %166, %cst_62 {dimension_numbers = #tpu.dot_dimension_numbers<[1], [0], [0], [1], [0, 0, 1, 1], [], []>} : vector<16x32xbf16>, vector<32x64xbf16>, vector<16x64xf32> -> vector<16x64xf32>
    %cst_63 = arith.constant 0.000000e+00 : f32
    %168 = vector.broadcast %cst_63 : f32 to vector<16x64xf32>
    %169 = arith.maximumf %167, %168 : vector<16x64xf32>
    %170 = arith.truncf %169 : vector<16x64xf32> to vector<16x64xbf16>
    %c0_64 = arith.constant 0 : index
    %c0_65 = arith.constant 0 : index
    %c0_66 = arith.constant 0 : index
    %171 = vector.load %arg9[%c0_64, %c0_65, %c0_66] : memref<2x64x32xbf16, #tpu.memory_space<vmem>>, vector<1x64x32xbf16>
    %172 = vector.shape_cast %171 : vector<1x64x32xbf16> to vector<64x32xbf16>
    %cst_67 = arith.constant dense<0.000000e+00> : vector<16x32xf32>
    %173 = tpu.matmul %170, %172, %cst_67 {dimension_numbers = #tpu.dot_dimension_numbers<[1], [0], [0], [1], [0, 0, 1, 1], [], []>} : vector<16x64xbf16>, vector<64x32xbf16>, vector<16x32xf32> -> vector<16x32xf32>
    %174 = vector.extract_strided_slice %8 {offsets = [2, 0], sizes = [1, 32], strides = [1, 1]} : vector<9x32xf32> to vector<1x32xf32>
    %175 = vector.broadcast %174 : vector<1x32xf32> to vector<16x32xf32>
    %176 = arith.addf %173, %175 : vector<16x32xf32>
    %177 = arith.addf %163, %176 : vector<16x32xf32>
    %178 = vector.extract_strided_slice %8 {offsets = [7, 0], sizes = [1, 32], strides = [1, 1]} : vector<9x32xf32> to vector<1x32xf32>
    %179 = vector.extract_strided_slice %8 {offsets = [8, 0], sizes = [1, 32], strides = [1, 1]} : vector<9x32xf32> to vector<1x32xf32>
    %cst_68 = arith.constant dense<0.000000e+00> : vector<16xf32>
    %180 = vector.multi_reduction <add>, %177, %cst_68 [1] : vector<16x32xf32> to vector<16xf32>
    %181 = vector.shape_cast %180 : vector<16xf32> to vector<16x1xf32>
    %cst_69 = arith.constant 3.200000e+01 : f32
    %182 = vector.broadcast %cst_69 : f32 to vector<16x1xf32>
    %183 = arith.divf %181, %182 : vector<16x1xf32>
    %184 = arith.mulf %177, %177 : vector<16x32xf32>
    %cst_70 = arith.constant dense<0.000000e+00> : vector<16xf32>
    %185 = vector.multi_reduction <add>, %184, %cst_70 [1] : vector<16x32xf32> to vector<16xf32>
    %186 = vector.shape_cast %185 : vector<16xf32> to vector<16x1xf32>
    %cst_71 = arith.constant 3.200000e+01 : f32
    %187 = vector.broadcast %cst_71 : f32 to vector<16x1xf32>
    %188 = arith.divf %186, %187 : vector<16x1xf32>
    %189 = vector.broadcast %183 : vector<16x1xf32> to vector<16x32xf32>
    %190 = arith.subf %177, %189 : vector<16x32xf32>
    %191 = arith.mulf %183, %183 : vector<16x1xf32>
    %192 = arith.subf %188, %191 : vector<16x1xf32>
    %cst_72 = arith.constant 9.99999974E-6 : f32
    %193 = vector.broadcast %cst_72 : f32 to vector<16x1xf32>
    %194 = arith.addf %192, %193 : vector<16x1xf32>
    %195 = math.rsqrt %194 : vector<16x1xf32>
    %196 = vector.broadcast %195 : vector<16x1xf32> to vector<16x32xf32>
    %197 = arith.mulf %190, %196 : vector<16x32xf32>
    %198 = vector.broadcast %178 : vector<1x32xf32> to vector<16x32xf32>
    %199 = arith.mulf %197, %198 : vector<16x32xf32>
    %200 = vector.broadcast %179 : vector<1x32xf32> to vector<16x32xf32>
    %201 = arith.addf %199, %200 : vector<16x32xf32>
    %c1_73 = arith.constant 1 : index
    %c0_74 = arith.constant 0 : index
    %c0_75 = arith.constant 0 : index
    %202 = vector.load %arg10[%c1_73, %c0_74, %c0_75] : memref<2x9x32xf32, #tpu.memory_space<vmem>>, vector<1x9x32xf32>
    %203 = vector.shape_cast %202 : vector<1x9x32xf32> to vector<9x32xf32>
    %204 = arith.truncf %201 : vector<16x32xf32> to vector<16x32xbf16>
    %c1_76 = arith.constant 1 : index
    %c0_77 = arith.constant 0 : index
    %c0_78 = arith.constant 0 : index
    %205 = vector.load %arg4[%c1_76, %c0_77, %c0_78] : memref<2x32x96xbf16, #tpu.memory_space<vmem>>, vector<1x32x96xbf16>
    %206 = vector.shape_cast %205 : vector<1x32x96xbf16> to vector<32x96xbf16>
    %cst_79 = arith.constant dense<0.000000e+00> : vector<16x96xf32>
    %207 = tpu.matmul %204, %206, %cst_79 {dimension_numbers = #tpu.dot_dimension_numbers<[1], [0], [0], [1], [0, 0, 1, 1], [], []>} : vector<16x32xbf16>, vector<32x96xbf16>, vector<16x96xf32> -> vector<16x96xf32>
    %208 = vector.extract_strided_slice %207 {offsets = [0, 0], sizes = [16, 32], strides = [1, 1]} : vector<16x96xf32> to vector<16x32xf32>
    %209 = vector.extract_strided_slice %207 {offsets = [0, 32], sizes = [16, 64], strides = [1, 1]} : vector<16x96xf32> to vector<16x64xf32>
    %c1_80 = arith.constant 1 : index
    %c0_81 = arith.constant 0 : index
    %c0_82 = arith.constant 0 : index
    %c0_83 = arith.constant 0 : index
    %210 = vector.load %arg7[%c1_80, %c0_81, %c0_82, %c0_83] : memref<2x2x32x32xbf16, #tpu.memory_space<vmem>>, vector<1x1x32x32xbf16>
    %211 = vector.shape_cast %210 : vector<1x1x32x32xbf16> to vector<32x32xbf16>
    %212 = vector.extract_strided_slice %203 {offsets = [0, 0], sizes = [1, 32], strides = [1, 1]} : vector<9x32xf32> to vector<1x32xf32>
    %213 = arith.truncf %208 : vector<16x32xf32> to vector<16x32xbf16>
    %214 = arith.truncf %209 : vector<16x64xf32> to vector<16x64xbf16>
    %215 = vector.extract_strided_slice %213 {offsets = [0, 0], sizes = [16, 8], strides = [1, 1]} : vector<16x32xbf16> to vector<16x8xbf16>
    %216 = vector.extract_strided_slice %214 {offsets = [0, 0], sizes = [16, 8], strides = [1, 1]} : vector<16x64xbf16> to vector<16x8xbf16>
    %cst_84 = arith.constant dense<0.000000e+00> : vector<16x16xf32>
    %217 = tpu.matmul %215, %216, %cst_84 {dimension_numbers = #tpu.dot_dimension_numbers<[1], [1], [0], [0], [0, 0, 1, 0], [], []>} : vector<16x8xbf16>, vector<16x8xbf16>, vector<16x16xf32> -> vector<16x16xf32>
    %218 = vector.extract_strided_slice %213 {offsets = [0, 8], sizes = [16, 8], strides = [1, 1]} : vector<16x32xbf16> to vector<16x8xbf16>
    %219 = vector.extract_strided_slice %214 {offsets = [0, 8], sizes = [16, 8], strides = [1, 1]} : vector<16x64xbf16> to vector<16x8xbf16>
    %cst_85 = arith.constant dense<0.000000e+00> : vector<16x16xf32>
    %220 = tpu.matmul %218, %219, %cst_85 {dimension_numbers = #tpu.dot_dimension_numbers<[1], [1], [0], [0], [0, 0, 1, 0], [], []>} : vector<16x8xbf16>, vector<16x8xbf16>, vector<16x16xf32> -> vector<16x16xf32>
    %221 = vector.extract_strided_slice %213 {offsets = [0, 16], sizes = [16, 8], strides = [1, 1]} : vector<16x32xbf16> to vector<16x8xbf16>
    %222 = vector.extract_strided_slice %214 {offsets = [0, 16], sizes = [16, 8], strides = [1, 1]} : vector<16x64xbf16> to vector<16x8xbf16>
    %cst_86 = arith.constant dense<0.000000e+00> : vector<16x16xf32>
    %223 = tpu.matmul %221, %222, %cst_86 {dimension_numbers = #tpu.dot_dimension_numbers<[1], [1], [0], [0], [0, 0, 1, 0], [], []>} : vector<16x8xbf16>, vector<16x8xbf16>, vector<16x16xf32> -> vector<16x16xf32>
    %224 = vector.extract_strided_slice %213 {offsets = [0, 24], sizes = [16, 8], strides = [1, 1]} : vector<16x32xbf16> to vector<16x8xbf16>
    %225 = vector.extract_strided_slice %214 {offsets = [0, 24], sizes = [16, 8], strides = [1, 1]} : vector<16x64xbf16> to vector<16x8xbf16>
    %cst_87 = arith.constant dense<0.000000e+00> : vector<16x16xf32>
    %226 = tpu.matmul %224, %225, %cst_87 {dimension_numbers = #tpu.dot_dimension_numbers<[1], [1], [0], [0], [0, 0, 1, 0], [], []>} : vector<16x8xbf16>, vector<16x8xbf16>, vector<16x16xf32> -> vector<16x16xf32>
    %227 = tpu.concatenate %217, %220, %223, %226 in 0 : vector<16x16xf32>, vector<16x16xf32>, vector<16x16xf32>, vector<16x16xf32> -> vector<64x16xf32>
    %228 = arith.addf %227, %1 : vector<64x16xf32>
    %cst_88 = arith.constant dense<0xFF800000> : vector<64xf32>
    %229 = vector.multi_reduction <maximumf>, %228, %cst_88 [1] : vector<64x16xf32> to vector<64xf32>
    %230 = vector.shape_cast %229 : vector<64xf32> to vector<64x1xf32>
    %231 = vector.broadcast %230 : vector<64x1xf32> to vector<64x16xf32>
    %232 = arith.subf %228, %231 : vector<64x16xf32>
    %233 = math.exp %232 : vector<64x16xf32>
    %cst_89 = arith.constant dense<0.000000e+00> : vector<64xf32>
    %234 = vector.multi_reduction <add>, %233, %cst_89 [1] : vector<64x16xf32> to vector<64xf32>
    %235 = vector.shape_cast %234 : vector<64xf32> to vector<64x1xf32>
    %236 = tpu.reciprocal %235 {approx = true} : vector<64x1xf32> -> vector<64x1xf32>
    %237 = vector.broadcast %236 : vector<64x1xf32> to vector<64x16xf32>
    %238 = arith.mulf %233, %237 : vector<64x16xf32>
    %239 = arith.truncf %238 : vector<64x16xf32> to vector<64x16xbf16>
    %240 = vector.extract_strided_slice %239 {offsets = [0, 0], sizes = [16, 16], strides = [1, 1]} : vector<64x16xbf16> to vector<16x16xbf16>
    %241 = vector.extract_strided_slice %214 {offsets = [0, 32], sizes = [16, 8], strides = [1, 1]} : vector<16x64xbf16> to vector<16x8xbf16>
    %cst_90 = arith.constant dense<0.000000e+00> : vector<16x8xf32>
    %242 = tpu.matmul %240, %241, %cst_90 {dimension_numbers = #tpu.dot_dimension_numbers<[1], [0], [0], [1], [0, 0, 1, 1], [], []>} : vector<16x16xbf16>, vector<16x8xbf16>, vector<16x8xf32> -> vector<16x8xf32>
    %243 = vector.extract_strided_slice %239 {offsets = [16, 0], sizes = [16, 16], strides = [1, 1]} : vector<64x16xbf16> to vector<16x16xbf16>
    %244 = vector.extract_strided_slice %214 {offsets = [0, 40], sizes = [16, 8], strides = [1, 1]} : vector<16x64xbf16> to vector<16x8xbf16>
    %cst_91 = arith.constant dense<0.000000e+00> : vector<16x8xf32>
    %245 = tpu.matmul %243, %244, %cst_91 {dimension_numbers = #tpu.dot_dimension_numbers<[1], [0], [0], [1], [0, 0, 1, 1], [], []>} : vector<16x16xbf16>, vector<16x8xbf16>, vector<16x8xf32> -> vector<16x8xf32>
    %246 = vector.extract_strided_slice %239 {offsets = [32, 0], sizes = [16, 16], strides = [1, 1]} : vector<64x16xbf16> to vector<16x16xbf16>
    %247 = vector.extract_strided_slice %214 {offsets = [0, 48], sizes = [16, 8], strides = [1, 1]} : vector<16x64xbf16> to vector<16x8xbf16>
    %cst_92 = arith.constant dense<0.000000e+00> : vector<16x8xf32>
    %248 = tpu.matmul %246, %247, %cst_92 {dimension_numbers = #tpu.dot_dimension_numbers<[1], [0], [0], [1], [0, 0, 1, 1], [], []>} : vector<16x16xbf16>, vector<16x8xbf16>, vector<16x8xf32> -> vector<16x8xf32>
    %249 = vector.extract_strided_slice %239 {offsets = [48, 0], sizes = [16, 16], strides = [1, 1]} : vector<64x16xbf16> to vector<16x16xbf16>
    %250 = vector.extract_strided_slice %214 {offsets = [0, 56], sizes = [16, 8], strides = [1, 1]} : vector<16x64xbf16> to vector<16x8xbf16>
    %cst_93 = arith.constant dense<0.000000e+00> : vector<16x8xf32>
    %251 = tpu.matmul %249, %250, %cst_93 {dimension_numbers = #tpu.dot_dimension_numbers<[1], [0], [0], [1], [0, 0, 1, 1], [], []>} : vector<16x16xbf16>, vector<16x8xbf16>, vector<16x8xf32> -> vector<16x8xf32>
    %252 = tpu.concatenate %242, %245, %248, %251 in 1 : vector<16x8xf32>, vector<16x8xf32>, vector<16x8xf32>, vector<16x8xf32> -> vector<16x32xf32>
    %253 = arith.truncf %252 : vector<16x32xf32> to vector<16x32xbf16>
    %cst_94 = arith.constant dense<0.000000e+00> : vector<16x32xf32>
    %254 = tpu.matmul %253, %211, %cst_94 {dimension_numbers = #tpu.dot_dimension_numbers<[1], [0], [0], [1], [0, 0, 1, 1], [], []>} : vector<16x32xbf16>, vector<32x32xbf16>, vector<16x32xf32> -> vector<16x32xf32>
    %255 = vector.broadcast %212 : vector<1x32xf32> to vector<16x32xf32>
    %256 = arith.addf %254, %255 : vector<16x32xf32>
    %257 = arith.addf %201, %256 : vector<16x32xf32>
    %258 = vector.extract_strided_slice %203 {offsets = [3, 0], sizes = [1, 32], strides = [1, 1]} : vector<9x32xf32> to vector<1x32xf32>
    %259 = vector.extract_strided_slice %203 {offsets = [4, 0], sizes = [1, 32], strides = [1, 1]} : vector<9x32xf32> to vector<1x32xf32>
    %cst_95 = arith.constant dense<0.000000e+00> : vector<16xf32>
    %260 = vector.multi_reduction <add>, %257, %cst_95 [1] : vector<16x32xf32> to vector<16xf32>
    %261 = vector.shape_cast %260 : vector<16xf32> to vector<16x1xf32>
    %cst_96 = arith.constant 3.200000e+01 : f32
    %262 = vector.broadcast %cst_96 : f32 to vector<16x1xf32>
    %263 = arith.divf %261, %262 : vector<16x1xf32>
    %264 = arith.mulf %257, %257 : vector<16x32xf32>
    %cst_97 = arith.constant dense<0.000000e+00> : vector<16xf32>
    %265 = vector.multi_reduction <add>, %264, %cst_97 [1] : vector<16x32xf32> to vector<16xf32>
    %266 = vector.shape_cast %265 : vector<16xf32> to vector<16x1xf32>
    %cst_98 = arith.constant 3.200000e+01 : f32
    %267 = vector.broadcast %cst_98 : f32 to vector<16x1xf32>
    %268 = arith.divf %266, %267 : vector<16x1xf32>
    %269 = vector.broadcast %263 : vector<16x1xf32> to vector<16x32xf32>
    %270 = arith.subf %257, %269 : vector<16x32xf32>
    %271 = arith.mulf %263, %263 : vector<16x1xf32>
    %272 = arith.subf %268, %271 : vector<16x1xf32>
    %cst_99 = arith.constant 9.99999974E-6 : f32
    %273 = vector.broadcast %cst_99 : f32 to vector<16x1xf32>
    %274 = arith.addf %272, %273 : vector<16x1xf32>
    %275 = math.rsqrt %274 : vector<16x1xf32>
    %276 = vector.broadcast %275 : vector<16x1xf32> to vector<16x32xf32>
    %277 = arith.mulf %270, %276 : vector<16x32xf32>
    %278 = vector.broadcast %258 : vector<1x32xf32> to vector<16x32xf32>
    %279 = arith.mulf %277, %278 : vector<16x32xf32>
    %280 = vector.broadcast %259 : vector<1x32xf32> to vector<16x32xf32>
    %281 = arith.addf %279, %280 : vector<16x32xf32>
    %282 = arith.truncf %281 : vector<16x32xf32> to vector<16x32xbf16>
    %c1_100 = arith.constant 1 : index
    %c0_101 = arith.constant 0 : index
    %c0_102 = arith.constant 0 : index
    %283 = vector.load %arg5[%c1_100, %c0_101, %c0_102] : memref<2x32x32xbf16, #tpu.memory_space<vmem>>, vector<1x32x32xbf16>
    %284 = vector.shape_cast %283 : vector<1x32x32xbf16> to vector<32x32xbf16>
    %cst_103 = arith.constant dense<0.000000e+00> : vector<16x32xf32>
    %285 = tpu.matmul %282, %284, %cst_103 {dimension_numbers = #tpu.dot_dimension_numbers<[1], [0], [0], [1], [0, 0, 1, 1], [], []>} : vector<16x32xbf16>, vector<32x32xbf16>, vector<16x32xf32> -> vector<16x32xf32>
    %286 = vector.extract_strided_slice %6 {offsets = [0, 64], sizes = [16, 64], strides = [1, 1]} : vector<16x128xf32> to vector<16x64xf32>
    %c1_104 = arith.constant 1 : index
    %c1_105 = arith.constant 1 : index
    %c0_106 = arith.constant 0 : index
    %c0_107 = arith.constant 0 : index
    %287 = vector.load %arg7[%c1_104, %c1_105, %c0_106, %c0_107] : memref<2x2x32x32xbf16, #tpu.memory_space<vmem>>, vector<1x1x32x32xbf16>
    %288 = vector.shape_cast %287 : vector<1x1x32x32xbf16> to vector<32x32xbf16>
    %289 = vector.extract_strided_slice %203 {offsets = [1, 0], sizes = [1, 32], strides = [1, 1]} : vector<9x32xf32> to vector<1x32xf32>
    %290 = arith.truncf %285 : vector<16x32xf32> to vector<16x32xbf16>
    %291 = arith.truncf %286 : vector<16x64xf32> to vector<16x64xbf16>
    %292 = vector.extract_strided_slice %290 {offsets = [0, 0], sizes = [16, 8], strides = [1, 1]} : vector<16x32xbf16> to vector<16x8xbf16>
    %293 = vector.extract_strided_slice %291 {offsets = [0, 0], sizes = [16, 8], strides = [1, 1]} : vector<16x64xbf16> to vector<16x8xbf16>
    %cst_108 = arith.constant dense<0.000000e+00> : vector<16x16xf32>
    %294 = tpu.matmul %292, %293, %cst_108 {dimension_numbers = #tpu.dot_dimension_numbers<[1], [1], [0], [0], [0, 0, 1, 0], [], []>} : vector<16x8xbf16>, vector<16x8xbf16>, vector<16x16xf32> -> vector<16x16xf32>
    %295 = vector.extract_strided_slice %290 {offsets = [0, 8], sizes = [16, 8], strides = [1, 1]} : vector<16x32xbf16> to vector<16x8xbf16>
    %296 = vector.extract_strided_slice %291 {offsets = [0, 8], sizes = [16, 8], strides = [1, 1]} : vector<16x64xbf16> to vector<16x8xbf16>
    %cst_109 = arith.constant dense<0.000000e+00> : vector<16x16xf32>
    %297 = tpu.matmul %295, %296, %cst_109 {dimension_numbers = #tpu.dot_dimension_numbers<[1], [1], [0], [0], [0, 0, 1, 0], [], []>} : vector<16x8xbf16>, vector<16x8xbf16>, vector<16x16xf32> -> vector<16x16xf32>
    %298 = vector.extract_strided_slice %290 {offsets = [0, 16], sizes = [16, 8], strides = [1, 1]} : vector<16x32xbf16> to vector<16x8xbf16>
    %299 = vector.extract_strided_slice %291 {offsets = [0, 16], sizes = [16, 8], strides = [1, 1]} : vector<16x64xbf16> to vector<16x8xbf16>
    %cst_110 = arith.constant dense<0.000000e+00> : vector<16x16xf32>
    %300 = tpu.matmul %298, %299, %cst_110 {dimension_numbers = #tpu.dot_dimension_numbers<[1], [1], [0], [0], [0, 0, 1, 0], [], []>} : vector<16x8xbf16>, vector<16x8xbf16>, vector<16x16xf32> -> vector<16x16xf32>
    %301 = vector.extract_strided_slice %290 {offsets = [0, 24], sizes = [16, 8], strides = [1, 1]} : vector<16x32xbf16> to vector<16x8xbf16>
    %302 = vector.extract_strided_slice %291 {offsets = [0, 24], sizes = [16, 8], strides = [1, 1]} : vector<16x64xbf16> to vector<16x8xbf16>
    %cst_111 = arith.constant dense<0.000000e+00> : vector<16x16xf32>
    %303 = tpu.matmul %301, %302, %cst_111 {dimension_numbers = #tpu.dot_dimension_numbers<[1], [1], [0], [0], [0, 0, 1, 0], [], []>} : vector<16x8xbf16>, vector<16x8xbf16>, vector<16x16xf32> -> vector<16x16xf32>
    %304 = tpu.concatenate %294, %297, %300, %303 in 0 : vector<16x16xf32>, vector<16x16xf32>, vector<16x16xf32>, vector<16x16xf32> -> vector<64x16xf32>
    %305 = arith.addf %304, %2 : vector<64x16xf32>
    %cst_112 = arith.constant dense<0xFF800000> : vector<64xf32>
    %306 = vector.multi_reduction <maximumf>, %305, %cst_112 [1] : vector<64x16xf32> to vector<64xf32>
    %307 = vector.shape_cast %306 : vector<64xf32> to vector<64x1xf32>
    %308 = vector.broadcast %307 : vector<64x1xf32> to vector<64x16xf32>
    %309 = arith.subf %305, %308 : vector<64x16xf32>
    %310 = math.exp %309 : vector<64x16xf32>
    %cst_113 = arith.constant dense<0.000000e+00> : vector<64xf32>
    %311 = vector.multi_reduction <add>, %310, %cst_113 [1] : vector<64x16xf32> to vector<64xf32>
    %312 = vector.shape_cast %311 : vector<64xf32> to vector<64x1xf32>
    %313 = tpu.reciprocal %312 {approx = true} : vector<64x1xf32> -> vector<64x1xf32>
    %314 = vector.broadcast %313 : vector<64x1xf32> to vector<64x16xf32>
    %315 = arith.mulf %310, %314 : vector<64x16xf32>
    %316 = arith.truncf %315 : vector<64x16xf32> to vector<64x16xbf16>
    %317 = vector.extract_strided_slice %316 {offsets = [0, 0], sizes = [16, 16], strides = [1, 1]} : vector<64x16xbf16> to vector<16x16xbf16>
    %318 = vector.extract_strided_slice %291 {offsets = [0, 32], sizes = [16, 8], strides = [1, 1]} : vector<16x64xbf16> to vector<16x8xbf16>
    %cst_114 = arith.constant dense<0.000000e+00> : vector<16x8xf32>
    %319 = tpu.matmul %317, %318, %cst_114 {dimension_numbers = #tpu.dot_dimension_numbers<[1], [0], [0], [1], [0, 0, 1, 1], [], []>} : vector<16x16xbf16>, vector<16x8xbf16>, vector<16x8xf32> -> vector<16x8xf32>
    %320 = vector.extract_strided_slice %316 {offsets = [16, 0], sizes = [16, 16], strides = [1, 1]} : vector<64x16xbf16> to vector<16x16xbf16>
    %321 = vector.extract_strided_slice %291 {offsets = [0, 40], sizes = [16, 8], strides = [1, 1]} : vector<16x64xbf16> to vector<16x8xbf16>
    %cst_115 = arith.constant dense<0.000000e+00> : vector<16x8xf32>
    %322 = tpu.matmul %320, %321, %cst_115 {dimension_numbers = #tpu.dot_dimension_numbers<[1], [0], [0], [1], [0, 0, 1, 1], [], []>} : vector<16x16xbf16>, vector<16x8xbf16>, vector<16x8xf32> -> vector<16x8xf32>
    %323 = vector.extract_strided_slice %316 {offsets = [32, 0], sizes = [16, 16], strides = [1, 1]} : vector<64x16xbf16> to vector<16x16xbf16>
    %324 = vector.extract_strided_slice %291 {offsets = [0, 48], sizes = [16, 8], strides = [1, 1]} : vector<16x64xbf16> to vector<16x8xbf16>
    %cst_116 = arith.constant dense<0.000000e+00> : vector<16x8xf32>
    %325 = tpu.matmul %323, %324, %cst_116 {dimension_numbers = #tpu.dot_dimension_numbers<[1], [0], [0], [1], [0, 0, 1, 1], [], []>} : vector<16x16xbf16>, vector<16x8xbf16>, vector<16x8xf32> -> vector<16x8xf32>
    %326 = vector.extract_strided_slice %316 {offsets = [48, 0], sizes = [16, 16], strides = [1, 1]} : vector<64x16xbf16> to vector<16x16xbf16>
    %327 = vector.extract_strided_slice %291 {offsets = [0, 56], sizes = [16, 8], strides = [1, 1]} : vector<16x64xbf16> to vector<16x8xbf16>
    %cst_117 = arith.constant dense<0.000000e+00> : vector<16x8xf32>
    %328 = tpu.matmul %326, %327, %cst_117 {dimension_numbers = #tpu.dot_dimension_numbers<[1], [0], [0], [1], [0, 0, 1, 1], [], []>} : vector<16x16xbf16>, vector<16x8xbf16>, vector<16x8xf32> -> vector<16x8xf32>
    %329 = tpu.concatenate %319, %322, %325, %328 in 1 : vector<16x8xf32>, vector<16x8xf32>, vector<16x8xf32>, vector<16x8xf32> -> vector<16x32xf32>
    %330 = arith.truncf %329 : vector<16x32xf32> to vector<16x32xbf16>
    %cst_118 = arith.constant dense<0.000000e+00> : vector<16x32xf32>
    %331 = tpu.matmul %330, %288, %cst_118 {dimension_numbers = #tpu.dot_dimension_numbers<[1], [0], [0], [1], [0, 0, 1, 1], [], []>} : vector<16x32xbf16>, vector<32x32xbf16>, vector<16x32xf32> -> vector<16x32xf32>
    %332 = vector.broadcast %289 : vector<1x32xf32> to vector<16x32xf32>
    %333 = arith.addf %331, %332 : vector<16x32xf32>
    %334 = arith.addf %281, %333 : vector<16x32xf32>
    %335 = vector.extract_strided_slice %203 {offsets = [5, 0], sizes = [1, 32], strides = [1, 1]} : vector<9x32xf32> to vector<1x32xf32>
    %336 = vector.extract_strided_slice %203 {offsets = [6, 0], sizes = [1, 32], strides = [1, 1]} : vector<9x32xf32> to vector<1x32xf32>
    %cst_119 = arith.constant dense<0.000000e+00> : vector<16xf32>
    %337 = vector.multi_reduction <add>, %334, %cst_119 [1] : vector<16x32xf32> to vector<16xf32>
    %338 = vector.shape_cast %337 : vector<16xf32> to vector<16x1xf32>
    %cst_120 = arith.constant 3.200000e+01 : f32
    %339 = vector.broadcast %cst_120 : f32 to vector<16x1xf32>
    %340 = arith.divf %338, %339 : vector<16x1xf32>
    %341 = arith.mulf %334, %334 : vector<16x32xf32>
    %cst_121 = arith.constant dense<0.000000e+00> : vector<16xf32>
    %342 = vector.multi_reduction <add>, %341, %cst_121 [1] : vector<16x32xf32> to vector<16xf32>
    %343 = vector.shape_cast %342 : vector<16xf32> to vector<16x1xf32>
    %cst_122 = arith.constant 3.200000e+01 : f32
    %344 = vector.broadcast %cst_122 : f32 to vector<16x1xf32>
    %345 = arith.divf %343, %344 : vector<16x1xf32>
    %346 = vector.broadcast %340 : vector<16x1xf32> to vector<16x32xf32>
    %347 = arith.subf %334, %346 : vector<16x32xf32>
    %348 = arith.mulf %340, %340 : vector<16x1xf32>
    %349 = arith.subf %345, %348 : vector<16x1xf32>
    %cst_123 = arith.constant 9.99999974E-6 : f32
    %350 = vector.broadcast %cst_123 : f32 to vector<16x1xf32>
    %351 = arith.addf %349, %350 : vector<16x1xf32>
    %352 = math.rsqrt %351 : vector<16x1xf32>
    %353 = vector.broadcast %352 : vector<16x1xf32> to vector<16x32xf32>
    %354 = arith.mulf %347, %353 : vector<16x32xf32>
    %355 = vector.broadcast %335 : vector<1x32xf32> to vector<16x32xf32>
    %356 = arith.mulf %354, %355 : vector<16x32xf32>
    %357 = vector.broadcast %336 : vector<1x32xf32> to vector<16x32xf32>
    %358 = arith.addf %356, %357 : vector<16x32xf32>
    %359 = arith.truncf %358 : vector<16x32xf32> to vector<16x32xbf16>
    %c1_124 = arith.constant 1 : index
    %c0_125 = arith.constant 0 : index
    %c0_126 = arith.constant 0 : index
    %360 = vector.load %arg8[%c1_124, %c0_125, %c0_126] : memref<2x32x64xbf16, #tpu.memory_space<vmem>>, vector<1x32x64xbf16>
    %361 = vector.shape_cast %360 : vector<1x32x64xbf16> to vector<32x64xbf16>
    %cst_127 = arith.constant dense<0.000000e+00> : vector<16x64xf32>
    %362 = tpu.matmul %359, %361, %cst_127 {dimension_numbers = #tpu.dot_dimension_numbers<[1], [0], [0], [1], [0, 0, 1, 1], [], []>} : vector<16x32xbf16>, vector<32x64xbf16>, vector<16x64xf32> -> vector<16x64xf32>
    %cst_128 = arith.constant 0.000000e+00 : f32
    %363 = vector.broadcast %cst_128 : f32 to vector<16x64xf32>
    %364 = arith.maximumf %362, %363 : vector<16x64xf32>
    %365 = arith.truncf %364 : vector<16x64xf32> to vector<16x64xbf16>
    %c1_129 = arith.constant 1 : index
    %c0_130 = arith.constant 0 : index
    %c0_131 = arith.constant 0 : index
    %366 = vector.load %arg9[%c1_129, %c0_130, %c0_131] : memref<2x64x32xbf16, #tpu.memory_space<vmem>>, vector<1x64x32xbf16>
    %367 = vector.shape_cast %366 : vector<1x64x32xbf16> to vector<64x32xbf16>
    %cst_132 = arith.constant dense<0.000000e+00> : vector<16x32xf32>
    %368 = tpu.matmul %365, %367, %cst_132 {dimension_numbers = #tpu.dot_dimension_numbers<[1], [0], [0], [1], [0, 0, 1, 1], [], []>} : vector<16x64xbf16>, vector<64x32xbf16>, vector<16x32xf32> -> vector<16x32xf32>
    %369 = vector.extract_strided_slice %203 {offsets = [2, 0], sizes = [1, 32], strides = [1, 1]} : vector<9x32xf32> to vector<1x32xf32>
    %370 = vector.broadcast %369 : vector<1x32xf32> to vector<16x32xf32>
    %371 = arith.addf %368, %370 : vector<16x32xf32>
    %372 = arith.addf %358, %371 : vector<16x32xf32>
    %373 = vector.extract_strided_slice %203 {offsets = [7, 0], sizes = [1, 32], strides = [1, 1]} : vector<9x32xf32> to vector<1x32xf32>
    %374 = vector.extract_strided_slice %203 {offsets = [8, 0], sizes = [1, 32], strides = [1, 1]} : vector<9x32xf32> to vector<1x32xf32>
    %cst_133 = arith.constant dense<0.000000e+00> : vector<16xf32>
    %375 = vector.multi_reduction <add>, %372, %cst_133 [1] : vector<16x32xf32> to vector<16xf32>
    %376 = vector.shape_cast %375 : vector<16xf32> to vector<16x1xf32>
    %cst_134 = arith.constant 3.200000e+01 : f32
    %377 = vector.broadcast %cst_134 : f32 to vector<16x1xf32>
    %378 = arith.divf %376, %377 : vector<16x1xf32>
    %379 = arith.mulf %372, %372 : vector<16x32xf32>
    %cst_135 = arith.constant dense<0.000000e+00> : vector<16xf32>
    %380 = vector.multi_reduction <add>, %379, %cst_135 [1] : vector<16x32xf32> to vector<16xf32>
    %381 = vector.shape_cast %380 : vector<16xf32> to vector<16x1xf32>
    %cst_136 = arith.constant 3.200000e+01 : f32
    %382 = vector.broadcast %cst_136 : f32 to vector<16x1xf32>
    %383 = arith.divf %381, %382 : vector<16x1xf32>
    %384 = vector.broadcast %378 : vector<16x1xf32> to vector<16x32xf32>
    %385 = arith.subf %372, %384 : vector<16x32xf32>
    %386 = arith.mulf %378, %378 : vector<16x1xf32>
    %387 = arith.subf %383, %386 : vector<16x1xf32>
    %cst_137 = arith.constant 9.99999974E-6 : f32
    %388 = vector.broadcast %cst_137 : f32 to vector<16x1xf32>
    %389 = arith.addf %387, %388 : vector<16x1xf32>
    %390 = math.rsqrt %389 : vector<16x1xf32>
    %391 = vector.broadcast %390 : vector<16x1xf32> to vector<16x32xf32>
    %392 = arith.mulf %385, %391 : vector<16x32xf32>
    %393 = vector.broadcast %373 : vector<1x32xf32> to vector<16x32xf32>
    %394 = arith.mulf %392, %393 : vector<16x32xf32>
    %395 = vector.broadcast %374 : vector<1x32xf32> to vector<16x32xf32>
    %396 = arith.addf %394, %395 : vector<16x32xf32>
    %c0_138 = arith.constant 0 : index
    %c0_139 = arith.constant 0 : index
    %397 = vector.load %arg11[%c0_138, %c0_139] : memref<16x32xf32, #tpu.memory_space<vmem>>, vector<16x32xf32>
    tpu.vector_store %arg11[%c0_138, %c0_139], %396 {strides = array<i32>} : memref<16x32xf32, #tpu.memory_space<vmem>>, vector<16x32xf32>,
    return
  }
}

</mosaic_0001>

<llo_original>
// kernel: tpu_custom_call.1
$region0: #{tpu_custom_call.1}
  #allocation0 [shape = 'u32[]', space=smem, size = 0x4, offset = 0x4, fixed_abs, tag = 'smem constant byte address 0x4 - core index']
  #allocation1 [shape = 'u32[144,128]{1,0:T(1,128)}', space=vmem, size = 0x12000, scoped, tag = 'internal scratch']
  %s0 = inlined_call_operand.vmem [shape: f32[16,32], index: 0, kind: input, shape index: {}]
  %s1 = inlined_call_operand.vmem [shape: f32[16,32], index: 1, kind: input, shape index: {}]
  %s2 = inlined_call_operand.vmem [shape: f32[64,16], index: 2, kind: input, shape index: {}]
  %s3 = inlined_call_operand.vmem [shape: f32[64,16], index: 3, kind: input, shape index: {}]
  %s4 = inlined_call_operand.vmem [shape: bf16[2,32,96], index: 4, kind: input, shape index: {}]
  %s5 = inlined_call_operand.vmem [shape: bf16[2,32,32], index: 5, kind: input, shape index: {}]
  %s6 = inlined_call_operand.vmem [shape: bf16[32,128], index: 6, kind: input, shape index: {}]
  %s7 = inlined_call_operand.vmem [shape: bf16[2,2,32,32], index: 7, kind: input, shape index: {}]
  %s8 = inlined_call_operand.vmem [shape: bf16[2,32,64], index: 8, kind: input, shape index: {}]
  %s9 = inlined_call_operand.vmem [shape: bf16[2,64,32], index: 9, kind: input, shape index: {}]
  %s10 = inlined_call_operand.vmem [shape: f32[2,9,32], index: 10, kind: input, shape index: {}]
  %s11 = inlined_call_operand.hbm [shape: f32[16,32], index: 11, kind: output, shape index: {}]
  %s12 = sld [smem:[#allocation0]]
  $region54: #{tpu_custom_call.1} parent=0
    _
  %s14 = ssub.s32 1, %s12
  %s15 = scalar_select 0, %s14, %s12
  $region1: #{tpu_custom_call.1} parent=0
    #allocation2 [shape = 'u8[8192]{0}', space=vmem, size = 0x2000, scoped, tag = 'output window, operand 0, single buffered']
    #allocation3 [shape = 's32[1]{0}', space=sflag, size = 0x4, scoped, tag = 'scoped memory for tpu_custom_call.1']
    %16 = vsyncpa [#allocation3], 0
    // Predicated region
    $region2: #{tpu_custom_call.1} parent=1 // pred_check
      _
    $region3: #{tpu_custom_call.1} parent=1 // pred_check_branch
      %18 = sbr.rel (0) target = $region5
    $region4: #{tpu_custom_call.1} parent=1 // pred_region
      _
    $region5: #{tpu_custom_call.1} parent=1 // pred_fallthru
      _
    // Predicated region
    $region6: #{tpu_custom_call.1} parent=1 // pred_check
      _
    $region7: #{tpu_custom_call.1} parent=1 // pred_check_branch
      %20 = sbr.rel (0) target = $region9
    $region8: #{tpu_custom_call.1} parent=1 // pred_region
      _
    $region9: #{tpu_custom_call.1} parent=1 // pred_fallthru
      _
    // Predicated region
    $region10: #{tpu_custom_call.1} parent=1 // pred_check
      _
    $region11: #{tpu_custom_call.1} parent=1 // pred_check_branch
      %22 = sbr.rel (0) target = $region13
    $region12: #{tpu_custom_call.1} parent=1 // pred_region
      _
    $region13: #{tpu_custom_call.1} parent=1 // pred_fallthru
      _
    // Predicated region
    $region14: #{tpu_custom_call.1} parent=1 // pred_check
      _
    $region15: #{tpu_custom_call.1} parent=1 // pred_check_branch
      %24 = sbr.rel (0) target = $region17
    $region16: #{tpu_custom_call.1} parent=1 // pred_region
      _
    $region17: #{tpu_custom_call.1} parent=1 // pred_fallthru
      _
    // Predicated region
    $region18: #{tpu_custom_call.1} parent=1 // pred_check
      _
    $region19: #{tpu_custom_call.1} parent=1 // pred_check_branch
      %26 = sbr.rel (0) target = $region21
    $region20: #{tpu_custom_call.1} parent=1 // pred_region
      _
    $region21: #{tpu_custom_call.1} parent=1 // pred_fallthru
      _
    // Predicated region
    $region22: #{tpu_custom_call.1} parent=1 // pred_check
      _
    $region23: #{tpu_custom_call.1} parent=1 // pred_check_branch
      %28 = sbr.rel (0) target = $region25
    $region24: #{tpu_custom_call.1} parent=1 // pred_region
      _
    $region25: #{tpu_custom_call.1} parent=1 // pred_fallthru
      _
    // Predicated region
    $region26: #{tpu_custom_call.1} parent=1 // pred_check
      _
    $region27: #{tpu_custom_call.1} parent=1 // pred_check_branch
      %30 = sbr.rel (0) target = $region29
    $region28: #{tpu_custom_call.1} parent=1 // pred_region
      _
    $region29: #{tpu_custom_call.1} parent=1 // pred_fallthru
      _
    // Predicated region
    $region30: #{tpu_custom_call.1} parent=1 // pred_check
      _
    $region31: #{tpu_custom_call.1} parent=1 // pred_check_branch
      %32 = sbr.rel (0) target = $region33
    $region32: #{tpu_custom_call.1} parent=1 // pred_region
      _
    $region33: #{tpu_custom_call.1} parent=1 // pred_fallthru
      _
    // Predicated region
    $region34: #{tpu_custom_call.1} parent=1 // pred_check
      _
    $region35: #{tpu_custom_call.1} parent=1 // pred_check_branch
      %34 = sbr.rel (0) target = $region37
    $region36: #{tpu_custom_call.1} parent=1 // pred_region
      _
    $region37: #{tpu_custom_call.1} parent=1 // pred_fallthru
      _
    // Predicated region
    $region38: #{tpu_custom_call.1} parent=1 // pred_check
      _
    $region39: #{tpu_custom_call.1} parent=1 // pred_check_branch
      %36 = sbr.rel (0) target = $region41
    $region40: #{tpu_custom_call.1} parent=1 // pred_region
      _
    $region41: #{tpu_custom_call.1} parent=1 // pred_fallthru
      _
    // Predicated region
    $region42: #{tpu_custom_call.1} parent=1 // pred_check
      _
    $region43: #{tpu_custom_call.1} parent=1 // pred_check_branch
      %38 = sbr.rel (0) target = $region45
    $region44: #{tpu_custom_call.1} parent=1 // pred_region
      _
    $region45: #{tpu_custom_call.1} parent=1 // pred_fallthru
      _
    %v40 = vld [vmem:[%s0] sm:$0xff]
    %v41 = vld [vmem:[%s0 + $0x8] sm:$0xff]
    %v42 = vld [vmem:[%s2] sm:$0xff]
    %v43 = vld [vmem:[%s2 + $0x8] sm:$0xff]
    %v44 = vld [vmem:[%s2 + $0x10] sm:$0xff]
    %v45 = vld [vmem:[%s2 + $0x18] sm:$0xff]
    %v46 = vld [vmem:[%s2 + $0x20] sm:$0xff]
    %v47 = vld [vmem:[%s2 + $0x28] sm:$0xff]
    %v48 = vld [vmem:[%s2 + $0x30] sm:$0xff]
    %v49 = vld [vmem:[%s2 + $0x38] sm:$0xff]
    %v50 = vld [vmem:[%s3] sm:$0xff]
    %v51 = vld [vmem:[%s3 + $0x8] sm:$0xff]
    %v52 = vld [vmem:[%s3 + $0x10] sm:$0xff]
    %v53 = vld [vmem:[%s3 + $0x18] sm:$0xff]
    %v54 = vld [vmem:[%s3 + $0x20] sm:$0xff]
    %v55 = vld [vmem:[%s3 + $0x28] sm:$0xff]
    %v56 = vld [vmem:[%s3 + $0x30] sm:$0xff]
    %v57 = vld [vmem:[%s3 + $0x38] sm:$0xff]
    %v58 = vld [vmem:[%s1] sm:$0xff]
    %v59 = vld [vmem:[%s1 + $0x8] sm:$0xff]
    %v60 = vpack.c.bf16 %v59, %v58
    %v61 = vld [vmem:[%s6] sm:$0xf]
    %v62 = vld [vmem:[%s6 + $0x4] sm:$0xf]
    %v63 = vld [vmem:[%s6 + $0x8] sm:$0xf]
    %v64 = vld [vmem:[%s6 + $0xc] sm:$0xf]
    %v69 = vunpack.c.l.b16 %v61
    %v70 = vunpack.c.l.b16 %v62
    %v71 = vunpack.c.l.b16 %v63
    %v72 = vunpack.c.l.b16 %v64
    %v73 = vpack.c.b16 %v70, %v69
    %v74 = vpack.c.b16 %v72, %v71
    %vm77 = vcmask 261120
    %v79 = vsel %vm77, %v60, 0
    %81 = vmatprep.subr.bf16.mxu0 0
    %82 = vmatpush1.bf16.msra.mxu0 %v73
    %83 = vmatprep.subr.bf16.mxu0 0
    %84 = vmatpush1.bf16.msra.mxu0 %v74
    %85 = vmatprep.subr.bf16.mxu0 0
    %86 = vmatpush1.bf16.msra.mxu0 0
    %87 = vmatprep.subr.bf16.mxu0 0
    %88 = vmatpush1.bf16.msra.mxu0 0
    %89 = vmatprep.subr.bf16.mxu0 0
    %90 = vmatpush1.bf16.msra.mxu0 0
    %91 = vmatprep.subr.bf16.mxu0 0
    %92 = vmatpush1.bf16.msra.mxu0 0
    %93 = vmatprep.subr.bf16.mxu0 0
    %94 = vmatpush1.bf16.msra.mxu0 0
    %95 = vmatprep.subr.bf16.mxu0 0
    %96 = vmatpush1.bf16.msra.mxu0 0
    %97 = vmatprep.subr.bf16.mxu0 0
    %98 = vmatpush1.bf16.msra.mxu0 0
    %99 = vmatprep.subr.bf16.mxu0 0
    %100 = vmatpush1.bf16.msra.mxu0 0
    %101 = vmatprep.subr.bf16.mxu0 0
    %102 = vmatpush1.bf16.msra.mxu0 0
    %103 = vmatprep.subr.bf16.mxu0 0
    %104 = vmatpush1.bf16.msra.mxu0 0
    %105 = vmatprep.subr.bf16.mxu0 0
    %106 = vmatpush1.bf16.msra.mxu0 0
    %107 = vmatprep.subr.bf16.mxu0 0
    %108 = vmatpush1.bf16.msra.mxu0 0
    %109 = vmatprep.subr.bf16.mxu0 0
    %110 = vmatpush1.bf16.msra.mxu0 0
    %111 = vmatprep.subr.bf16.mxu0 0
    %112 = vmatpush1.bf16.msra.mxu0 0
    %113 = vmatprep.mubr.bf16.mxu0 0
    %114 = vmatmul.mubr.bf16.gmra.mrb[0].mxu0 %v79
    %v115 = vpop.f32.mrb[0].mxu0
    %v116 = vadd.f32 0.0, %v115
    %v117 = vpop.f32.mrb[0].mxu0
    %v118 = vpop.f32.mrb[0].mxu0
    %v119 = vadd.f32 0.0, %v118
    %v120 = vpop.f32.mrb[0].mxu0
    %121 = vdwg.mxu0
    %v122 = vld [vmem:[%s10] sm:$0xff]
    %v123 = vld [vmem:[%s10 + $0x8] sm:$0x1]
    %v124 = vpack.c.bf16 %v41, %v40
    %v125 = vld [vmem:[%s4] sm:$0xf]
    %v126 = vld [vmem:[%s4 + $0x4] sm:$0xf]
    %v127 = vld [vmem:[%s4 + $0x8] sm:$0xf]
    %v128 = vld [vmem:[%s4 + $0xc] sm:$0xf]
    %v133 = vunpack.c.l.b16 %v125
    %v134 = vunpack.c.l.b16 %v126
    %v135 = vunpack.c.l.b16 %v127
    %v136 = vunpack.c.l.b16 %v128
    %v137 = vpack.c.b16 %v134, %v133
    %v138 = vpack.c.b16 %v136, %v135
    %v142 = vsel %vm77, %v124, 0
    %144 = vmatprep.subr.bf16.mxu0 0
    %145 = vmatpush1.bf16.msra.mxu0 %v137
    %146 = vmatprep.subr.bf16.mxu0 0
    %147 = vmatpush1.bf16.msra.mxu0 %v138
    %148 = vmatprep.subr.bf16.mxu0 0
    %149 = vmatpush1.bf16.msra.mxu0 0
    %150 = vmatprep.subr.bf16.mxu0 0
    %151 = vmatpush1.bf16.msra.mxu0 0
    %152 = vmatprep.subr.bf16.mxu0 0
    %153 = vmatpush1.bf16.msra.mxu0 0
    %154 = vmatprep.subr.bf16.mxu0 0
    %155 = vmatpush1.bf16.msra.mxu0 0
    %156 = vmatprep.subr.bf16.mxu0 0
    %157 = vmatpush1.bf16.msra.mxu0 0
    %158 = vmatprep.subr.bf16.mxu0 0
    %159 = vmatpush1.bf16.msra.mxu0 0
    %160 = vmatprep.subr.bf16.mxu0 0
    %161 = vmatpush1.bf16.msra.mxu0 0
    %162 = vmatprep.subr.bf16.mxu0 0
    %163 = vmatpush1.bf16.msra.mxu0 0
    %164 = vmatprep.subr.bf16.mxu0 0
    %165 = vmatpush1.bf16.msra.mxu0 0
    %166 = vmatprep.subr.bf16.mxu0 0
    %167 = vmatpush1.bf16.msra.mxu0 0
    %168 = vmatprep.subr.bf16.mxu0 0
    %169 = vmatpush1.bf16.msra.mxu0 0
    %170 = vmatprep.subr.bf16.mxu0 0
    %171 = vmatpush1.bf16.msra.mxu0 0
    %172 = vmatprep.subr.bf16.mxu0 0
    %173 = vmatpush1.bf16.msra.mxu0 0
    %174 = vmatprep.subr.bf16.mxu0 0
    %175 = vmatpush1.bf16.msra.mxu0 0
    %176 = vmatprep.mubr.bf16.mxu0 0
    %177 = vmatmul.mubr.bf16.gmra.mrb[0].mxu0 %v142
    %v178 = vpop.f32.mrb[0].mxu0
    %v179 = vadd.f32 0.0, %v178
    %v180 = vpop.f32.mrb[0].mxu0
    %v181 = vpop.f32.mrb[0].mxu0
    %v182 = vadd.f32 0.0, %v181
    %v183 = vpop.f32.mrb[0].mxu0
    %184 = vdwg.mxu0
    %v185 = vld [vmem:[%s7] sm:$0xf]
    %v186 = vld [vmem:[%s7 + $0x4] sm:$0xf]
    %v187 = vld [vmem:[%s7 + $0x8] sm:$0xf]
    %v188 = vld [vmem:[%s7 + $0xc] sm:$0xf]
    %v189 = vpack.c.bf16 %v182, %v179
    %191 = vrot.lane.b32.xlu0 %v189, 96
    %v192 = vpop.permute.xlu0 %191
    %vm193 = vcmask 64512
    %v195 = vsel %vm193, %v189, 0
    %v198 = vsel %vm193, %v192, 0
    %200 = vmatprep.subr.bf16.mxu0 0
    %201 = vmatpush1.bf16.xpose.msra.mxu0 %v198
    %202 = vmatprep.subr.bf16.mxu0 0
    %203 = vmatpush1.bf16.xpose.msra.mxu0 0
    %204 = vmatprep.subr.bf16.mxu0 0
    %205 = vmatpush1.bf16.xpose.msra.mxu0 0
    %206 = vmatprep.subr.bf16.mxu0 0
    %207 = vmatpush1.bf16.xpose.msra.mxu0 0
    %208 = vmatprep.subr.bf16.mxu0 0
    %209 = vmatpush1.bf16.xpose.msra.mxu0 0
    %210 = vmatprep.subr.bf16.mxu0 0
    %211 = vmatpush1.bf16.xpose.msra.mxu0 0
    %212 = vmatprep.subr.bf16.mxu0 0
    %213 = vmatpush1.bf16.xpose.msra.mxu0 0
    %214 = vmatprep.subr.bf16.mxu0 0
    %215 = vmatpush1.bf16.xpose.msra.mxu0 0
    %216 = vmatprep.subr.bf16.mxu0 0
    %217 = vmatpush1.bf16.xpose.msra.mxu0 0
    %218 = vmatprep.subr.bf16.mxu0 0
    %219 = vmatpush1.bf16.xpose.msra.mxu0 0
    %220 = vmatprep.subr.bf16.mxu0 0
    %221 = vmatpush1.bf16.xpose.msra.mxu0 0
    %222 = vmatprep.subr.bf16.mxu0 0
    %223 = vmatpush1.bf16.xpose.msra.mxu0 0
    %224 = vmatprep.subr.bf16.mxu0 0
    %225 = vmatpush1.bf16.xpose.msra.mxu0 0
    %226 = vmatprep.subr.bf16.mxu0 0
    %227 = vmatpush1.bf16.xpose.msra.mxu0 0
    %228 = vmatprep.subr.bf16.mxu0 0
    %229 = vmatpush1.bf16.xpose.msra.mxu0 0
    %230 = vmatprep.subr.bf16.mxu0 0
    %231 = vmatpush1.bf16.xpose.msra.mxu0 0
    %232 = vmatprep.mubr.bf16.mxu0 0
    %233 = vmatmul.mubr.bf16.gmra.mrb[0].mxu0 %v195
    %v234 = vpop.f32.mrb[0].mxu0
    %v235 = vadd.f32 0.0, %v234
    %v236 = vpop.f32.mrb[0].mxu0
    %v237 = vpop.f32.mrb[0].mxu0
    %v238 = vadd.f32 0.0, %v237
    %v239 = vpop.f32.mrb[0].mxu0
    %240 = vdwg.mxu0
    %241 = vrot.lane.b32.xlu0 %v189, 120
    %v242 = vpop.permute.xlu0 %241
    %243 = vrot.lane.b32.xlu0 %v189, 88
    %v244 = vpop.permute.xlu0 %243
    %v246 = vsel %vm193, %v242, 0
    %v249 = vsel %vm193, %v244, 0
    %251 = vmatprep.subr.bf16.mxu0 0
    %252 = vmatpush1.bf16.xpose.msra.mxu0 %v249
    %253 = vmatprep.subr.bf16.mxu0 0
    %254 = vmatpush1.bf16.xpose.msra.mxu0 0
    %255 = vmatprep.subr.bf16.mxu0 0
    %256 = vmatpush1.bf16.xpose.msra.mxu0 0
    %257 = vmatprep.subr.bf16.mxu0 0
    %258 = vmatpush1.bf16.xpose.msra.mxu0 0
    %259 = vmatprep.subr.bf16.mxu0 0
    %260 = vmatpush1.bf16.xpose.msra.mxu0 0
    %261 = vmatprep.subr.bf16.mxu0 0
    %262 = vmatpush1.bf16.xpose.msra.mxu0 0
    %263 = vmatprep.subr.bf16.mxu0 0
    %264 = vmatpush1.bf16.xpose.msra.mxu0 0
    %265 = vmatprep.subr.bf16.mxu0 0
    %266 = vmatpush1.bf16.xpose.msra.mxu0 0
    %267 = vmatprep.subr.bf16.mxu0 0
    %268 = vmatpush1.bf16.xpose.msra.mxu0 0
    %269 = vmatprep.subr.bf16.mxu0 0
    %270 = vmatpush1.bf16.xpose.msra.mxu0 0
    %271 = vmatprep.subr.bf16.mxu0 0
    %272 = vmatpush1.bf16.xpose.msra.mxu0 0
    %273 = vmatprep.subr.bf16.mxu0 0
    %274 = vmatpush1.bf16.xpose.msra.mxu0 0
    %275 = vmatprep.subr.bf16.mxu0 0
    %276 = vmatpush1.bf16.xpose.msra.mxu0 0
    %277 = vmatprep.subr.bf16.mxu0 0
    %278 = vmatpush1.bf16.xpose.msra.mxu0 0
    %279 = vmatprep.subr.bf16.mxu0 0
    %280 = vmatpush1.bf16.xpose.msra.mxu0 0
    %281 = vmatprep.subr.bf16.mxu0 0
    %282 = vmatpush1.bf16.xpose.msra.mxu0 0
    %283 = vmatprep.mubr.bf16.mxu0 0
    %284 = vmatmul.mubr.bf16.gmra.mrb[0].mxu0 %v246
    %v285 = vpop.f32.mrb[0].mxu0
    %v286 = vadd.f32 0.0, %v285
    %v287 = vpop.f32.mrb[0].mxu0
    %v288 = vpop.f32.mrb[0].mxu0
    %v289 = vadd.f32 0.0, %v288
    %v290 = vpop.f32.mrb[0].mxu0
    %291 = vdwg.mxu0
    %292 = vrot.lane.b32.xlu0 %v189, 112
    %v293 = vpop.permute.xlu0 %292
    %294 = vrot.lane.b32.xlu0 %v189, 80
    %v295 = vpop.permute.xlu0 %294
    %v297 = vsel %vm193, %v293, 0
    %v300 = vsel %vm193, %v295, 0
    %302 = vmatprep.subr.bf16.mxu0 0
    %303 = vmatpush1.bf16.xpose.msra.mxu0 %v300
    %304 = vmatprep.subr.bf16.mxu0 0
    %305 = vmatpush1.bf16.xpose.msra.mxu0 0
    %306 = vmatprep.subr.bf16.mxu0 0
    %307 = vmatpush1.bf16.xpose.msra.mxu0 0
    %308 = vmatprep.subr.bf16.mxu0 0
    %309 = vmatpush1.bf16.xpose.msra.mxu0 0
    %310 = vmatprep.subr.bf16.mxu0 0
    %311 = vmatpush1.bf16.xpose.msra.mxu0 0
    %312 = vmatprep.subr.bf16.mxu0 0
    %313 = vmatpush1.bf16.xpose.msra.mxu0 0
    %314 = vmatprep.subr.bf16.mxu0 0
    %315 = vmatpush1.bf16.xpose.msra.mxu0 0
    %316 = vmatprep.subr.bf16.mxu0 0
    %317 = vmatpush1.bf16.xpose.msra.mxu0 0
    %318 = vmatprep.subr.bf16.mxu0 0
    %319 = vmatpush1.bf16.xpose.msra.mxu0 0
    %320 = vmatprep.subr.bf16.mxu0 0
    %321 = vmatpush1.bf16.xpose.msra.mxu0 0
    %322 = vmatprep.subr.bf16.mxu0 0
    %323 = vmatpush1.bf16.xpose.msra.mxu0 0
    %324 = vmatprep.subr.bf16.mxu0 0
    %325 = vmatpush1.bf16.xpose.msra.mxu0 0
    %326 = vmatprep.subr.bf16.mxu0 0
    %327 = vmatpush1.bf16.xpose.msra.mxu0 0
    %328 = vmatprep.subr.bf16.mxu0 0
    %329 = vmatpush1.bf16.xpose.msra.mxu0 0
    %330 = vmatprep.subr.bf16.mxu0 0
    %331 = vmatpush1.bf16.xpose.msra.mxu0 0
    %332 = vmatprep.subr.bf16.mxu0 0
    %333 = vmatpush1.bf16.xpose.msra.mxu0 0
    %334 = vmatprep.mubr.bf16.mxu0 0
    %335 = vmatmul.mubr.bf16.gmra.mrb[0].mxu0 %v297
    %v336 = vpop.f32.mrb[0].mxu0
    %v337 = vadd.f32 0.0, %v336
    %v338 = vpop.f32.mrb[0].mxu0
    %v339 = vpop.f32.mrb[0].mxu0
    %v340 = vadd.f32 0.0, %v339
    %v341 = vpop.f32.mrb[0].mxu0
    %342 = vdwg.mxu0
    %343 = vrot.lane.b32.xlu0 %v189, 104
    %v344 = vpop.permute.xlu0 %343
    %345 = vrot.lane.b32.xlu0 %v189, 72
    %v346 = vpop.permute.xlu0 %345
    %v348 = vsel %vm193, %v344, 0
    %v351 = vsel %vm193, %v346, 0
    %353 = vmatprep.subr.bf16.mxu0 0
    %354 = vmatpush1.bf16.xpose.msra.mxu0 %v351
    %355 = vmatprep.subr.bf16.mxu0 0
    %356 = vmatpush1.bf16.xpose.msra.mxu0 0
    %357 = vmatprep.subr.bf16.mxu0 0
    %358 = vmatpush1.bf16.xpose.msra.mxu0 0
    %359 = vmatprep.subr.bf16.mxu0 0
    %360 = vmatpush1.bf16.xpose.msra.mxu0 0
    %361 = vmatprep.subr.bf16.mxu0 0
    %362 = vmatpush1.bf16.xpose.msra.mxu0 0
    %363 = vmatprep.subr.bf16.mxu0 0
    %364 = vmatpush1.bf16.xpose.msra.mxu0 0
    %365 = vmatprep.subr.bf16.mxu0 0
    %366 = vmatpush1.bf16.xpose.msra.mxu0 0
    %367 = vmatprep.subr.bf16.mxu0 0
    %368 = vmatpush1.bf16.xpose.msra.mxu0 0
    %369 = vmatprep.subr.bf16.mxu0 0
    %370 = vmatpush1.bf16.xpose.msra.mxu0 0
    %371 = vmatprep.subr.bf16.mxu0 0
    %372 = vmatpush1.bf16.xpose.msra.mxu0 0
    %373 = vmatprep.subr.bf16.mxu0 0
    %374 = vmatpush1.bf16.xpose.msra.mxu0 0
    %375 = vmatprep.subr.bf16.mxu0 0
    %376 = vmatpush1.bf16.xpose.msra.mxu0 0
    %377 = vmatprep.subr.bf16.mxu0 0
    %378 = vmatpush1.bf16.xpose.msra.mxu0 0
    %379 = vmatprep.subr.bf16.mxu0 0
    %380 = vmatpush1.bf16.xpose.msra.mxu0 0
    %381 = vmatprep.subr.bf16.mxu0 0
    %382 = vmatpush1.bf16.xpose.msra.mxu0 0
    %383 = vmatprep.subr.bf16.mxu0 0
    %384 = vmatpush1.bf16.xpose.msra.mxu0 0
    %385 = vmatprep.mubr.bf16.mxu0 0
    %386 = vmatmul.mubr.bf16.gmra.mrb[0].mxu0 %v348
    %v387 = vpop.f32.mrb[0].mxu0
    %v388 = vadd.f32 0.0, %v387
    %v389 = vpop.f32.mrb[0].mxu0
    %v390 = vpop.f32.mrb[0].mxu0
    %v391 = vadd.f32 0.0, %v390
    %v392 = vpop.f32.mrb[0].mxu0
    %393 = vdwg.mxu0
    %v394 = vadd.f32 %v235, %v42
    %v395 = vadd.f32 %v238, %v43
    %v396 = vadd.f32 %v286, %v44
    %v397 = vadd.f32 %v289, %v45
    %v398 = vadd.f32 %v337, %v46
    %v399 = vadd.f32 %v340, %v47
    %v400 = vadd.f32 %v388, %v48
    %v401 = vadd.f32 %v391, %v49
    %vm402 = vcmask 130048
    %v403 = vsel %vm402, %v394, -inf
    %404 = vmax.xlane.f32.xlu0 %v403
    %v405 = vpop.xlane.xlu0 %404
    %v406 = vsel %vm402, %v395, -inf
    %407 = vmax.xlane.f32.xlu0 %v406
    %v408 = vpop.xlane.xlu0 %407
    %v409 = vsel %vm402, %v396, -inf
    %410 = vmax.xlane.f32.xlu0 %v409
    %v411 = vpop.xlane.xlu0 %410
    %v412 = vsel %vm402, %v397, -inf
    %413 = vmax.xlane.f32.xlu0 %v412
    %v414 = vpop.xlane.xlu0 %413
    %v415 = vsel %vm402, %v398, -inf
    %416 = vmax.xlane.f32.xlu0 %v415
    %v417 = vpop.xlane.xlu0 %416
    %v418 = vsel %vm402, %v399, -inf
    %419 = vmax.xlane.f32.xlu0 %v418
    %v420 = vpop.xlane.xlu0 %419
    %v421 = vsel %vm402, %v400, -inf
    %422 = vmax.xlane.f32.xlu0 %v421
    %v423 = vpop.xlane.xlu0 %422
    %v424 = vsel %vm402, %v401, -inf
    %425 = vmax.xlane.f32.xlu0 %v424
    %v426 = vpop.xlane.xlu0 %425
    %v427 = vsub.f32 %v394, %v405
    %v428 = vsub.f32 %v395, %v408
    %v429 = vsub.f32 %v396, %v411
    %v430 = vsub.f32 %v397, %v414
    %v431 = vsub.f32 %v398, %v417
    %v432 = vsub.f32 %v399, %v420
    %v433 = vsub.f32 %v400, %v423
    %v434 = vsub.f32 %v401, %v426
    %v435 = vmul.f32 %v427, 1.442695
    %v436 = vpow.pop %v435
    %v437 = vmul.f32 %v428, 1.442695
    %v438 = vpow.pop %v437
    %v439 = vmul.f32 %v429, 1.442695
    %v440 = vpow.pop %v439
    %v441 = vmul.f32 %v430, 1.442695
    %v442 = vpow.pop %v441
    %v443 = vmul.f32 %v431, 1.442695
    %v444 = vpow.pop %v443
    %v445 = vmul.f32 %v432, 1.442695
    %v446 = vpow.pop %v445
    %v447 = vmul.f32 %v433, 1.442695
    %v448 = vpow.pop %v447
    %v449 = vmul.f32 %v434, 1.442695
    %v450 = vpow.pop %v449
    %v451 = vsel %vm402, %v436, 0.0
    %452 = vadd.xlane.f32.xlu0 %v451
    %v453 = vpop.xlane.xlu0 %452
    %v454 = vsel %vm402, %v438, 0.0
    %455 = vadd.xlane.f32.xlu0 %v454
    %v456 = vpop.xlane.xlu0 %455
    %v457 = vsel %vm402, %v440, 0.0
    %458 = vadd.xlane.f32.xlu0 %v457
    %v459 = vpop.xlane.xlu0 %458
    %v460 = vsel %vm402, %v442, 0.0
    %461 = vadd.xlane.f32.xlu0 %v460
    %v462 = vpop.xlane.xlu0 %461
    %v463 = vsel %vm402, %v444, 0.0
    %464 = vadd.xlane.f32.xlu0 %v463
    %v465 = vpop.xlane.xlu0 %464
    %v466 = vsel %vm402, %v446, 0.0
    %467 = vadd.xlane.f32.xlu0 %v466
    %v468 = vpop.xlane.xlu0 %467
    %v469 = vsel %vm402, %v448, 0.0
    %470 = vadd.xlane.f32.xlu0 %v469
    %v471 = vpop.xlane.xlu0 %470
    %v472 = vsel %vm402, %v450, 0.0
    %473 = vadd.xlane.f32.xlu0 %v472
    %v474 = vpop.xlane.xlu0 %473
    %v475 = vrcp.pop %v453
    %v476 = vrcp.pop %v456
    %v477 = vrcp.pop %v459
    %v478 = vrcp.pop %v462
    %v479 = vrcp.pop %v465
    %v480 = vrcp.pop %v468
    %v481 = vrcp.pop %v471
    %v482 = vrcp.pop %v474
    %v483 = vmul.f32 %v436, %v475
    %v484 = vmul.f32 %v438, %v476
    %v485 = vmul.f32 %v440, %v477
    %v486 = vmul.f32 %v442, %v478
    %v487 = vmul.f32 %v444, %v479
    %v488 = vmul.f32 %v446, %v480
    %v489 = vmul.f32 %v448, %v481
    %v490 = vmul.f32 %v450, %v482
    %v491 = vpack.c.bf16 %v484, %v483
    %v492 = vpack.c.bf16 %v486, %v485
    %v493 = vpack.c.bf16 %v488, %v487
    %v494 = vpack.c.bf16 %v490, %v489
    %495 = vrot.lane.b32.xlu0 %v189, 64
    %v496 = vpop.permute.xlu0 %495
    %v499 = vsel %vm402, %v491, 0
    %501 = vmatprep.subr.bf16.mxu0 0
    %502 = vmatpush1.bf16.msra.mxu0 %v496
    %503 = vmatprep.subr.bf16.mxu0 0
    %504 = vmatpush1.bf16.msra.mxu0 0
    %505 = vmatprep.subr.bf16.mxu0 0
    %506 = vmatpush1.bf16.msra.mxu0 0
    %507 = vmatprep.subr.bf16.mxu0 0
    %508 = vmatpush1.bf16.msra.mxu0 0
    %509 = vmatprep.subr.bf16.mxu0 0
    %510 = vmatpush1.bf16.msra.mxu0 0
    %511 = vmatprep.subr.bf16.mxu0 0
    %512 = vmatpush1.bf16.msra.mxu0 0
    %513 = vmatprep.subr.bf16.mxu0 0
    %514 = vmatpush1.bf16.msra.mxu0 0
    %515 = vmatprep.subr.bf16.mxu0 0
    %516 = vmatpush1.bf16.msra.mxu0 0
    %517 = vmatprep.subr.bf16.mxu0 0
    %518 = vmatpush1.bf16.msra.mxu0 0
    %519 = vmatprep.subr.bf16.mxu0 0
    %520 = vmatpush1.bf16.msra.mxu0 0
    %521 = vmatprep.subr.bf16.mxu0 0
    %522 = vmatpush1.bf16.msra.mxu0 0
    %523 = vmatprep.subr.bf16.mxu0 0
    %524 = vmatpush1.bf16.msra.mxu0 0
    %525 = vmatprep.subr.bf16.mxu0 0
    %526 = vmatpush1.bf16.msra.mxu0 0
    %527 = vmatprep.subr.bf16.mxu0 0
    %528 = vmatpush1.bf16.msra.mxu0 0
    %529 = vmatprep.subr.bf16.mxu0 0
    %530 = vmatpush1.bf16.msra.mxu0 0
    %531 = vmatprep.subr.bf16.mxu0 0
    %532 = vmatpush1.bf16.msra.mxu0 0
    %533 = vmatprep.mubr.bf16.mxu0 0
    %534 = vmatmul.mubr.bf16.gmra.mrb[0].mxu0 %v499
    %v535 = vpop.f32.mrb[0].mxu0
    %v536 = vadd.f32 0.0, %v535
    %v537 = vpop.f32.mrb[0].mxu0
    %v538 = vpop.f32.mrb[0].mxu0
    %v539 = vadd.f32 0.0, %v538
    %v540 = vpop.f32.mrb[0].mxu0
    %541 = vdwg.mxu0
    %542 = vrot.lane.b32.xlu0 %v189, 56
    %v543 = vpop.permute.xlu0 %542
    %v546 = vsel %vm402, %v492, 0
    %548 = vmatprep.subr.bf16.mxu0 0
    %549 = vmatpush1.bf16.msra.mxu0 %v543
    %550 = vmatprep.subr.bf16.mxu0 0
    %551 = vmatpush1.bf16.msra.mxu0 0
    %552 = vmatprep.subr.bf16.mxu0 0
    %553 = vmatpush1.bf16.msra.mxu0 0
    %554 = vmatprep.subr.bf16.mxu0 0
    %555 = vmatpush1.bf16.msra.mxu0 0
    %556 = vmatprep.subr.bf16.mxu0 0
    %557 = vmatpush1.bf16.msra.mxu0 0
    %558 = vmatprep.subr.bf16.mxu0 0
    %559 = vmatpush1.bf16.msra.mxu0 0
    %560 = vmatprep.subr.bf16.mxu0 0
    %561 = vmatpush1.bf16.msra.mxu0 0
    %562 = vmatprep.subr.bf16.mxu0 0
    %563 = vmatpush1.bf16.msra.mxu0 0
    %564 = vmatprep.subr.bf16.mxu0 0
    %565 = vmatpush1.bf16.msra.mxu0 0
    %566 = vmatprep.subr.bf16.mxu0 0
    %567 = vmatpush1.bf16.msra.mxu0 0
    %568 = vmatprep.subr.bf16.mxu0 0
    %569 = vmatpush1.bf16.msra.mxu0 0
    %570 = vmatprep.subr.bf16.mxu0 0
    %571 = vmatpush1.bf16.msra.mxu0 0
    %572 = vmatprep.subr.bf16.mxu0 0
    %573 = vmatpush1.bf16.msra.mxu0 0
    %574 = vmatprep.subr.bf16.mxu0 0
    %575 = vmatpush1.bf16.msra.mxu0 0
    %576 = vmatprep.subr.bf16.mxu0 0
    %577 = vmatpush1.bf16.msra.mxu0 0
    %578 = vmatprep.subr.bf16.mxu0 0
    %579 = vmatpush1.bf16.msra.mxu0 0
    %580 = vmatprep.mubr.bf16.mxu0 0
    %581 = vmatmul.mubr.bf16.gmra.mrb[0].mxu0 %v546
    %v582 = vpop.f32.mrb[0].mxu0
    %v583 = vadd.f32 0.0, %v582
    %v584 = vpop.f32.mrb[0].mxu0
    %v585 = vpop.f32.mrb[0].mxu0
    %v586 = vadd.f32 0.0, %v585
    %v587 = vpop.f32.mrb[0].mxu0
    %588 = vdwg.mxu0
    %589 = vrot.lane.b32.xlu0 %v189, 48
    %v590 = vpop.permute.xlu0 %589
    %v593 = vsel %vm402, %v493, 0
    %595 = vmatprep.subr.bf16.mxu0 0
    %596 = vmatpush1.bf16.msra.mxu0 %v590
    %597 = vmatprep.subr.bf16.mxu0 0
    %598 = vmatpush1.bf16.msra.mxu0 0
    %599 = vmatprep.subr.bf16.mxu0 0
    %600 = vmatpush1.bf16.msra.mxu0 0
    %601 = vmatprep.subr.bf16.mxu0 0
    %602 = vmatpush1.bf16.msra.mxu0 0
    %603 = vmatprep.subr.bf16.mxu0 0
    %604 = vmatpush1.bf16.msra.mxu0 0
    %605 = vmatprep.subr.bf16.mxu0 0
    %606 = vmatpush1.bf16.msra.mxu0 0
    %607 = vmatprep.subr.bf16.mxu0 0
    %608 = vmatpush1.bf16.msra.mxu0 0
    %609 = vmatprep.subr.bf16.mxu0 0
    %610 = vmatpush1.bf16.msra.mxu0 0
    %611 = vmatprep.subr.bf16.mxu0 0
    %612 = vmatpush1.bf16.msra.mxu0 0
    %613 = vmatprep.subr.bf16.mxu0 0
    %614 = vmatpush1.bf16.msra.mxu0 0
    %615 = vmatprep.subr.bf16.mxu0 0
    %616 = vmatpush1.bf16.msra.mxu0 0
    %617 = vmatprep.subr.bf16.mxu0 0
    %618 = vmatpush1.bf16.msra.mxu0 0
    %619 = vmatprep.subr.bf16.mxu0 0
    %620 = vmatpush1.bf16.msra.mxu0 0
    %621 = vmatprep.subr.bf16.mxu0 0
    %622 = vmatpush1.bf16.msra.mxu0 0
    %623 = vmatprep.subr.bf16.mxu0 0
    %624 = vmatpush1.bf16.msra.mxu0 0
    %625 = vmatprep.subr.bf16.mxu0 0
    %626 = vmatpush1.bf16.msra.mxu0 0
    %627 = vmatprep.mubr.bf16.mxu0 0
    %628 = vmatmul.mubr.bf16.gmra.mrb[0].mxu0 %v593
    %v629 = vpop.f32.mrb[0].mxu0
    %v630 = vadd.f32 0.0, %v629
    %v631 = vpop.f32.mrb[0].mxu0
    %v632 = vpop.f32.mrb[0].mxu0
    %v633 = vadd.f32 0.0, %v632
    %v634 = vpop.f32.mrb[0].mxu0
    %635 = vdwg.mxu0
    %636 = vrot.lane.b32.xlu0 %v189, 40
    %v637 = vpop.permute.xlu0 %636
    %v640 = vsel %vm402, %v494, 0
    %642 = vmatprep.subr.bf16.mxu0 0
    %643 = vmatpush1.bf16.msra.mxu0 %v637
    %644 = vmatprep.subr.bf16.mxu0 0
    %645 = vmatpush1.bf16.msra.mxu0 0
    %646 = vmatprep.subr.bf16.mxu0 0
    %647 = vmatpush1.bf16.msra.mxu0 0
    %648 = vmatprep.subr.bf16.mxu0 0
    %649 = vmatpush1.bf16.msra.mxu0 0
    %650 = vmatprep.subr.bf16.mxu0 0
    %651 = vmatpush1.bf16.msra.mxu0 0
    %652 = vmatprep.subr.bf16.mxu0 0
    %653 = vmatpush1.bf16.msra.mxu0 0
    %654 = vmatprep.subr.bf16.mxu0 0
    %655 = vmatpush1.bf16.msra.mxu0 0
    %656 = vmatprep.subr.bf16.mxu0 0
    %657 = vmatpush1.bf16.msra.mxu0 0
    %658 = vmatprep.subr.bf16.mxu0 0
    %659 = vmatpush1.bf16.msra.mxu0 0
    %660 = vmatprep.subr.bf16.mxu0 0
    %661 = vmatpush1.bf16.msra.mxu0 0
    %662 = vmatprep.subr.bf16.mxu0 0
    %663 = vmatpush1.bf16.msra.mxu0 0
    %664 = vmatprep.subr.bf16.mxu0 0
    %665 = vmatpush1.bf16.msra.mxu0 0
    %666 = vmatprep.subr.bf16.mxu0 0
    %667 = vmatpush1.bf16.msra.mxu0 0
    %668 = vmatprep.subr.bf16.mxu0 0
    %669 = vmatpush1.bf16.msra.mxu0 0
    %670 = vmatprep.subr.bf16.mxu0 0
    %671 = vmatpush1.bf16.msra.mxu0 0
    %672 = vmatprep.subr.bf16.mxu0 0
    %673 = vmatpush1.bf16.msra.mxu0 0
    %674 = vmatprep.mubr.bf16.mxu0 0
    %675 = vmatmul.mubr.bf16.gmra.mrb[0].mxu0 %v640
    %v676 = vpop.f32.mrb[0].mxu0
    %v677 = vadd.f32 0.0, %v676
    %v678 = vpop.f32.mrb[0].mxu0
    %v679 = vpop.f32.mrb[0].mxu0
    %v680 = vadd.f32 0.0, %v679
    %v681 = vpop.f32.mrb[0].mxu0
    %682 = vdwg.mxu0
    %685 = vrot.lane.b32.xlu0 %v583, 8
    %v686 = vpop.permute.xlu0 %685
    %687 = vrot.lane.b32.xlu0 %v586, 8
    %v688 = vpop.permute.xlu0 %687
    %693 = vrot.lane.b32.xlu0 %v630, 16
    %v694 = vpop.permute.xlu0 %693
    %695 = vrot.lane.b32.xlu0 %v633, 16
    %v696 = vpop.permute.xlu0 %695
    %701 = vrot.lane.b32.xlu0 %v677, 24
    %v702 = vpop.permute.xlu0 %701
    %703 = vrot.lane.b32.xlu0 %v680, 24
    %v704 = vpop.permute.xlu0 %703
    %v707 = vsel %vm193, %v536, %v686
    %v708 = vsel %vm193, %v539, %v688
    %v709 = vsel %vm402, %v707, %v694
    %v710 = vsel %vm402, %v708, %v696
    %vm711 = vcmask 195584
    %v712 = vsel %vm711, %v709, %v702
    %v713 = vsel %vm711, %v710, %v704
    %v714 = vpack.c.bf16 %v713, %v712
    %v715 = vlaneseq
    %v716 = vshrl.u32 %v715, 7
    %v717 = vsub.s32 0, %v716
    %v718 = vrot.slane %v122, %v717
    %v723 = vunpack.c.l.b16 %v185
    %v724 = vunpack.c.l.b16 %v186
    %v725 = vunpack.c.l.b16 %v187
    %v726 = vunpack.c.l.b16 %v188
    %v727 = vpack.c.b16 %v724, %v723
    %v728 = vpack.c.b16 %v726, %v725
    %v732 = vsel %vm77, %v714, 0
    %734 = vmatprep.subr.bf16.mxu0 0
    %735 = vmatpush1.bf16.msra.mxu0 %v727
    %736 = vmatprep.subr.bf16.mxu0 0
    %737 = vmatpush1.bf16.msra.mxu0 %v728
    %738 = vmatprep.subr.bf16.mxu0 0
    %739 = vmatpush1.bf16.msra.mxu0 0
    %740 = vmatprep.subr.bf16.mxu0 0
    %741 = vmatpush1.bf16.msra.mxu0 0
    %742 = vmatprep.subr.bf16.mxu0 0
    %743 = vmatpush1.bf16.msra.mxu0 0
    %744 = vmatprep.subr.bf16.mxu0 0
    %745 = vmatpush1.bf16.msra.mxu0 0
    %746 = vmatprep.subr.bf16.mxu0 0
    %747 = vmatpush1.bf16.msra.mxu0 0
    %748 = vmatprep.subr.bf16.mxu0 0
    %749 = vmatpush1.bf16.msra.mxu0 0
    %750 = vmatprep.subr.bf16.mxu0 0
    %751 = vmatpush1.bf16.msra.mxu0 0
    %752 = vmatprep.subr.bf16.mxu0 0
    %753 = vmatpush1.bf16.msra.mxu0 0
    %754 = vmatprep.subr.bf16.mxu0 0
    %755 = vmatpush1.bf16.msra.mxu0 0
    %756 = vmatprep.subr.bf16.mxu0 0
    %757 = vmatpush1.bf16.msra.mxu0 0
    %758 = vmatprep.subr.bf16.mxu0 0
    %759 = vmatpush1.bf16.msra.mxu0 0
    %760 = vmatprep.subr.bf16.mxu0 0
    %761 = vmatpush1.bf16.msra.mxu0 0
    %762 = vmatprep.subr.bf16.mxu0 0
    %763 = vmatpush1.bf16.msra.mxu0 0
    %764 = vmatprep.subr.bf16.mxu0 0
    %765 = vmatpush1.bf16.msra.mxu0 0
    %766 = vmatprep.mubr.bf16.mxu0 0
    %767 = vmatmul.mubr.bf16.gmra.mrb[0].mxu0 %v732
    %v768 = vpop.f32.mrb[0].mxu0
    %v769 = vadd.f32 %v718, %v768
    %v770 = vpop.f32.mrb[0].mxu0
    %v771 = vpop.f32.mrb[0].mxu0
    %v772 = vadd.f32 %v718, %v771
    %v773 = vpop.f32.mrb[0].mxu0
    %774 = vdwg.mxu0
    %v775 = vadd.f32 %v40, %v769
    %v776 = vadd.f32 %v41, %v772
    %v777 = vsel %vm77, %v775, 0.0
    %778 = vadd.xlane.f32.xlu0 %v777
    %v779 = vpop.xlane.xlu0 %778
    %v780 = vsel %vm77, %v776, 0.0
    %781 = vadd.xlane.f32.xlu0 %v780
    %v782 = vpop.xlane.xlu0 %781
    %v783 = vrcp.pop 32.0
    %v784 = vmul.f32 %v779, %v783
    %v785 = vmul.f32 %v782, %v783
    %v786 = vmul.f32 %v775, %v775
    %v787 = vmul.f32 %v776, %v776
    %v788 = vsel %vm77, %v786, 0.0
    %789 = vadd.xlane.f32.xlu0 %v788
    %v790 = vpop.xlane.xlu0 %789
    %v791 = vsel %vm77, %v787, 0.0
    %792 = vadd.xlane.f32.xlu0 %v791
    %v793 = vpop.xlane.xlu0 %792
    %v794 = vmul.f32 %v790, %v783
    %v795 = vmul.f32 %v793, %v783
    %v796 = vsub.f32 %v775, %v784
    %v797 = vsub.f32 %v776, %v785
    %v798 = vmul.f32 %v784, %v784
    %v799 = vmul.f32 %v785, %v785
    %v800 = vsub.f32 %v794, %v798
    %v801 = vsub.f32 %v795, %v799
    %v802 = vadd.f32 %v800, 1e-05
    %v803 = vadd.f32 %v801, 1e-05
    %v804 = vrsqrt.pop %v802
    %v805 = vrsqrt.pop %v803
    %v806 = vmul.f32 %v796, %v804
    %v807 = vmul.f32 %v797, %v805
    %v808 = vlaneseq
    %v809 = vshrl.u32 %v808, 7
    %v810 = vsub.s32 3, %v809
    %v811 = vrot.slane %v122, %v810
    %v812 = vmul.f32 %v806, %v811
    %v813 = vmul.f32 %v807, %v811
    %v814 = vlaneseq
    %v815 = vshrl.u32 %v814, 7
    %v816 = vsub.s32 4, %v815
    %v817 = vrot.slane %v122, %v816
    %v818 = vadd.f32 %v812, %v817
    %v819 = vadd.f32 %v813, %v817
    %v820 = vpack.c.bf16 %v819, %v818
    %v821 = vld [vmem:[%s5] sm:$0xf]
    %v822 = vld [vmem:[%s5 + $0x4] sm:$0xf]
    %v823 = vld [vmem:[%s5 + $0x8] sm:$0xf]
    %v824 = vld [vmem:[%s5 + $0xc] sm:$0xf]
    %v829 = vunpack.c.l.b16 %v821
    %v830 = vunpack.c.l.b16 %v822
    %v831 = vunpack.c.l.b16 %v823
    %v832 = vunpack.c.l.b16 %v824
    %v833 = vpack.c.b16 %v830, %v829
    %v834 = vpack.c.b16 %v832, %v831
    %v838 = vsel %vm77, %v820, 0
    %840 = vmatprep.subr.bf16.mxu0 0
    %841 = vmatpush1.bf16.msra.mxu0 %v833
    %842 = vmatprep.subr.bf16.mxu0 0
    %843 = vmatpush1.bf16.msra.mxu0 %v834
    %844 = vmatprep.subr.bf16.mxu0 0
    %845 = vmatpush1.bf16.msra.mxu0 0
    %846 = vmatprep.subr.bf16.mxu0 0
    %847 = vmatpush1.bf16.msra.mxu0 0
    %848 = vmatprep.subr.bf16.mxu0 0
    %849 = vmatpush1.bf16.msra.mxu0 0
    %850 = vmatprep.subr.bf16.mxu0 0
    %851 = vmatpush1.bf16.msra.mxu0 0
    %852 = vmatprep.subr.bf16.mxu0 0
    %853 = vmatpush1.bf16.msra.mxu0 0
    %854 = vmatprep.subr.bf16.mxu0 0
    %855 = vmatpush1.bf16.msra.mxu0 0
    %856 = vmatprep.subr.bf16.mxu0 0
    %857 = vmatpush1.bf16.msra.mxu0 0
    %858 = vmatprep.subr.bf16.mxu0 0
    %859 = vmatpush1.bf16.msra.mxu0 0
    %860 = vmatprep.subr.bf16.mxu0 0
    %861 = vmatpush1.bf16.msra.mxu0 0
    %862 = vmatprep.subr.bf16.mxu0 0
    %863 = vmatpush1.bf16.msra.mxu0 0
    %864 = vmatprep.subr.bf16.mxu0 0
    %865 = vmatpush1.bf16.msra.mxu0 0
    %866 = vmatprep.subr.bf16.mxu0 0
    %867 = vmatpush1.bf16.msra.mxu0 0
    %868 = vmatprep.subr.bf16.mxu0 0
    %869 = vmatpush1.bf16.msra.mxu0 0
    %870 = vmatprep.subr.bf16.mxu0 0
    %871 = vmatpush1.bf16.msra.mxu0 0
    %872 = vmatprep.mubr.bf16.mxu0 0
    %873 = vmatmul.mubr.bf16.gmra.mrb[0].mxu0 %v838
    %v874 = vpop.f32.mrb[0].mxu0
    %v875 = vadd.f32 0.0, %v874
    %v876 = vpop.f32.mrb[0].mxu0
    %v877 = vpop.f32.mrb[0].mxu0
    %v878 = vadd.f32 0.0, %v877
    %v879 = vpop.f32.mrb[0].mxu0
    %880 = vdwg.mxu0
    %s881 = scalar_lea.vmem %s7, 16
    %v882 = vld [vmem:[%s881] sm:$0xf]
    %v883 = vld [vmem:[%s881 + $0x4] sm:$0xf]
    %v884 = vld [vmem:[%s881 + $0x8] sm:$0xf]
    %v885 = vld [vmem:[%s881 + $0xc] sm:$0xf]
    %v886 = vpack.c.bf16 %v878, %v875
    %v887 = vpack.c.bf16 %v119, %v116
    %v889 = vsel %vm193, %v886, 0
    %v892 = vsel %vm193, %v887, 0
    %894 = vmatprep.subr.bf16.mxu0 0
    %895 = vmatpush1.bf16.xpose.msra.mxu0 %v892
    %896 = vmatprep.subr.bf16.mxu0 0
    %897 = vmatpush1.bf16.xpose.msra.mxu0 0
    %898 = vmatprep.subr.bf16.mxu0 0
    %899 = vmatpush1.bf16.xpose.msra.mxu0 0
    %900 = vmatprep.subr.bf16.mxu0 0
    %901 = vmatpush1.bf16.xpose.msra.mxu0 0
    %902 = vmatprep.subr.bf16.mxu0 0
    %903 = vmatpush1.bf16.xpose.msra.mxu0 0
    %904 = vmatprep.subr.bf16.mxu0 0
    %905 = vmatpush1.bf16.xpose.msra.mxu0 0
    %906 = vmatprep.subr.bf16.mxu0 0
    %907 = vmatpush1.bf16.xpose.msra.mxu0 0
    %908 = vmatprep.subr.bf16.mxu0 0
    %909 = vmatpush1.bf16.xpose.msra.mxu0 0
    %910 = vmatprep.subr.bf16.mxu0 0
    %911 = vmatpush1.bf16.xpose.msra.mxu0 0
    %912 = vmatprep.subr.bf16.mxu0 0
    %913 = vmatpush1.bf16.xpose.msra.mxu0 0
    %914 = vmatprep.subr.bf16.mxu0 0
    %915 = vmatpush1.bf16.xpose.msra.mxu0 0
    %916 = vmatprep.subr.bf16.mxu0 0
    %917 = vmatpush1.bf16.xpose.msra.mxu0 0
    %918 = vmatprep.subr.bf16.mxu0 0
    %919 = vmatpush1.bf16.xpose.msra.mxu0 0
    %920 = vmatprep.subr.bf16.mxu0 0
    %921 = vmatpush1.bf16.xpose.msra.mxu0 0
    %922 = vmatprep.subr.bf16.mxu0 0
    %923 = vmatpush1.bf16.xpose.msra.mxu0 0
    %924 = vmatprep.subr.bf16.mxu0 0
    %925 = vmatpush1.bf16.xpose.msra.mxu0 0
    %926 = vmatprep.mubr.bf16.mxu0 0
    %927 = vmatmul.mubr.bf16.gmra.mrb[0].mxu0 %v889
    %v928 = vpop.f32.mrb[0].mxu0
    %v929 = vadd.f32 0.0, %v928
    %v930 = vpop.f32.mrb[0].mxu0
    %v931 = vpop.f32.mrb[0].mxu0
    %v932 = vadd.f32 0.0, %v931
    %v933 = vpop.f32.mrb[0].mxu0
    %934 = vdwg.mxu0
    %936 = vrot.lane.b32.xlu0 %v886, 120
    %v937 = vpop.permute.xlu0 %936
    %939 = vrot.lane.b32.xlu0 %v887, 120
    %v940 = vpop.permute.xlu0 %939
    %v942 = vsel %vm193, %v937, 0
    %v945 = vsel %vm193, %v940, 0
    %947 = vmatprep.subr.bf16.mxu0 0
    %948 = vmatpush1.bf16.xpose.msra.mxu0 %v945
    %949 = vmatprep.subr.bf16.mxu0 0
    %950 = vmatpush1.bf16.xpose.msra.mxu0 0
    %951 = vmatprep.subr.bf16.mxu0 0
    %952 = vmatpush1.bf16.xpose.msra.mxu0 0
    %953 = vmatprep.subr.bf16.mxu0 0
    %954 = vmatpush1.bf16.xpose.msra.mxu0 0
    %955 = vmatprep.subr.bf16.mxu0 0
    %956 = vmatpush1.bf16.xpose.msra.mxu0 0
    %957 = vmatprep.subr.bf16.mxu0 0
    %958 = vmatpush1.bf16.xpose.msra.mxu0 0
    %959 = vmatprep.subr.bf16.mxu0 0
    %960 = vmatpush1.bf16.xpose.msra.mxu0 0
    %961 = vmatprep.subr.bf16.mxu0 0
    %962 = vmatpush1.bf16.xpose.msra.mxu0 0
    %963 = vmatprep.subr.bf16.mxu0 0
    %964 = vmatpush1.bf16.xpose.msra.mxu0 0
    %965 = vmatprep.subr.bf16.mxu0 0
    %966 = vmatpush1.bf16.xpose.msra.mxu0 0
    %967 = vmatprep.subr.bf16.mxu0 0
    %968 = vmatpush1.bf16.xpose.msra.mxu0 0
    %969 = vmatprep.subr.bf16.mxu0 0
    %970 = vmatpush1.bf16.xpose.msra.mxu0 0
    %971 = vmatprep.subr.bf16.mxu0 0
    %972 = vmatpush1.bf16.xpose.msra.mxu0 0
    %973 = vmatprep.subr.bf16.mxu0 0
    %974 = vmatpush1.bf16.xpose.msra.mxu0 0
    %975 = vmatprep.subr.bf16.mxu0 0
    %976 = vmatpush1.bf16.xpose.msra.mxu0 0
    %977 = vmatprep.subr.bf16.mxu0 0
    %978 = vmatpush1.bf16.xpose.msra.mxu0 0
    %979 = vmatprep.mubr.bf16.mxu0 0
    %980 = vmatmul.mubr.bf16.gmra.mrb[0].mxu0 %v942
    %v981 = vpop.f32.mrb[0].mxu0
    %v982 = vadd.f32 0.0, %v981
    %v983 = vpop.f32.mrb[0].mxu0
    %v984 = vpop.f32.mrb[0].mxu0
    %v985 = vadd.f32 0.0, %v984
    %v986 = vpop.f32.mrb[0].mxu0
    %987 = vdwg.mxu0
    %988 = vrot.lane.b32.xlu0 %v886, 112
    %v989 = vpop.permute.xlu0 %988
    %990 = vrot.lane.b32.xlu0 %v887, 112
    %v991 = vpop.permute.xlu0 %990
    %v993 = vsel %vm193, %v989, 0
    %v996 = vsel %vm193, %v991, 0
    %998 = vmatprep.subr.bf16.mxu0 0
    %999 = vmatpush1.bf16.xpose.msra.mxu0 %v996
    %1000 = vmatprep.subr.bf16.mxu0 0
    %1001 = vmatpush1.bf16.xpose.msra.mxu0 0
    %1002 = vmatprep.subr.bf16.mxu0 0
    %1003 = vmatpush1.bf16.xpose.msra.mxu0 0
    %1004 = vmatprep.subr.bf16.mxu0 0
    %1005 = vmatpush1.bf16.xpose.msra.mxu0 0
    %1006 = vmatprep.subr.bf16.mxu0 0
    %1007 = vmatpush1.bf16.xpose.msra.mxu0 0
    %1008 = vmatprep.subr.bf16.mxu0 0
    %1009 = vmatpush1.bf16.xpose.msra.mxu0 0
    %1010 = vmatprep.subr.bf16.mxu0 0
    %1011 = vmatpush1.bf16.xpose.msra.mxu0 0
    %1012 = vmatprep.subr.bf16.mxu0 0
    %1013 = vmatpush1.bf16.xpose.msra.mxu0 0
    %1014 = vmatprep.subr.bf16.mxu0 0
    %1015 = vmatpush1.bf16.xpose.msra.mxu0 0
    %1016 = vmatprep.subr.bf16.mxu0 0
    %1017 = vmatpush1.bf16.xpose.msra.mxu0 0
    %1018 = vmatprep.subr.bf16.mxu0 0
    %1019 = vmatpush1.bf16.xpose.msra.mxu0 0
    %1020 = vmatprep.subr.bf16.mxu0 0
    %1021 = vmatpush1.bf16.xpose.msra.mxu0 0
    %1022 = vmatprep.subr.bf16.mxu0 0
    %1023 = vmatpush1.bf16.xpose.msra.mxu0 0
    %1024 = vmatprep.subr.bf16.mxu0 0
    %1025 = vmatpush1.bf16.xpose.msra.mxu0 0
    %1026 = vmatprep.subr.bf16.mxu0 0
    %1027 = vmatpush1.bf16.xpose.msra.mxu0 0
    %1028 = vmatprep.subr.bf16.mxu0 0
    %1029 = vmatpush1.bf16.xpose.msra.mxu0 0
    %1030 = vmatprep.mubr.bf16.mxu0 0
    %1031 = vmatmul.mubr.bf16.gmra.mrb[0].mxu0 %v993
    %v1032 = vpop.f32.mrb[0].mxu0
    %v1033 = vadd.f32 0.0, %v1032
    %v1034 = vpop.f32.mrb[0].mxu0
    %v1035 = vpop.f32.mrb[0].mxu0
    %v1036 = vadd.f32 0.0, %v1035
    %v1037 = vpop.f32.mrb[0].mxu0
    %1038 = vdwg.mxu0
    %1039 = vrot.lane.b32.xlu0 %v886, 104
    %v1040 = vpop.permute.xlu0 %1039
    %1041 = vrot.lane.b32.xlu0 %v887, 104
    %v1042 = vpop.permute.xlu0 %1041
    %v1044 = vsel %vm193, %v1040, 0
    %v1047 = vsel %vm193, %v1042, 0
    %1049 = vmatprep.subr.bf16.mxu0 0
    %1050 = vmatpush1.bf16.xpose.msra.mxu0 %v1047
    %1051 = vmatprep.subr.bf16.mxu0 0
    %1052 = vmatpush1.bf16.xpose.msra.mxu0 0
    %1053 = vmatprep.subr.bf16.mxu0 0
    %1054 = vmatpush1.bf16.xpose.msra.mxu0 0
    %1055 = vmatprep.subr.bf16.mxu0 0
    %1056 = vmatpush1.bf16.xpose.msra.mxu0 0
    %1057 = vmatprep.subr.bf16.mxu0 0
    %1058 = vmatpush1.bf16.xpose.msra.mxu0 0
    %1059 = vmatprep.subr.bf16.mxu0 0
    %1060 = vmatpush1.bf16.xpose.msra.mxu0 0
    %1061 = vmatprep.subr.bf16.mxu0 0
    %1062 = vmatpush1.bf16.xpose.msra.mxu0 0
    %1063 = vmatprep.subr.bf16.mxu0 0
    %1064 = vmatpush1.bf16.xpose.msra.mxu0 0
    %1065 = vmatprep.subr.bf16.mxu0 0
    %1066 = vmatpush1.bf16.xpose.msra.mxu0 0
    %1067 = vmatprep.subr.bf16.mxu0 0
    %1068 = vmatpush1.bf16.xpose.msra.mxu0 0
    %1069 = vmatprep.subr.bf16.mxu0 0
    %1070 = vmatpush1.bf16.xpose.msra.mxu0 0
    %1071 = vmatprep.subr.bf16.mxu0 0
    %1072 = vmatpush1.bf16.xpose.msra.mxu0 0
    %1073 = vmatprep.subr.bf16.mxu0 0
    %1074 = vmatpush1.bf16.xpose.msra.mxu0 0
    %1075 = vmatprep.subr.bf16.mxu0 0
    %1076 = vmatpush1.bf16.xpose.msra.mxu0 0
    %1077 = vmatprep.subr.bf16.mxu0 0
    %1078 = vmatpush1.bf16.xpose.msra.mxu0 0
    %1079 = vmatprep.subr.bf16.mxu0 0
    %1080 = vmatpush1.bf16.xpose.msra.mxu0 0
    %1081 = vmatprep.mubr.bf16.mxu0 0
    %1082 = vmatmul.mubr.bf16.gmra.mrb[0].mxu0 %v1044
    %v1083 = vpop.f32.mrb[0].mxu0
    %v1084 = vadd.f32 0.0, %v1083
    %v1085 = vpop.f32.mrb[0].mxu0
    %v1086 = vpop.f32.mrb[0].mxu0
    %v1087 = vadd.f32 0.0, %v1086
    %v1088 = vpop.f32.mrb[0].mxu0
    %1089 = vdwg.mxu0
    %v1090 = vadd.f32 %v929, %v50
    %v1091 = vadd.f32 %v932, %v51
    %v1092 = vadd.f32 %v982, %v52
    %v1093 = vadd.f32 %v985, %v53
    %v1094 = vadd.f32 %v1033, %v54
    %v1095 = vadd.f32 %v1036, %v55
    %v1096 = vadd.f32 %v1084, %v56
    %v1097 = vadd.f32 %v1087, %v57
    %v1098 = vsel %vm402, %v1090, -inf
    %1099 = vmax.xlane.f32.xlu0 %v1098
    %v1100 = vpop.xlane.xlu0 %1099
    %v1101 = vsel %vm402, %v1091, -inf
    %1102 = vmax.xlane.f32.xlu0 %v1101
    %v1103 = vpop.xlane.xlu0 %1102
    %v1104 = vsel %vm402, %v1092, -inf
    %1105 = vmax.xlane.f32.xlu0 %v1104
    %v1106 = vpop.xlane.xlu0 %1105
    %v1107 = vsel %vm402, %v1093, -inf
    %1108 = vmax.xlane.f32.xlu0 %v1107
    %v1109 = vpop.xlane.xlu0 %1108
    %v1110 = vsel %vm402, %v1094, -inf
    %1111 = vmax.xlane.f32.xlu0 %v1110
    %v1112 = vpop.xlane.xlu0 %1111
    %v1113 = vsel %vm402, %v1095, -inf
    %1114 = vmax.xlane.f32.xlu0 %v1113
    %v1115 = vpop.xlane.xlu0 %1114
    %v1116 = vsel %vm402, %v1096, -inf
    %1117 = vmax.xlane.f32.xlu0 %v1116
    %v1118 = vpop.xlane.xlu0 %1117
    %v1119 = vsel %vm402, %v1097, -inf
    %1120 = vmax.xlane.f32.xlu0 %v1119
    %v1121 = vpop.xlane.xlu0 %1120
    %v1122 = vsub.f32 %v1090, %v1100
    %v1123 = vsub.f32 %v1091, %v1103
    %v1124 = vsub.f32 %v1092, %v1106
    %v1125 = vsub.f32 %v1093, %v1109
    %v1126 = vsub.f32 %v1094, %v1112
    %v1127 = vsub.f32 %v1095, %v1115
    %v1128 = vsub.f32 %v1096, %v1118
    %v1129 = vsub.f32 %v1097, %v1121
    %v1130 = vmul.f32 %v1122, 1.442695
    %v1131 = vpow.pop %v1130
    %v1132 = vmul.f32 %v1123, 1.442695
    %v1133 = vpow.pop %v1132
    %v1134 = vmul.f32 %v1124, 1.442695
    %v1135 = vpow.pop %v1134
    %v1136 = vmul.f32 %v1125, 1.442695
    %v1137 = vpow.pop %v1136
    %v1138 = vmul.f32 %v1126, 1.442695
    %v1139 = vpow.pop %v1138
    %v1140 = vmul.f32 %v1127, 1.442695
    %v1141 = vpow.pop %v1140
    %v1142 = vmul.f32 %v1128, 1.442695
    %v1143 = vpow.pop %v1142
    %v1144 = vmul.f32 %v1129, 1.442695
    %v1145 = vpow.pop %v1144
    %v1146 = vsel %vm402, %v1131, 0.0
    %1147 = vadd.xlane.f32.xlu0 %v1146
    %v1148 = vpop.xlane.xlu0 %1147
    %v1149 = vsel %vm402, %v1133, 0.0
    %1150 = vadd.xlane.f32.xlu0 %v1149
    %v1151 = vpop.xlane.xlu0 %1150
    %v1152 = vsel %vm402, %v1135, 0.0
    %1153 = vadd.xlane.f32.xlu0 %v1152
    %v1154 = vpop.xlane.xlu0 %1153
    %v1155 = vsel %vm402, %v1137, 0.0
    %1156 = vadd.xlane.f32.xlu0 %v1155
    %v1157 = vpop.xlane.xlu0 %1156
    %v1158 = vsel %vm402, %v1139, 0.0
    %1159 = vadd.xlane.f32.xlu0 %v1158
    %v1160 = vpop.xlane.xlu0 %1159
    %v1161 = vsel %vm402, %v1141, 0.0
    %1162 = vadd.xlane.f32.xlu0 %v1161
    %v1163 = vpop.xlane.xlu0 %1162
    %v1164 = vsel %vm402, %v1143, 0.0
    %1165 = vadd.xlane.f32.xlu0 %v1164
    %v1166 = vpop.xlane.xlu0 %1165
    %v1167 = vsel %vm402, %v1145, 0.0
    %1168 = vadd.xlane.f32.xlu0 %v1167
    %v1169 = vpop.xlane.xlu0 %1168
    %v1170 = vrcp.pop %v1148
    %v1171 = vrcp.pop %v1151
    %v1172 = vrcp.pop %v1154
    %v1173 = vrcp.pop %v1157
    %v1174 = vrcp.pop %v1160
    %v1175 = vrcp.pop %v1163
    %v1176 = vrcp.pop %v1166
    %v1177 = vrcp.pop %v1169
    %v1178 = vmul.f32 %v1131, %v1170
    %v1179 = vmul.f32 %v1133, %v1171
    %v1180 = vmul.f32 %v1135, %v1172
    %v1181 = vmul.f32 %v1137, %v1173
    %v1182 = vmul.f32 %v1139, %v1174
    %v1183 = vmul.f32 %v1141, %v1175
    %v1184 = vmul.f32 %v1143, %v1176
    %v1185 = vmul.f32 %v1145, %v1177
    %v1186 = vpack.c.bf16 %v1179, %v1178
    %v1187 = vpack.c.bf16 %v1181, %v1180
    %v1188 = vpack.c.bf16 %v1183, %v1182
    %v1189 = vpack.c.bf16 %v1185, %v1184
    %1190 = vrot.lane.b32.xlu0 %v887, 96
    %v1191 = vpop.permute.xlu0 %1190
    %v1194 = vsel %vm402, %v1186, 0
    %1196 = vmatprep.subr.bf16.mxu0 0
    %1197 = vmatpush1.bf16.msra.mxu0 %v1191
    %1198 = vmatprep.subr.bf16.mxu0 0
    %1199 = vmatpush1.bf16.msra.mxu0 0
    %1200 = vmatprep.subr.bf16.mxu0 0
    %1201 = vmatpush1.bf16.msra.mxu0 0
    %1202 = vmatprep.subr.bf16.mxu0 0
    %1203 = vmatpush1.bf16.msra.mxu0 0
    %1204 = vmatprep.subr.bf16.mxu0 0
    %1205 = vmatpush1.bf16.msra.mxu0 0
    %1206 = vmatprep.subr.bf16.mxu0 0
    %1207 = vmatpush1.bf16.msra.mxu0 0
    %1208 = vmatprep.subr.bf16.mxu0 0
    %1209 = vmatpush1.bf16.msra.mxu0 0
    %1210 = vmatprep.subr.bf16.mxu0 0
    %1211 = vmatpush1.bf16.msra.mxu0 0
    %1212 = vmatprep.subr.bf16.mxu0 0
    %1213 = vmatpush1.bf16.msra.mxu0 0
    %1214 = vmatprep.subr.bf16.mxu0 0
    %1215 = vmatpush1.bf16.msra.mxu0 0
    %1216 = vmatprep.subr.bf16.mxu0 0
    %1217 = vmatpush1.bf16.msra.mxu0 0
    %1218 = vmatprep.subr.bf16.mxu0 0
    %1219 = vmatpush1.bf16.msra.mxu0 0
    %1220 = vmatprep.subr.bf16.mxu0 0
    %1221 = vmatpush1.bf16.msra.mxu0 0
    %1222 = vmatprep.subr.bf16.mxu0 0
    %1223 = vmatpush1.bf16.msra.mxu0 0
    %1224 = vmatprep.subr.bf16.mxu0 0
    %1225 = vmatpush1.bf16.msra.mxu0 0
    %1226 = vmatprep.subr.bf16.mxu0 0
    %1227 = vmatpush1.bf16.msra.mxu0 0
    %1228 = vmatprep.mubr.bf16.mxu0 0
    %1229 = vmatmul.mubr.bf16.gmra.mrb[0].mxu0 %v1194
    %v1230 = vpop.f32.mrb[0].mxu0
    %v1231 = vadd.f32 0.0, %v1230
    %v1232 = vpop.f32.mrb[0].mxu0
    %v1233 = vpop.f32.mrb[0].mxu0
    %v1234 = vadd.f32 0.0, %v1233
    %v1235 = vpop.f32.mrb[0].mxu0
    %1236 = vdwg.mxu0
    %1237 = vrot.lane.b32.xlu0 %v887, 88
    %v1238 = vpop.permute.xlu0 %1237
    %v1241 = vsel %vm402, %v1187, 0
    %1243 = vmatprep.subr.bf16.mxu0 0
    %1244 = vmatpush1.bf16.msra.mxu0 %v1238
    %1245 = vmatprep.subr.bf16.mxu0 0
    %1246 = vmatpush1.bf16.msra.mxu0 0
    %1247 = vmatprep.subr.bf16.mxu0 0
    %1248 = vmatpush1.bf16.msra.mxu0 0
    %1249 = vmatprep.subr.bf16.mxu0 0
    %1250 = vmatpush1.bf16.msra.mxu0 0
    %1251 = vmatprep.subr.bf16.mxu0 0
    %1252 = vmatpush1.bf16.msra.mxu0 0
    %1253 = vmatprep.subr.bf16.mxu0 0
    %1254 = vmatpush1.bf16.msra.mxu0 0
    %1255 = vmatprep.subr.bf16.mxu0 0
    %1256 = vmatpush1.bf16.msra.mxu0 0
    %1257 = vmatprep.subr.bf16.mxu0 0
    %1258 = vmatpush1.bf16.msra.mxu0 0
    %1259 = vmatprep.subr.bf16.mxu0 0
    %1260 = vmatpush1.bf16.msra.mxu0 0
    %1261 = vmatprep.subr.bf16.mxu0 0
    %1262 = vmatpush1.bf16.msra.mxu0 0
    %1263 = vmatprep.subr.bf16.mxu0 0
    %1264 = vmatpush1.bf16.msra.mxu0 0
    %1265 = vmatprep.subr.bf16.mxu0 0
    %1266 = vmatpush1.bf16.msra.mxu0 0
    %1267 = vmatprep.subr.bf16.mxu0 0
    %1268 = vmatpush1.bf16.msra.mxu0 0
    %1269 = vmatprep.subr.bf16.mxu0 0
    %1270 = vmatpush1.bf16.msra.mxu0 0
    %1271 = vmatprep.subr.bf16.mxu0 0
    %1272 = vmatpush1.bf16.msra.mxu0 0
    %1273 = vmatprep.subr.bf16.mxu0 0
    %1274 = vmatpush1.bf16.msra.mxu0 0
    %1275 = vmatprep.mubr.bf16.mxu0 0
    %1276 = vmatmul.mubr.bf16.gmra.mrb[0].mxu0 %v1241
    %v1277 = vpop.f32.mrb[0].mxu0
    %v1278 = vadd.f32 0.0, %v1277
    %v1279 = vpop.f32.mrb[0].mxu0
    %v1280 = vpop.f32.mrb[0].mxu0
    %v1281 = vadd.f32 0.0, %v1280
    %v1282 = vpop.f32.mrb[0].mxu0
    %1283 = vdwg.mxu0
    %1284 = vrot.lane.b32.xlu0 %v887, 80
    %v1285 = vpop.permute.xlu0 %1284
    %v1288 = vsel %vm402, %v1188, 0
    %1290 = vmatprep.subr.bf16.mxu0 0
    %1291 = vmatpush1.bf16.msra.mxu0 %v1285
    %1292 = vmatprep.subr.bf16.mxu0 0
    %1293 = vmatpush1.bf16.msra.mxu0 0
    %1294 = vmatprep.subr.bf16.mxu0 0
    %1295 = vmatpush1.bf16.msra.mxu0 0
    %1296 = vmatprep.subr.bf16.mxu0 0
    %1297 = vmatpush1.bf16.msra.mxu0 0
    %1298 = vmatprep.subr.bf16.mxu0 0
    %1299 = vmatpush1.bf16.msra.mxu0 0
    %1300 = vmatprep.subr.bf16.mxu0 0
    %1301 = vmatpush1.bf16.msra.mxu0 0
    %1302 = vmatprep.subr.bf16.mxu0 0
    %1303 = vmatpush1.bf16.msra.mxu0 0
    %1304 = vmatprep.subr.bf16.mxu0 0
    %1305 = vmatpush1.bf16.msra.mxu0 0
    %1306 = vmatprep.subr.bf16.mxu0 0
    %1307 = vmatpush1.bf16.msra.mxu0 0
    %1308 = vmatprep.subr.bf16.mxu0 0
    %1309 = vmatpush1.bf16.msra.mxu0 0
    %1310 = vmatprep.subr.bf16.mxu0 0
    %1311 = vmatpush1.bf16.msra.mxu0 0
    %1312 = vmatprep.subr.bf16.mxu0 0
    %1313 = vmatpush1.bf16.msra.mxu0 0
    %1314 = vmatprep.subr.bf16.mxu0 0
    %1315 = vmatpush1.bf16.msra.mxu0 0
    %1316 = vmatprep.subr.bf16.mxu0 0
    %1317 = vmatpush1.bf16.msra.mxu0 0
    %1318 = vmatprep.subr.bf16.mxu0 0
    %1319 = vmatpush1.bf16.msra.mxu0 0
    %1320 = vmatprep.subr.bf16.mxu0 0
    %1321 = vmatpush1.bf16.msra.mxu0 0
    %1322 = vmatprep.mubr.bf16.mxu0 0
    %1323 = vmatmul.mubr.bf16.gmra.mrb[0].mxu0 %v1288
    %v1324 = vpop.f32.mrb[0].mxu0
    %v1325 = vadd.f32 0.0, %v1324
    %v1326 = vpop.f32.mrb[0].mxu0
    %v1327 = vpop.f32.mrb[0].mxu0
    %v1328 = vadd.f32 0.0, %v1327
    %v1329 = vpop.f32.mrb[0].mxu0
    %1330 = vdwg.mxu0
    %1331 = vrot.lane.b32.xlu0 %v887, 72
    %v1332 = vpop.permute.xlu0 %1331
    %v1335 = vsel %vm402, %v1189, 0
    %1337 = vmatprep.subr.bf16.mxu0 0
    %1338 = vmatpush1.bf16.msra.mxu0 %v1332
    %1339 = vmatprep.subr.bf16.mxu0 0
    %1340 = vmatpush1.bf16.msra.mxu0 0
    %1341 = vmatprep.subr.bf16.mxu0 0
    %1342 = vmatpush1.bf16.msra.mxu0 0
    %1343 = vmatprep.subr.bf16.mxu0 0
    %1344 = vmatpush1.bf16.msra.mxu0 0
    %1345 = vmatprep.subr.bf16.mxu0 0
    %1346 = vmatpush1.bf16.msra.mxu0 0
    %1347 = vmatprep.subr.bf16.mxu0 0
    %1348 = vmatpush1.bf16.msra.mxu0 0
    %1349 = vmatprep.subr.bf16.mxu0 0
    %1350 = vmatpush1.bf16.msra.mxu0 0
    %1351 = vmatprep.subr.bf16.mxu0 0
    %1352 = vmatpush1.bf16.msra.mxu0 0
    %1353 = vmatprep.subr.bf16.mxu0 0
    %1354 = vmatpush1.bf16.msra.mxu0 0
    %1355 = vmatprep.subr.bf16.mxu0 0
    %1356 = vmatpush1.bf16.msra.mxu0 0
    %1357 = vmatprep.subr.bf16.mxu0 0
    %1358 = vmatpush1.bf16.msra.mxu0 0
    %1359 = vmatprep.subr.bf16.mxu0 0
    %1360 = vmatpush1.bf16.msra.mxu0 0
    %1361 = vmatprep.subr.bf16.mxu0 0
    %1362 = vmatpush1.bf16.msra.mxu0 0
    %1363 = vmatprep.subr.bf16.mxu0 0
    %1364 = vmatpush1.bf16.msra.mxu0 0
    %1365 = vmatprep.subr.bf16.mxu0 0
    %1366 = vmatpush1.bf16.msra.mxu0 0
    %1367 = vmatprep.subr.bf16.mxu0 0
    %1368 = vmatpush1.bf16.msra.mxu0 0
    %1369 = vmatprep.mubr.bf16.mxu0 0
    %1370 = vmatmul.mubr.bf16.gmra.mrb[0].mxu0 %v1335
    %v1371 = vpop.f32.mrb[0].mxu0
    %v1372 = vadd.f32 0.0, %v1371
    %v1373 = vpop.f32.mrb[0].mxu0
    %v1374 = vpop.f32.mrb[0].mxu0
    %v1375 = vadd.f32 0.0, %v1374
    %v1376 = vpop.f32.mrb[0].mxu0
    %1377 = vdwg.mxu0
    %1380 = vrot.lane.b32.xlu0 %v1278, 8
    %v1381 = vpop.permute.xlu0 %1380
    %1382 = vrot.lane.b32.xlu0 %v1281, 8
    %v1383 = vpop.permute.xlu0 %1382
    %1388 = vrot.lane.b32.xlu0 %v1325, 16
    %v1389 = vpop.permute.xlu0 %1388
    %1390 = vrot.lane.b32.xlu0 %v1328, 16
    %v1391 = vpop.permute.xlu0 %1390
    %1396 = vrot.lane.b32.xlu0 %v1372, 24
    %v1397 = vpop.permute.xlu0 %1396
    %1398 = vrot.lane.b32.xlu0 %v1375, 24
    %v1399 = vpop.permute.xlu0 %1398
    %v1402 = vsel %vm193, %v1231, %v1381
    %v1403 = vsel %vm193, %v1234, %v1383
    %v1404 = vsel %vm402, %v1402, %v1389
    %v1405 = vsel %vm402, %v1403, %v1391
    %v1406 = vsel %vm711, %v1404, %v1397
    %v1407 = vsel %vm711, %v1405, %v1399
    %v1408 = vpack.c.bf16 %v1407, %v1406
    %v1409 = vlaneseq
    %v1410 = vshrl.u32 %v1409, 7
    %v1411 = vsub.s32 1, %v1410
    %v1412 = vrot.slane %v122, %v1411
    %v1417 = vunpack.c.l.b16 %v882
    %v1418 = vunpack.c.l.b16 %v883
    %v1419 = vunpack.c.l.b16 %v884
    %v1420 = vunpack.c.l.b16 %v885
    %v1421 = vpack.c.b16 %v1418, %v1417
    %v1422 = vpack.c.b16 %v1420, %v1419
    %v1426 = vsel %vm77, %v1408, 0
    %1428 = vmatprep.subr.bf16.mxu0 0
    %1429 = vmatpush1.bf16.msra.mxu0 %v1421
    %1430 = vmatprep.subr.bf16.mxu0 0
    %1431 = vmatpush1.bf16.msra.mxu0 %v1422
    %1432 = vmatprep.subr.bf16.mxu0 0
    %1433 = vmatpush1.bf16.msra.mxu0 0
    %1434 = vmatprep.subr.bf16.mxu0 0
    %1435 = vmatpush1.bf16.msra.mxu0 0
    %1436 = vmatprep.subr.bf16.mxu0 0
    %1437 = vmatpush1.bf16.msra.mxu0 0
    %1438 = vmatprep.subr.bf16.mxu0 0
    %1439 = vmatpush1.bf16.msra.mxu0 0
    %1440 = vmatprep.subr.bf16.mxu0 0
    %1441 = vmatpush1.bf16.msra.mxu0 0
    %1442 = vmatprep.subr.bf16.mxu0 0
    %1443 = vmatpush1.bf16.msra.mxu0 0
    %1444 = vmatprep.subr.bf16.mxu0 0
    %1445 = vmatpush1.bf16.msra.mxu0 0
    %1446 = vmatprep.subr.bf16.mxu0 0
    %1447 = vmatpush1.bf16.msra.mxu0 0
    %1448 = vmatprep.subr.bf16.mxu0 0
    %1449 = vmatpush1.bf16.msra.mxu0 0
    %1450 = vmatprep.subr.bf16.mxu0 0
    %1451 = vmatpush1.bf16.msra.mxu0 0
    %1452 = vmatprep.subr.bf16.mxu0 0
    %1453 = vmatpush1.bf16.msra.mxu0 0
    %1454 = vmatprep.subr.bf16.mxu0 0
    %1455 = vmatpush1.bf16.msra.mxu0 0
    %1456 = vmatprep.subr.bf16.mxu0 0
    %1457 = vmatpush1.bf16.msra.mxu0 0
    %1458 = vmatprep.subr.bf16.mxu0 0
    %1459 = vmatpush1.bf16.msra.mxu0 0
    %1460 = vmatprep.mubr.bf16.mxu0 0
    %1461 = vmatmul.mubr.bf16.gmra.mrb[0].mxu0 %v1426
    %v1462 = vpop.f32.mrb[0].mxu0
    %v1463 = vadd.f32 %v1412, %v1462
    %v1464 = vpop.f32.mrb[0].mxu0
    %v1465 = vpop.f32.mrb[0].mxu0
    %v1466 = vadd.f32 %v1412, %v1465
    %v1467 = vpop.f32.mrb[0].mxu0
    %1468 = vdwg.mxu0
    %v1469 = vadd.f32 %v818, %v1463
    %v1470 = vadd.f32 %v819, %v1466
    %v1471 = vsel %vm77, %v1469, 0.0
    %1472 = vadd.xlane.f32.xlu0 %v1471
    %v1473 = vpop.xlane.xlu0 %1472
    %v1474 = vsel %vm77, %v1470, 0.0
    %1475 = vadd.xlane.f32.xlu0 %v1474
    %v1476 = vpop.xlane.xlu0 %1475
    %v1477 = vmul.f32 %v1473, %v783
    %v1478 = vmul.f32 %v1476, %v783
    %v1479 = vmul.f32 %v1469, %v1469
    %v1480 = vmul.f32 %v1470, %v1470
    %v1481 = vsel %vm77, %v1479, 0.0
    %1482 = vadd.xlane.f32.xlu0 %v1481
    %v1483 = vpop.xlane.xlu0 %1482
    %v1484 = vsel %vm77, %v1480, 0.0
    %1485 = vadd.xlane.f32.xlu0 %v1484
    %v1486 = vpop.xlane.xlu0 %1485
    %v1487 = vmul.f32 %v1483, %v783
    %v1488 = vmul.f32 %v1486, %v783
    %v1489 = vsub.f32 %v1469, %v1477
    %v1490 = vsub.f32 %v1470, %v1478
    %v1491 = vmul.f32 %v1477, %v1477
    %v1492 = vmul.f32 %v1478, %v1478
    %v1493 = vsub.f32 %v1487, %v1491
    %v1494 = vsub.f32 %v1488, %v1492
    %v1495 = vadd.f32 %v1493, 1e-05
    %v1496 = vadd.f32 %v1494, 1e-05
    %v1497 = vrsqrt.pop %v1495
    %v1498 = vrsqrt.pop %v1496
    %v1499 = vmul.f32 %v1489, %v1497
    %v1500 = vmul.f32 %v1490, %v1498
    %v1501 = vlaneseq
    %v1502 = vshrl.u32 %v1501, 7
    %v1503 = vsub.s32 5, %v1502
    %v1504 = vrot.slane %v122, %v1503
    %v1505 = vmul.f32 %v1499, %v1504
    %v1506 = vmul.f32 %v1500, %v1504
    %v1507 = vlaneseq
    %v1508 = vshrl.u32 %v1507, 7
    %v1509 = vsub.s32 6, %v1508
    %v1510 = vrot.slane %v122, %v1509
    %v1511 = vadd.f32 %v1505, %v1510
    %v1512 = vadd.f32 %v1506, %v1510
    %v1513 = vpack.c.bf16 %v1512, %v1511
    %v1514 = vld [vmem:[%s8] sm:$0xf]
    %v1515 = vld [vmem:[%s8 + $0x4] sm:$0xf]
    %v1516 = vld [vmem:[%s8 + $0x8] sm:$0xf]
    %v1517 = vld [vmem:[%s8 + $0xc] sm:$0xf]
    %v1522 = vunpack.c.l.b16 %v1514
    %v1523 = vunpack.c.l.b16 %v1515
    %v1524 = vunpack.c.l.b16 %v1516
    %v1525 = vunpack.c.l.b16 %v1517
    %v1526 = vpack.c.b16 %v1523, %v1522
    %v1527 = vpack.c.b16 %v1525, %v1524
    %v1531 = vsel %vm77, %v1513, 0
    %1533 = vmatprep.subr.bf16.mxu0 0
    %1534 = vmatpush1.bf16.msra.mxu0 %v1526
    %1535 = vmatprep.subr.bf16.mxu0 0
    %1536 = vmatpush1.bf16.msra.mxu0 %v1527
    %1537 = vmatprep.subr.bf16.mxu0 0
    %1538 = vmatpush1.bf16.msra.mxu0 0
    %1539 = vmatprep.subr.bf16.mxu0 0
    %1540 = vmatpush1.bf16.msra.mxu0 0
    %1541 = vmatprep.subr.bf16.mxu0 0
    %1542 = vmatpush1.bf16.msra.mxu0 0
    %1543 = vmatprep.subr.bf16.mxu0 0
    %1544 = vmatpush1.bf16.msra.mxu0 0
    %1545 = vmatprep.subr.bf16.mxu0 0
    %1546 = vmatpush1.bf16.msra.mxu0 0
    %1547 = vmatprep.subr.bf16.mxu0 0
    %1548 = vmatpush1.bf16.msra.mxu0 0
    %1549 = vmatprep.subr.bf16.mxu0 0
    %1550 = vmatpush1.bf16.msra.mxu0 0
    %1551 = vmatprep.subr.bf16.mxu0 0
    %1552 = vmatpush1.bf16.msra.mxu0 0
    %1553 = vmatprep.subr.bf16.mxu0 0
    %1554 = vmatpush1.bf16.msra.mxu0 0
    %1555 = vmatprep.subr.bf16.mxu0 0
    %1556 = vmatpush1.bf16.msra.mxu0 0
    %1557 = vmatprep.subr.bf16.mxu0 0
    %1558 = vmatpush1.bf16.msra.mxu0 0
    %1559 = vmatprep.subr.bf16.mxu0 0
    %1560 = vmatpush1.bf16.msra.mxu0 0
    %1561 = vmatprep.subr.bf16.mxu0 0
    %1562 = vmatpush1.bf16.msra.mxu0 0
    %1563 = vmatprep.subr.bf16.mxu0 0
    %1564 = vmatpush1.bf16.msra.mxu0 0
    %1565 = vmatprep.mubr.bf16.mxu0 0
    %1566 = vmatmul.mubr.bf16.gmra.mrb[0].mxu0 %v1531
    %v1567 = vpop.f32.mrb[0].mxu0
    %v1568 = vadd.f32 0.0, %v1567
    %v1569 = vpop.f32.mrb[0].mxu0
    %v1570 = vpop.f32.mrb[0].mxu0
    %v1571 = vadd.f32 0.0, %v1570
    %v1572 = vpop.f32.mrb[0].mxu0
    %1573 = vdwg.mxu0
    %v1574 = vmax.f32 %v1568, 0.0
    %v1575 = vmax.f32 %v1571, 0.0
    %v1576 = vpack.c.bf16 %v1575, %v1574
    %v1577 = vld [vmem:[%s9] sm:$0xf]
    %v1578 = vld [vmem:[%s9 + $0x4] sm:$0xf]
    %v1579 = vld [vmem:[%s9 + $0x8] sm:$0xf]
    %v1580 = vld [vmem:[%s9 + $0xc] sm:$0xf]
    %v1581 = vld [vmem:[%s9 + $0x10] sm:$0xf]
    %v1582 = vld [vmem:[%s9 + $0x14] sm:$0xf]
    %v1583 = vld [vmem:[%s9 + $0x18] sm:$0xf]
    %v1584 = vld [vmem:[%s9 + $0x1c] sm:$0xf]
    %v1585 = vlaneseq
    %v1586 = vshrl.u32 %v1585, 7
    %v1587 = vsub.s32 2, %v1586
    %v1588 = vrot.slane %v122, %v1587
    %v1597 = vunpack.c.l.b16 %v1577
    %v1598 = vunpack.c.l.b16 %v1578
    %v1599 = vunpack.c.l.b16 %v1579
    %v1600 = vunpack.c.l.b16 %v1580
    %v1601 = vunpack.c.l.b16 %v1581
    %v1602 = vunpack.c.l.b16 %v1582
    %v1603 = vunpack.c.l.b16 %v1583
    %v1604 = vunpack.c.l.b16 %v1584
    %v1605 = vpack.c.b16 %v1598, %v1597
    %v1606 = vpack.c.b16 %v1600, %v1599
    %v1607 = vpack.c.b16 %v1602, %v1601
    %v1608 = vpack.c.b16 %v1604, %v1603
    %vm1613 = vcmask 523264
    %v1615 = vsel %vm1613, %v1576, 0
    %1617 = vmatprep.subr.bf16.mxu0 0
    %1618 = vmatpush1.bf16.msra.mxu0 %v1605
    %1619 = vmatprep.subr.bf16.mxu0 0
    %1620 = vmatpush1.bf16.msra.mxu0 %v1606
    %1621 = vmatprep.subr.bf16.mxu0 0
    %1622 = vmatpush1.bf16.msra.mxu0 %v1607
    %1623 = vmatprep.subr.bf16.mxu0 0
    %1624 = vmatpush1.bf16.msra.mxu0 %v1608
    %1625 = vmatprep.subr.bf16.mxu0 0
    %1626 = vmatpush1.bf16.msra.mxu0 0
    %1627 = vmatprep.subr.bf16.mxu0 0
    %1628 = vmatpush1.bf16.msra.mxu0 0
    %1629 = vmatprep.subr.bf16.mxu0 0
    %1630 = vmatpush1.bf16.msra.mxu0 0
    %1631 = vmatprep.subr.bf16.mxu0 0
    %1632 = vmatpush1.bf16.msra.mxu0 0
    %1633 = vmatprep.subr.bf16.mxu0 0
    %1634 = vmatpush1.bf16.msra.mxu0 0
    %1635 = vmatprep.subr.bf16.mxu0 0
    %1636 = vmatpush1.bf16.msra.mxu0 0
    %1637 = vmatprep.subr.bf16.mxu0 0
    %1638 = vmatpush1.bf16.msra.mxu0 0
    %1639 = vmatprep.subr.bf16.mxu0 0
    %1640 = vmatpush1.bf16.msra.mxu0 0
    %1641 = vmatprep.subr.bf16.mxu0 0
    %1642 = vmatpush1.bf16.msra.mxu0 0
    %1643 = vmatprep.subr.bf16.mxu0 0
    %1644 = vmatpush1.bf16.msra.mxu0 0
    %1645 = vmatprep.subr.bf16.mxu0 0
    %1646 = vmatpush1.bf16.msra.mxu0 0
    %1647 = vmatprep.subr.bf16.mxu0 0
    %1648 = vmatpush1.bf16.msra.mxu0 0
    %1649 = vmatprep.mubr.bf16.mxu0 0
    %1650 = vmatmul.mubr.bf16.gmra.mrb[0].mxu0 %v1615
    %v1651 = vpop.f32.mrb[0].mxu0
    %v1652 = vadd.f32 %v1588, %v1651
    %v1653 = vpop.f32.mrb[0].mxu0
    %v1654 = vpop.f32.mrb[0].mxu0
    %v1655 = vadd.f32 %v1588, %v1654
    %v1656 = vpop.f32.mrb[0].mxu0
    %1657 = vdwg.mxu0
    %v1658 = vadd.f32 %v1511, %v1652
    %v1659 = vadd.f32 %v1512, %v1655
    %v1660 = vsel %vm77, %v1658, 0.0
    %1661 = vadd.xlane.f32.xlu0 %v1660
    %v1662 = vpop.xlane.xlu0 %1661
    %v1663 = vsel %vm77, %v1659, 0.0
    %1664 = vadd.xlane.f32.xlu0 %v1663
    %v1665 = vpop.xlane.xlu0 %1664
    %v1666 = vmul.f32 %v1662, %v783
    %v1667 = vmul.f32 %v1665, %v783
    %v1668 = vmul.f32 %v1658, %v1658
    %v1669 = vmul.f32 %v1659, %v1659
    %v1670 = vsel %vm77, %v1668, 0.0
    %1671 = vadd.xlane.f32.xlu0 %v1670
    %v1672 = vpop.xlane.xlu0 %1671
    %v1673 = vsel %vm77, %v1669, 0.0
    %1674 = vadd.xlane.f32.xlu0 %v1673
    %v1675 = vpop.xlane.xlu0 %1674
    %v1676 = vmul.f32 %v1672, %v783
    %v1677 = vmul.f32 %v1675, %v783
    %v1678 = vsub.f32 %v1658, %v1666
    %v1679 = vsub.f32 %v1659, %v1667
    %v1680 = vmul.f32 %v1666, %v1666
    %v1681 = vmul.f32 %v1667, %v1667
    %v1682 = vsub.f32 %v1676, %v1680
    %v1683 = vsub.f32 %v1677, %v1681
    %v1684 = vadd.f32 %v1682, 1e-05
    %v1685 = vadd.f32 %v1683, 1e-05
    %v1686 = vrsqrt.pop %v1684
    %v1687 = vrsqrt.pop %v1685
    %v1688 = vmul.f32 %v1678, %v1686
    %v1689 = vmul.f32 %v1679, %v1687
    %v1690 = vlaneseq
    %v1691 = vshrl.u32 %v1690, 7
    %v1692 = vsub.s32 7, %v1691
    %v1693 = vrot.slane %v122, %v1692
    %v1694 = vmul.f32 %v1688, %v1693
    %v1695 = vmul.f32 %v1689, %v1693
    %v1696 = vlaneseq
    %v1697 = vshrl.u32 %v1696, 7
    %v1698 = vsub.s32 0, %v1697
    %v1699 = vrot.slane %v123, %v1698
    %v1700 = vadd.f32 %v1694, %v1699
    %v1701 = vadd.f32 %v1695, %v1699
    %s1702 = scalar_lea.vmem %s10, 16
    %v1703 = vld [vmem:[%s1702] sm:$0xff]
    %v1704 = vld [vmem:[%s1702 + $0x8] sm:$0x1]
    %v1705 = vpack.c.bf16 %v1701, %v1700
    %s1706 = scalar_lea.vmem %s4, 16
    %v1707 = vld [vmem:[%s1706] sm:$0xf]
    %v1708 = vld [vmem:[%s1706 + $0x4] sm:$0xf]
    %v1709 = vld [vmem:[%s1706 + $0x8] sm:$0xf]
    %v1710 = vld [vmem:[%s1706 + $0xc] sm:$0xf]
    %v1715 = vunpack.c.l.b16 %v1707
    %v1716 = vunpack.c.l.b16 %v1708
    %v1717 = vunpack.c.l.b16 %v1709
    %v1718 = vunpack.c.l.b16 %v1710
    %v1719 = vpack.c.b16 %v1716, %v1715
    %v1720 = vpack.c.b16 %v1718, %v1717
    %v1724 = vsel %vm77, %v1705, 0
    %1726 = vmatprep.subr.bf16.mxu0 0
    %1727 = vmatpush1.bf16.msra.mxu0 %v1719
    %1728 = vmatprep.subr.bf16.mxu0 0
    %1729 = vmatpush1.bf16.msra.mxu0 %v1720
    %1730 = vmatprep.subr.bf16.mxu0 0
    %1731 = vmatpush1.bf16.msra.mxu0 0
    %1732 = vmatprep.subr.bf16.mxu0 0
    %1733 = vmatpush1.bf16.msra.mxu0 0
    %1734 = vmatprep.subr.bf16.mxu0 0
    %1735 = vmatpush1.bf16.msra.mxu0 0
    %1736 = vmatprep.subr.bf16.mxu0 0
    %1737 = vmatpush1.bf16.msra.mxu0 0
    %1738 = vmatprep.subr.bf16.mxu0 0
    %1739 = vmatpush1.bf16.msra.mxu0 0
    %1740 = vmatprep.subr.bf16.mxu0 0
    %1741 = vmatpush1.bf16.msra.mxu0 0
    %1742 = vmatprep.subr.bf16.mxu0 0
    %1743 = vmatpush1.bf16.msra.mxu0 0
    %1744 = vmatprep.subr.bf16.mxu0 0
    %1745 = vmatpush1.bf16.msra.mxu0 0
    %1746 = vmatprep.subr.bf16.mxu0 0
    %1747 = vmatpush1.bf16.msra.mxu0 0
    %1748 = vmatprep.subr.bf16.mxu0 0
    %1749 = vmatpush1.bf16.msra.mxu0 0
    %1750 = vmatprep.subr.bf16.mxu0 0
    %1751 = vmatpush1.bf16.msra.mxu0 0
    %1752 = vmatprep.subr.bf16.mxu0 0
    %1753 = vmatpush1.bf16.msra.mxu0 0
    %1754 = vmatprep.subr.bf16.mxu0 0
    %1755 = vmatpush1.bf16.msra.mxu0 0
    %1756 = vmatprep.subr.bf16.mxu0 0
    %1757 = vmatpush1.bf16.msra.mxu0 0
    %1758 = vmatprep.mubr.bf16.mxu0 0
    %1759 = vmatmul.mubr.bf16.gmra.mrb[0].mxu0 %v1724
    %v1760 = vpop.f32.mrb[0].mxu0
    %v1761 = vadd.f32 0.0, %v1760
    %v1762 = vpop.f32.mrb[0].mxu0
    %v1763 = vpop.f32.mrb[0].mxu0
    %v1764 = vadd.f32 0.0, %v1763
    %v1765 = vpop.f32.mrb[0].mxu0
    %1766 = vdwg.mxu0
    %s1767 = scalar_lea.vmem %s7, 32
    %v1768 = vld [vmem:[%s1767] sm:$0xf]
    %v1769 = vld [vmem:[%s1767 + $0x4] sm:$0xf]
    %v1770 = vld [vmem:[%s1767 + $0x8] sm:$0xf]
    %v1771 = vld [vmem:[%s1767 + $0xc] sm:$0xf]
    %v1772 = vpack.c.bf16 %v1764, %v1761
    %1774 = vrot.lane.b32.xlu0 %v1772, 96
    %v1775 = vpop.permute.xlu0 %1774
    %v1777 = vsel %vm193, %v1772, 0
    %v1780 = vsel %vm193, %v1775, 0
    %1782 = vmatprep.subr.bf16.mxu0 0
    %1783 = vmatpush1.bf16.xpose.msra.mxu0 %v1780
    %1784 = vmatprep.subr.bf16.mxu0 0
    %1785 = vmatpush1.bf16.xpose.msra.mxu0 0
    %1786 = vmatprep.subr.bf16.mxu0 0
    %1787 = vmatpush1.bf16.xpose.msra.mxu0 0
    %1788 = vmatprep.subr.bf16.mxu0 0
    %1789 = vmatpush1.bf16.xpose.msra.mxu0 0
    %1790 = vmatprep.subr.bf16.mxu0 0
    %1791 = vmatpush1.bf16.xpose.msra.mxu0 0
    %1792 = vmatprep.subr.bf16.mxu0 0
    %1793 = vmatpush1.bf16.xpose.msra.mxu0 0
    %1794 = vmatprep.subr.bf16.mxu0 0
    %1795 = vmatpush1.bf16.xpose.msra.mxu0 0
    %1796 = vmatprep.subr.bf16.mxu0 0
    %1797 = vmatpush1.bf16.xpose.msra.mxu0 0
    %1798 = vmatprep.subr.bf16.mxu0 0
    %1799 = vmatpush1.bf16.xpose.msra.mxu0 0
    %1800 = vmatprep.subr.bf16.mxu0 0
    %1801 = vmatpush1.bf16.xpose.msra.mxu0 0
    %1802 = vmatprep.subr.bf16.mxu0 0
    %1803 = vmatpush1.bf16.xpose.msra.mxu0 0
    %1804 = vmatprep.subr.bf16.mxu0 0
    %1805 = vmatpush1.bf16.xpose.msra.mxu0 0
    %1806 = vmatprep.subr.bf16.mxu0 0
    %1807 = vmatpush1.bf16.xpose.msra.mxu0 0
    %1808 = vmatprep.subr.bf16.mxu0 0
    %1809 = vmatpush1.bf16.xpose.msra.mxu0 0
    %1810 = vmatprep.subr.bf16.mxu0 0
    %1811 = vmatpush1.bf16.xpose.msra.mxu0 0
    %1812 = vmatprep.subr.bf16.mxu0 0
    %1813 = vmatpush1.bf16.xpose.msra.mxu0 0
    %1814 = vmatprep.mubr.bf16.mxu0 0
    %1815 = vmatmul.mubr.bf16.gmra.mrb[0].mxu0 %v1777
    %v1816 = vpop.f32.mrb[0].mxu0
    %v1817 = vadd.f32 0.0, %v1816
    %v1818 = vpop.f32.mrb[0].mxu0
    %v1819 = vpop.f32.mrb[0].mxu0
    %v1820 = vadd.f32 0.0, %v1819
    %v1821 = vpop.f32.mrb[0].mxu0
    %1822 = vdwg.mxu0
    %1823 = vrot.lane.b32.xlu0 %v1772, 120
    %v1824 = vpop.permute.xlu0 %1823
    %1825 = vrot.lane.b32.xlu0 %v1772, 88
    %v1826 = vpop.permute.xlu0 %1825
    %v1828 = vsel %vm193, %v1824, 0
    %v1831 = vsel %vm193, %v1826, 0
    %1833 = vmatprep.subr.bf16.mxu0 0
    %1834 = vmatpush1.bf16.xpose.msra.mxu0 %v1831
    %1835 = vmatprep.subr.bf16.mxu0 0
    %1836 = vmatpush1.bf16.xpose.msra.mxu0 0
    %1837 = vmatprep.subr.bf16.mxu0 0
    %1838 = vmatpush1.bf16.xpose.msra.mxu0 0
    %1839 = vmatprep.subr.bf16.mxu0 0
    %1840 = vmatpush1.bf16.xpose.msra.mxu0 0
    %1841 = vmatprep.subr.bf16.mxu0 0
    %1842 = vmatpush1.bf16.xpose.msra.mxu0 0
    %1843 = vmatprep.subr.bf16.mxu0 0
    %1844 = vmatpush1.bf16.xpose.msra.mxu0 0
    %1845 = vmatprep.subr.bf16.mxu0 0
    %1846 = vmatpush1.bf16.xpose.msra.mxu0 0
    %1847 = vmatprep.subr.bf16.mxu0 0
    %1848 = vmatpush1.bf16.xpose.msra.mxu0 0
    %1849 = vmatprep.subr.bf16.mxu0 0
    %1850 = vmatpush1.bf16.xpose.msra.mxu0 0
    %1851 = vmatprep.subr.bf16.mxu0 0
    %1852 = vmatpush1.bf16.xpose.msra.mxu0 0
    %1853 = vmatprep.subr.bf16.mxu0 0
    %1854 = vmatpush1.bf16.xpose.msra.mxu0 0
    %1855 = vmatprep.subr.bf16.mxu0 0
    %1856 = vmatpush1.bf16.xpose.msra.mxu0 0
    %1857 = vmatprep.subr.bf16.mxu0 0
    %1858 = vmatpush1.bf16.xpose.msra.mxu0 0
    %1859 = vmatprep.subr.bf16.mxu0 0
    %1860 = vmatpush1.bf16.xpose.msra.mxu0 0
    %1861 = vmatprep.subr.bf16.mxu0 0
    %1862 = vmatpush1.bf16.xpose.msra.mxu0 0
    %1863 = vmatprep.subr.bf16.mxu0 0
    %1864 = vmatpush1.bf16.xpose.msra.mxu0 0
    %1865 = vmatprep.mubr.bf16.mxu0 0
    %1866 = vmatmul.mubr.bf16.gmra.mrb[0].mxu0 %v1828
    %v1867 = vpop.f32.mrb[0].mxu0
    %v1868 = vadd.f32 0.0, %v1867
    %v1869 = vpop.f32.mrb[0].mxu0
    %v1870 = vpop.f32.mrb[0].mxu0
    %v1871 = vadd.f32 0.0, %v1870
    %v1872 = vpop.f32.mrb[0].mxu0
    %1873 = vdwg.mxu0
    %1874 = vrot.lane.b32.xlu0 %v1772, 112
    %v1875 = vpop.permute.xlu0 %1874
    %1876 = vrot.lane.b32.xlu0 %v1772, 80
    %v1877 = vpop.permute.xlu0 %1876
    %v1879 = vsel %vm193, %v1875, 0
    %v1882 = vsel %vm193, %v1877, 0
    %1884 = vmatprep.subr.bf16.mxu0 0
    %1885 = vmatpush1.bf16.xpose.msra.mxu0 %v1882
    %1886 = vmatprep.subr.bf16.mxu0 0
    %1887 = vmatpush1.bf16.xpose.msra.mxu0 0
    %1888 = vmatprep.subr.bf16.mxu0 0
    %1889 = vmatpush1.bf16.xpose.msra.mxu0 0
    %1890 = vmatprep.subr.bf16.mxu0 0
    %1891 = vmatpush1.bf16.xpose.msra.mxu0 0
    %1892 = vmatprep.subr.bf16.mxu0 0
    %1893 = vmatpush1.bf16.xpose.msra.mxu0 0
    %1894 = vmatprep.subr.bf16.mxu0 0
    %1895 = vmatpush1.bf16.xpose.msra.mxu0 0
    %1896 = vmatprep.subr.bf16.mxu0 0
    %1897 = vmatpush1.bf16.xpose.msra.mxu0 0
    %1898 = vmatprep.subr.bf16.mxu0 0
    %1899 = vmatpush1.bf16.xpose.msra.mxu0 0
    %1900 = vmatprep.subr.bf16.mxu0 0
    %1901 = vmatpush1.bf16.xpose.msra.mxu0 0
    %1902 = vmatprep.subr.bf16.mxu0 0
    %1903 = vmatpush1.bf16.xpose.msra.mxu0 0
    %1904 = vmatprep.subr.bf16.mxu0 0
    %1905 = vmatpush1.bf16.xpose.msra.mxu0 0
    %1906 = vmatprep.subr.bf16.mxu0 0
    %1907 = vmatpush1.bf16.xpose.msra.mxu0 0
    %1908 = vmatprep.subr.bf16.mxu0 0
    %1909 = vmatpush1.bf16.xpose.msra.mxu0 0
    %1910 = vmatprep.subr.bf16.mxu0 0
    %1911 = vmatpush1.bf16.xpose.msra.mxu0 0
    %1912 = vmatprep.subr.bf16.mxu0 0
    %1913 = vmatpush1.bf16.xpose.msra.mxu0 0
    %1914 = vmatprep.subr.bf16.mxu0 0
    %1915 = vmatpush1.bf16.xpose.msra.mxu0 0
    %1916 = vmatprep.mubr.bf16.mxu0 0
    %1917 = vmatmul.mubr.bf16.gmra.mrb[0].mxu0 %v1879
    %v1918 = vpop.f32.mrb[0].mxu0
    %v1919 = vadd.f32 0.0, %v1918
    %v1920 = vpop.f32.mrb[0].mxu0
    %v1921 = vpop.f32.mrb[0].mxu0
    %v1922 = vadd.f32 0.0, %v1921
    %v1923 = vpop.f32.mrb[0].mxu0
    %1924 = vdwg.mxu0
    %1925 = vrot.lane.b32.xlu0 %v1772, 104
    %v1926 = vpop.permute.xlu0 %1925
    %1927 = vrot.lane.b32.xlu0 %v1772, 72
    %v1928 = vpop.permute.xlu0 %1927
    %v1930 = vsel %vm193, %v1926, 0
    %v1933 = vsel %vm193, %v1928, 0
    %1935 = vmatprep.subr.bf16.mxu0 0
    %1936 = vmatpush1.bf16.xpose.msra.mxu0 %v1933
    %1937 = vmatprep.subr.bf16.mxu0 0
    %1938 = vmatpush1.bf16.xpose.msra.mxu0 0
    %1939 = vmatprep.subr.bf16.mxu0 0
    %1940 = vmatpush1.bf16.xpose.msra.mxu0 0
    %1941 = vmatprep.subr.bf16.mxu0 0
    %1942 = vmatpush1.bf16.xpose.msra.mxu0 0
    %1943 = vmatprep.subr.bf16.mxu0 0
    %1944 = vmatpush1.bf16.xpose.msra.mxu0 0
    %1945 = vmatprep.subr.bf16.mxu0 0
    %1946 = vmatpush1.bf16.xpose.msra.mxu0 0
    %1947 = vmatprep.subr.bf16.mxu0 0
    %1948 = vmatpush1.bf16.xpose.msra.mxu0 0
    %1949 = vmatprep.subr.bf16.mxu0 0
    %1950 = vmatpush1.bf16.xpose.msra.mxu0 0
    %1951 = vmatprep.subr.bf16.mxu0 0
    %1952 = vmatpush1.bf16.xpose.msra.mxu0 0
    %1953 = vmatprep.subr.bf16.mxu0 0
    %1954 = vmatpush1.bf16.xpose.msra.mxu0 0
    %1955 = vmatprep.subr.bf16.mxu0 0
    %1956 = vmatpush1.bf16.xpose.msra.mxu0 0
    %1957 = vmatprep.subr.bf16.mxu0 0
    %1958 = vmatpush1.bf16.xpose.msra.mxu0 0
    %1959 = vmatprep.subr.bf16.mxu0 0
    %1960 = vmatpush1.bf16.xpose.msra.mxu0 0
    %1961 = vmatprep.subr.bf16.mxu0 0
    %1962 = vmatpush1.bf16.xpose.msra.mxu0 0
    %1963 = vmatprep.subr.bf16.mxu0 0
    %1964 = vmatpush1.bf16.xpose.msra.mxu0 0
    %1965 = vmatprep.subr.bf16.mxu0 0
    %1966 = vmatpush1.bf16.xpose.msra.mxu0 0
    %1967 = vmatprep.mubr.bf16.mxu0 0
    %1968 = vmatmul.mubr.bf16.gmra.mrb[0].mxu0 %v1930
    %v1969 = vpop.f32.mrb[0].mxu0
    %v1970 = vadd.f32 0.0, %v1969
    %v1971 = vpop.f32.mrb[0].mxu0
    %v1972 = vpop.f32.mrb[0].mxu0
    %v1973 = vadd.f32 0.0, %v1972
    %v1974 = vpop.f32.mrb[0].mxu0
    %1975 = vdwg.mxu0
    %v1976 = vadd.f32 %v1817, %v42
    %v1977 = vadd.f32 %v1820, %v43
    %v1978 = vadd.f32 %v1868, %v44
    %v1979 = vadd.f32 %v1871, %v45
    %v1980 = vadd.f32 %v1919, %v46
    %v1981 = vadd.f32 %v1922, %v47
    %v1982 = vadd.f32 %v1970, %v48
    %v1983 = vadd.f32 %v1973, %v49
    %v1984 = vsel %vm402, %v1976, -inf
    %1985 = vmax.xlane.f32.xlu0 %v1984
    %v1986 = vpop.xlane.xlu0 %1985
    %v1987 = vsel %vm402, %v1977, -inf
    %1988 = vmax.xlane.f32.xlu0 %v1987
    %v1989 = vpop.xlane.xlu0 %1988
    %v1990 = vsel %vm402, %v1978, -inf
    %1991 = vmax.xlane.f32.xlu0 %v1990
    %v1992 = vpop.xlane.xlu0 %1991
    %v1993 = vsel %vm402, %v1979, -inf
    %1994 = vmax.xlane.f32.xlu0 %v1993
    %v1995 = vpop.xlane.xlu0 %1994
    %v1996 = vsel %vm402, %v1980, -inf
    %1997 = vmax.xlane.f32.xlu0 %v1996
    %v1998 = vpop.xlane.xlu0 %1997
    %v1999 = vsel %vm402, %v1981, -inf
    %2000 = vmax.xlane.f32.xlu0 %v1999
    %v2001 = vpop.xlane.xlu0 %2000
    %v2002 = vsel %vm402, %v1982, -inf
    %2003 = vmax.xlane.f32.xlu0 %v2002
    %v2004 = vpop.xlane.xlu0 %2003
    %v2005 = vsel %vm402, %v1983, -inf
    %2006 = vmax.xlane.f32.xlu0 %v2005
    %v2007 = vpop.xlane.xlu0 %2006
    %v2008 = vsub.f32 %v1976, %v1986
    %v2009 = vsub.f32 %v1977, %v1989
    %v2010 = vsub.f32 %v1978, %v1992
    %v2011 = vsub.f32 %v1979, %v1995
    %v2012 = vsub.f32 %v1980, %v1998
    %v2013 = vsub.f32 %v1981, %v2001
    %v2014 = vsub.f32 %v1982, %v2004
    %v2015 = vsub.f32 %v1983, %v2007
    %v2016 = vmul.f32 %v2008, 1.442695
    %v2017 = vpow.pop %v2016
    %v2018 = vmul.f32 %v2009, 1.442695
    %v2019 = vpow.pop %v2018
    %v2020 = vmul.f32 %v2010, 1.442695
    %v2021 = vpow.pop %v2020
    %v2022 = vmul.f32 %v2011, 1.442695
    %v2023 = vpow.pop %v2022
    %v2024 = vmul.f32 %v2012, 1.442695
    %v2025 = vpow.pop %v2024
    %v2026 = vmul.f32 %v2013, 1.442695
    %v2027 = vpow.pop %v2026
    %v2028 = vmul.f32 %v2014, 1.442695
    %v2029 = vpow.pop %v2028
    %v2030 = vmul.f32 %v2015, 1.442695
    %v2031 = vpow.pop %v2030
    %v2032 = vsel %vm402, %v2017, 0.0
    %2033 = vadd.xlane.f32.xlu0 %v2032
    %v2034 = vpop.xlane.xlu0 %2033
    %v2035 = vsel %vm402, %v2019, 0.0
    %2036 = vadd.xlane.f32.xlu0 %v2035
    %v2037 = vpop.xlane.xlu0 %2036
    %v2038 = vsel %vm402, %v2021, 0.0
    %2039 = vadd.xlane.f32.xlu0 %v2038
    %v2040 = vpop.xlane.xlu0 %2039
    %v2041 = vsel %vm402, %v2023, 0.0
    %2042 = vadd.xlane.f32.xlu0 %v2041
    %v2043 = vpop.xlane.xlu0 %2042
    %v2044 = vsel %vm402, %v2025, 0.0
    %2045 = vadd.xlane.f32.xlu0 %v2044
    %v2046 = vpop.xlane.xlu0 %2045
    %v2047 = vsel %vm402, %v2027, 0.0
    %2048 = vadd.xlane.f32.xlu0 %v2047
    %v2049 = vpop.xlane.xlu0 %2048
    %v2050 = vsel %vm402, %v2029, 0.0
    %2051 = vadd.xlane.f32.xlu0 %v2050
    %v2052 = vpop.xlane.xlu0 %2051
    %v2053 = vsel %vm402, %v2031, 0.0
    %2054 = vadd.xlane.f32.xlu0 %v2053
    %v2055 = vpop.xlane.xlu0 %2054
    %v2056 = vrcp.pop %v2034
    %v2057 = vrcp.pop %v2037
    %v2058 = vrcp.pop %v2040
    %v2059 = vrcp.pop %v2043
    %v2060 = vrcp.pop %v2046
    %v2061 = vrcp.pop %v2049
    %v2062 = vrcp.pop %v2052
    %v2063 = vrcp.pop %v2055
    %v2064 = vmul.f32 %v2017, %v2056
    %v2065 = vmul.f32 %v2019, %v2057
    %v2066 = vmul.f32 %v2021, %v2058
    %v2067 = vmul.f32 %v2023, %v2059
    %v2068 = vmul.f32 %v2025, %v2060
    %v2069 = vmul.f32 %v2027, %v2061
    %v2070 = vmul.f32 %v2029, %v2062
    %v2071 = vmul.f32 %v2031, %v2063
    %v2072 = vpack.c.bf16 %v2065, %v2064
    %v2073 = vpack.c.bf16 %v2067, %v2066
    %v2074 = vpack.c.bf16 %v2069, %v2068
    %v2075 = vpack.c.bf16 %v2071, %v2070
    %2076 = vrot.lane.b32.xlu0 %v1772, 64
    %v2077 = vpop.permute.xlu0 %2076
    %v2080 = vsel %vm402, %v2072, 0
    %2082 = vmatprep.subr.bf16.mxu0 0
    %2083 = vmatpush1.bf16.msra.mxu0 %v2077
    %2084 = vmatprep.subr.bf16.mxu0 0
    %2085 = vmatpush1.bf16.msra.mxu0 0
    %2086 = vmatprep.subr.bf16.mxu0 0
    %2087 = vmatpush1.bf16.msra.mxu0 0
    %2088 = vmatprep.subr.bf16.mxu0 0
    %2089 = vmatpush1.bf16.msra.mxu0 0
    %2090 = vmatprep.subr.bf16.mxu0 0
    %2091 = vmatpush1.bf16.msra.mxu0 0
    %2092 = vmatprep.subr.bf16.mxu0 0
    %2093 = vmatpush1.bf16.msra.mxu0 0
    %2094 = vmatprep.subr.bf16.mxu0 0
    %2095 = vmatpush1.bf16.msra.mxu0 0
    %2096 = vmatprep.subr.bf16.mxu0 0
    %2097 = vmatpush1.bf16.msra.mxu0 0
    %2098 = vmatprep.subr.bf16.mxu0 0
    %2099 = vmatpush1.bf16.msra.mxu0 0
    %2100 = vmatprep.subr.bf16.mxu0 0
    %2101 = vmatpush1.bf16.msra.mxu0 0
    %2102 = vmatprep.subr.bf16.mxu0 0
    %2103 = vmatpush1.bf16.msra.mxu0 0
    %2104 = vmatprep.subr.bf16.mxu0 0
    %2105 = vmatpush1.bf16.msra.mxu0 0
    %2106 = vmatprep.subr.bf16.mxu0 0
    %2107 = vmatpush1.bf16.msra.mxu0 0
    %2108 = vmatprep.subr.bf16.mxu0 0
    %2109 = vmatpush1.bf16.msra.mxu0 0
    %2110 = vmatprep.subr.bf16.mxu0 0
    %2111 = vmatpush1.bf16.msra.mxu0 0
    %2112 = vmatprep.subr.bf16.mxu0 0
    %2113 = vmatpush1.bf16.msra.mxu0 0
    %2114 = vmatprep.mubr.bf16.mxu0 0
    %2115 = vmatmul.mubr.bf16.gmra.mrb[0].mxu0 %v2080
    %v2116 = vpop.f32.mrb[0].mxu0
    %v2117 = vadd.f32 0.0, %v2116
    %v2118 = vpop.f32.mrb[0].mxu0
    %v2119 = vpop.f32.mrb[0].mxu0
    %v2120 = vadd.f32 0.0, %v2119
    %v2121 = vpop.f32.mrb[0].mxu0
    %2122 = vdwg.mxu0
    %2123 = vrot.lane.b32.xlu0 %v1772, 56
    %v2124 = vpop.permute.xlu0 %2123
    %v2127 = vsel %vm402, %v2073, 0
    %2129 = vmatprep.subr.bf16.mxu0 0
    %2130 = vmatpush1.bf16.msra.mxu0 %v2124
    %2131 = vmatprep.subr.bf16.mxu0 0
    %2132 = vmatpush1.bf16.msra.mxu0 0
    %2133 = vmatprep.subr.bf16.mxu0 0
    %2134 = vmatpush1.bf16.msra.mxu0 0
    %2135 = vmatprep.subr.bf16.mxu0 0
    %2136 = vmatpush1.bf16.msra.mxu0 0
    %2137 = vmatprep.subr.bf16.mxu0 0
    %2138 = vmatpush1.bf16.msra.mxu0 0
    %2139 = vmatprep.subr.bf16.mxu0 0
    %2140 = vmatpush1.bf16.msra.mxu0 0
    %2141 = vmatprep.subr.bf16.mxu0 0
    %2142 = vmatpush1.bf16.msra.mxu0 0
    %2143 = vmatprep.subr.bf16.mxu0 0
    %2144 = vmatpush1.bf16.msra.mxu0 0
    %2145 = vmatprep.subr.bf16.mxu0 0
    %2146 = vmatpush1.bf16.msra.mxu0 0
    %2147 = vmatprep.subr.bf16.mxu0 0
    %2148 = vmatpush1.bf16.msra.mxu0 0
    %2149 = vmatprep.subr.bf16.mxu0 0
    %2150 = vmatpush1.bf16.msra.mxu0 0
    %2151 = vmatprep.subr.bf16.mxu0 0
    %2152 = vmatpush1.bf16.msra.mxu0 0
    %2153 = vmatprep.subr.bf16.mxu0 0
    %2154 = vmatpush1.bf16.msra.mxu0 0
    %2155 = vmatprep.subr.bf16.mxu0 0
    %2156 = vmatpush1.bf16.msra.mxu0 0
    %2157 = vmatprep.subr.bf16.mxu0 0
    %2158 = vmatpush1.bf16.msra.mxu0 0
    %2159 = vmatprep.subr.bf16.mxu0 0
    %2160 = vmatpush1.bf16.msra.mxu0 0
    %2161 = vmatprep.mubr.bf16.mxu0 0
    %2162 = vmatmul.mubr.bf16.gmra.mrb[0].mxu0 %v2127
    %v2163 = vpop.f32.mrb[0].mxu0
    %v2164 = vadd.f32 0.0, %v2163
    %v2165 = vpop.f32.mrb[0].mxu0
    %v2166 = vpop.f32.mrb[0].mxu0
    %v2167 = vadd.f32 0.0, %v2166
    %v2168 = vpop.f32.mrb[0].mxu0
    %2169 = vdwg.mxu0
    %2170 = vrot.lane.b32.xlu0 %v1772, 48
    %v2171 = vpop.permute.xlu0 %2170
    %v2174 = vsel %vm402, %v2074, 0
    %2176 = vmatprep.subr.bf16.mxu0 0
    %2177 = vmatpush1.bf16.msra.mxu0 %v2171
    %2178 = vmatprep.subr.bf16.mxu0 0
    %2179 = vmatpush1.bf16.msra.mxu0 0
    %2180 = vmatprep.subr.bf16.mxu0 0
    %2181 = vmatpush1.bf16.msra.mxu0 0
    %2182 = vmatprep.subr.bf16.mxu0 0
    %2183 = vmatpush1.bf16.msra.mxu0 0
    %2184 = vmatprep.subr.bf16.mxu0 0
    %2185 = vmatpush1.bf16.msra.mxu0 0
    %2186 = vmatprep.subr.bf16.mxu0 0
    %2187 = vmatpush1.bf16.msra.mxu0 0
    %2188 = vmatprep.subr.bf16.mxu0 0
    %2189 = vmatpush1.bf16.msra.mxu0 0
    %2190 = vmatprep.subr.bf16.mxu0 0
    %2191 = vmatpush1.bf16.msra.mxu0 0
    %2192 = vmatprep.subr.bf16.mxu0 0
    %2193 = vmatpush1.bf16.msra.mxu0 0
    %2194 = vmatprep.subr.bf16.mxu0 0
    %2195 = vmatpush1.bf16.msra.mxu0 0
    %2196 = vmatprep.subr.bf16.mxu0 0
    %2197 = vmatpush1.bf16.msra.mxu0 0
    %2198 = vmatprep.subr.bf16.mxu0 0
    %2199 = vmatpush1.bf16.msra.mxu0 0
    %2200 = vmatprep.subr.bf16.mxu0 0
    %2201 = vmatpush1.bf16.msra.mxu0 0
    %2202 = vmatprep.subr.bf16.mxu0 0
    %2203 = vmatpush1.bf16.msra.mxu0 0
    %2204 = vmatprep.subr.bf16.mxu0 0
    %2205 = vmatpush1.bf16.msra.mxu0 0
    %2206 = vmatprep.subr.bf16.mxu0 0
    %2207 = vmatpush1.bf16.msra.mxu0 0
    %2208 = vmatprep.mubr.bf16.mxu0 0
    %2209 = vmatmul.mubr.bf16.gmra.mrb[0].mxu0 %v2174
    %v2210 = vpop.f32.mrb[0].mxu0
    %v2211 = vadd.f32 0.0, %v2210
    %v2212 = vpop.f32.mrb[0].mxu0
    %v2213 = vpop.f32.mrb[0].mxu0
    %v2214 = vadd.f32 0.0, %v2213
    %v2215 = vpop.f32.mrb[0].mxu0
    %2216 = vdwg.mxu0
    %2217 = vrot.lane.b32.xlu0 %v1772, 40
    %v2218 = vpop.permute.xlu0 %2217
    %v2221 = vsel %vm402, %v2075, 0
    %2223 = vmatprep.subr.bf16.mxu0 0
    %2224 = vmatpush1.bf16.msra.mxu0 %v2218
    %2225 = vmatprep.subr.bf16.mxu0 0
    %2226 = vmatpush1.bf16.msra.mxu0 0
    %2227 = vmatprep.subr.bf16.mxu0 0
    %2228 = vmatpush1.bf16.msra.mxu0 0
    %2229 = vmatprep.subr.bf16.mxu0 0
    %2230 = vmatpush1.bf16.msra.mxu0 0
    %2231 = vmatprep.subr.bf16.mxu0 0
    %2232 = vmatpush1.bf16.msra.mxu0 0
    %2233 = vmatprep.subr.bf16.mxu0 0
    %2234 = vmatpush1.bf16.msra.mxu0 0
    %2235 = vmatprep.subr.bf16.mxu0 0
    %2236 = vmatpush1.bf16.msra.mxu0 0
    %2237 = vmatprep.subr.bf16.mxu0 0
    %2238 = vmatpush1.bf16.msra.mxu0 0
    %2239 = vmatprep.subr.bf16.mxu0 0
    %2240 = vmatpush1.bf16.msra.mxu0 0
    %2241 = vmatprep.subr.bf16.mxu0 0
    %2242 = vmatpush1.bf16.msra.mxu0 0
    %2243 = vmatprep.subr.bf16.mxu0 0
    %2244 = vmatpush1.bf16.msra.mxu0 0
    %2245 = vmatprep.subr.bf16.mxu0 0
    %2246 = vmatpush1.bf16.msra.mxu0 0
    %2247 = vmatprep.subr.bf16.mxu0 0
    %2248 = vmatpush1.bf16.msra.mxu0 0
    %2249 = vmatprep.subr.bf16.mxu0 0
    %2250 = vmatpush1.bf16.msra.mxu0 0
    %2251 = vmatprep.subr.bf16.mxu0 0
    %2252 = vmatpush1.bf16.msra.mxu0 0
    %2253 = vmatprep.subr.bf16.mxu0 0
    %2254 = vmatpush1.bf16.msra.mxu0 0
    %2255 = vmatprep.mubr.bf16.mxu0 0
    %2256 = vmatmul.mubr.bf16.gmra.mrb[0].mxu0 %v2221
    %v2257 = vpop.f32.mrb[0].mxu0
    %v2258 = vadd.f32 0.0, %v2257
    %v2259 = vpop.f32.mrb[0].mxu0
    %v2260 = vpop.f32.mrb[0].mxu0
    %v2261 = vadd.f32 0.0, %v2260
    %v2262 = vpop.f32.mrb[0].mxu0
    %2263 = vdwg.mxu0
    %2266 = vrot.lane.b32.xlu0 %v2164, 8
    %v2267 = vpop.permute.xlu0 %2266
    %2268 = vrot.lane.b32.xlu0 %v2167, 8
    %v2269 = vpop.permute.xlu0 %2268
    %2274 = vrot.lane.b32.xlu0 %v2211, 16
    %v2275 = vpop.permute.xlu0 %2274
    %2276 = vrot.lane.b32.xlu0 %v2214, 16
    %v2277 = vpop.permute.xlu0 %2276
    %2282 = vrot.lane.b32.xlu0 %v2258, 24
    %v2283 = vpop.permute.xlu0 %2282
    %2284 = vrot.lane.b32.xlu0 %v2261, 24
    %v2285 = vpop.permute.xlu0 %2284
    %v2288 = vsel %vm193, %v2117, %v2267
    %v2289 = vsel %vm193, %v2120, %v2269
    %v2290 = vsel %vm402, %v2288, %v2275
    %v2291 = vsel %vm402, %v2289, %v2277
    %v2292 = vsel %vm711, %v2290, %v2283
    %v2293 = vsel %vm711, %v2291, %v2285
    %v2294 = vpack.c.bf16 %v2293, %v2292
    %v2295 = vlaneseq
    %v2296 = vshrl.u32 %v2295, 7
    %v2297 = vsub.s32 0, %v2296
    %v2298 = vrot.slane %v1703, %v2297
    %v2303 = vunpack.c.l.b16 %v1768
    %v2304 = vunpack.c.l.b16 %v1769
    %v2305 = vunpack.c.l.b16 %v1770
    %v2306 = vunpack.c.l.b16 %v1771
    %v2307 = vpack.c.b16 %v2304, %v2303
    %v2308 = vpack.c.b16 %v2306, %v2305
    %v2312 = vsel %vm77, %v2294, 0
    %2314 = vmatprep.subr.bf16.mxu0 0
    %2315 = vmatpush1.bf16.msra.mxu0 %v2307
    %2316 = vmatprep.subr.bf16.mxu0 0
    %2317 = vmatpush1.bf16.msra.mxu0 %v2308
    %2318 = vmatprep.subr.bf16.mxu0 0
    %2319 = vmatpush1.bf16.msra.mxu0 0
    %2320 = vmatprep.subr.bf16.mxu0 0
    %2321 = vmatpush1.bf16.msra.mxu0 0
    %2322 = vmatprep.subr.bf16.mxu0 0
    %2323 = vmatpush1.bf16.msra.mxu0 0
    %2324 = vmatprep.subr.bf16.mxu0 0
    %2325 = vmatpush1.bf16.msra.mxu0 0
    %2326 = vmatprep.subr.bf16.mxu0 0
    %2327 = vmatpush1.bf16.msra.mxu0 0
    %2328 = vmatprep.subr.bf16.mxu0 0
    %2329 = vmatpush1.bf16.msra.mxu0 0
    %2330 = vmatprep.subr.bf16.mxu0 0
    %2331 = vmatpush1.bf16.msra.mxu0 0
    %2332 = vmatprep.subr.bf16.mxu0 0
    %2333 = vmatpush1.bf16.msra.mxu0 0
    %2334 = vmatprep.subr.bf16.mxu0 0
    %2335 = vmatpush1.bf16.msra.mxu0 0
    %2336 = vmatprep.subr.bf16.mxu0 0
    %2337 = vmatpush1.bf16.msra.mxu0 0
    %2338 = vmatprep.subr.bf16.mxu0 0
    %2339 = vmatpush1.bf16.msra.mxu0 0
    %2340 = vmatprep.subr.bf16.mxu0 0
    %2341 = vmatpush1.bf16.msra.mxu0 0
    %2342 = vmatprep.subr.bf16.mxu0 0
    %2343 = vmatpush1.bf16.msra.mxu0 0
    %2344 = vmatprep.subr.bf16.mxu0 0
    %2345 = vmatpush1.bf16.msra.mxu0 0
    %2346 = vmatprep.mubr.bf16.mxu0 0
    %2347 = vmatmul.mubr.bf16.gmra.mrb[0].mxu0 %v2312
    %v2348 = vpop.f32.mrb[0].mxu0
    %v2349 = vadd.f32 %v2298, %v2348
    %v2350 = vpop.f32.mrb[0].mxu0
    %v2351 = vpop.f32.mrb[0].mxu0
    %v2352 = vadd.f32 %v2298, %v2351
    %v2353 = vpop.f32.mrb[0].mxu0
    %2354 = vdwg.mxu0
    %v2355 = vadd.f32 %v1700, %v2349
    %v2356 = vadd.f32 %v1701, %v2352
    %v2357 = vsel %vm77, %v2355, 0.0
    %2358 = vadd.xlane.f32.xlu0 %v2357
    %v2359 = vpop.xlane.xlu0 %2358
    %v2360 = vsel %vm77, %v2356, 0.0
    %2361 = vadd.xlane.f32.xlu0 %v2360
    %v2362 = vpop.xlane.xlu0 %2361
    %v2363 = vmul.f32 %v2359, %v783
    %v2364 = vmul.f32 %v2362, %v783
    %v2365 = vmul.f32 %v2355, %v2355
    %v2366 = vmul.f32 %v2356, %v2356
    %v2367 = vsel %vm77, %v2365, 0.0
    %2368 = vadd.xlane.f32.xlu0 %v2367
    %v2369 = vpop.xlane.xlu0 %2368
    %v2370 = vsel %vm77, %v2366, 0.0
    %2371 = vadd.xlane.f32.xlu0 %v2370
    %v2372 = vpop.xlane.xlu0 %2371
    %v2373 = vmul.f32 %v2369, %v783
    %v2374 = vmul.f32 %v2372, %v783
    %v2375 = vsub.f32 %v2355, %v2363
    %v2376 = vsub.f32 %v2356, %v2364
    %v2377 = vmul.f32 %v2363, %v2363
    %v2378 = vmul.f32 %v2364, %v2364
    %v2379 = vsub.f32 %v2373, %v2377
    %v2380 = vsub.f32 %v2374, %v2378
    %v2381 = vadd.f32 %v2379, 1e-05
    %v2382 = vadd.f32 %v2380, 1e-05
    %v2383 = vrsqrt.pop %v2381
    %v2384 = vrsqrt.pop %v2382
    %v2385 = vmul.f32 %v2375, %v2383
    %v2386 = vmul.f32 %v2376, %v2384
    %v2387 = vlaneseq
    %v2388 = vshrl.u32 %v2387, 7
    %v2389 = vsub.s32 3, %v2388
    %v2390 = vrot.slane %v1703, %v2389
    %v2391 = vmul.f32 %v2385, %v2390
    %v2392 = vmul.f32 %v2386, %v2390
    %v2393 = vlaneseq
    %v2394 = vshrl.u32 %v2393, 7
    %v2395 = vsub.s32 4, %v2394
    %v2396 = vrot.slane %v1703, %v2395
    %v2397 = vadd.f32 %v2391, %v2396
    %v2398 = vadd.f32 %v2392, %v2396
    %v2399 = vpack.c.bf16 %v2398, %v2397
    %s2400 = scalar_lea.vmem %s5, 16
    %v2401 = vld [vmem:[%s2400] sm:$0xf]
    %v2402 = vld [vmem:[%s2400 + $0x4] sm:$0xf]
    %v2403 = vld [vmem:[%s2400 + $0x8] sm:$0xf]
    %v2404 = vld [vmem:[%s2400 + $0xc] sm:$0xf]
    %v2409 = vunpack.c.l.b16 %v2401
    %v2410 = vunpack.c.l.b16 %v2402
    %v2411 = vunpack.c.l.b16 %v2403
    %v2412 = vunpack.c.l.b16 %v2404
    %v2413 = vpack.c.b16 %v2410, %v2409
    %v2414 = vpack.c.b16 %v2412, %v2411
    %v2418 = vsel %vm77, %v2399, 0
    %2420 = vmatprep.subr.bf16.mxu0 0
    %2421 = vmatpush1.bf16.msra.mxu0 %v2413
    %2422 = vmatprep.subr.bf16.mxu0 0
    %2423 = vmatpush1.bf16.msra.mxu0 %v2414
    %2424 = vmatprep.subr.bf16.mxu0 0
    %2425 = vmatpush1.bf16.msra.mxu0 0
    %2426 = vmatprep.subr.bf16.mxu0 0
    %2427 = vmatpush1.bf16.msra.mxu0 0
    %2428 = vmatprep.subr.bf16.mxu0 0
    %2429 = vmatpush1.bf16.msra.mxu0 0
    %2430 = vmatprep.subr.bf16.mxu0 0
    %2431 = vmatpush1.bf16.msra.mxu0 0
    %2432 = vmatprep.subr.bf16.mxu0 0
    %2433 = vmatpush1.bf16.msra.mxu0 0
    %2434 = vmatprep.subr.bf16.mxu0 0
    %2435 = vmatpush1.bf16.msra.mxu0 0
    %2436 = vmatprep.subr.bf16.mxu0 0
    %2437 = vmatpush1.bf16.msra.mxu0 0
    %2438 = vmatprep.subr.bf16.mxu0 0
    %2439 = vmatpush1.bf16.msra.mxu0 0
    %2440 = vmatprep.subr.bf16.mxu0 0
    %2441 = vmatpush1.bf16.msra.mxu0 0
    %2442 = vmatprep.subr.bf16.mxu0 0
    %2443 = vmatpush1.bf16.msra.mxu0 0
    %2444 = vmatprep.subr.bf16.mxu0 0
    %2445 = vmatpush1.bf16.msra.mxu0 0
    %2446 = vmatprep.subr.bf16.mxu0 0
    %2447 = vmatpush1.bf16.msra.mxu0 0
    %2448 = vmatprep.subr.bf16.mxu0 0
    %2449 = vmatpush1.bf16.msra.mxu0 0
    %2450 = vmatprep.subr.bf16.mxu0 0
    %2451 = vmatpush1.bf16.msra.mxu0 0
    %2452 = vmatprep.mubr.bf16.mxu0 0
    %2453 = vmatmul.mubr.bf16.gmra.mrb[0].mxu0 %v2418
    %v2454 = vpop.f32.mrb[0].mxu0
    %v2455 = vadd.f32 0.0, %v2454
    %v2456 = vpop.f32.mrb[0].mxu0
    %v2457 = vpop.f32.mrb[0].mxu0
    %v2458 = vadd.f32 0.0, %v2457
    %v2459 = vpop.f32.mrb[0].mxu0
    %2460 = vdwg.mxu0
    %s2461 = scalar_lea.vmem %s7, 48
    %v2462 = vld [vmem:[%s2461] sm:$0xf]
    %v2463 = vld [vmem:[%s2461 + $0x4] sm:$0xf]
    %v2464 = vld [vmem:[%s2461 + $0x8] sm:$0xf]
    %v2465 = vld [vmem:[%s2461 + $0xc] sm:$0xf]
    %v2466 = vpack.c.bf16 %v2458, %v2455
    %2467 = vrot.lane.b32.xlu0 %v887, 64
    %v2468 = vpop.permute.xlu0 %2467
    %v2470 = vsel %vm193, %v2466, 0
    %v2473 = vsel %vm193, %v2468, 0
    %2475 = vmatprep.subr.bf16.mxu0 0
    %2476 = vmatpush1.bf16.xpose.msra.mxu0 %v2473
    %2477 = vmatprep.subr.bf16.mxu0 0
    %2478 = vmatpush1.bf16.xpose.msra.mxu0 0
    %2479 = vmatprep.subr.bf16.mxu0 0
    %2480 = vmatpush1.bf16.xpose.msra.mxu0 0
    %2481 = vmatprep.subr.bf16.mxu0 0
    %2482 = vmatpush1.bf16.xpose.msra.mxu0 0
    %2483 = vmatprep.subr.bf16.mxu0 0
    %2484 = vmatpush1.bf16.xpose.msra.mxu0 0
    %2485 = vmatprep.subr.bf16.mxu0 0
    %2486 = vmatpush1.bf16.xpose.msra.mxu0 0
    %2487 = vmatprep.subr.bf16.mxu0 0
    %2488 = vmatpush1.bf16.xpose.msra.mxu0 0
    %2489 = vmatprep.subr.bf16.mxu0 0
    %2490 = vmatpush1.bf16.xpose.msra.mxu0 0
    %2491 = vmatprep.subr.bf16.mxu0 0
    %2492 = vmatpush1.bf16.xpose.msra.mxu0 0
    %2493 = vmatprep.subr.bf16.mxu0 0
    %2494 = vmatpush1.bf16.xpose.msra.mxu0 0
    %2495 = vmatprep.subr.bf16.mxu0 0
    %2496 = vmatpush1.bf16.xpose.msra.mxu0 0
    %2497 = vmatprep.subr.bf16.mxu0 0
    %2498 = vmatpush1.bf16.xpose.msra.mxu0 0
    %2499 = vmatprep.subr.bf16.mxu0 0
    %2500 = vmatpush1.bf16.xpose.msra.mxu0 0
    %2501 = vmatprep.subr.bf16.mxu0 0
    %2502 = vmatpush1.bf16.xpose.msra.mxu0 0
    %2503 = vmatprep.subr.bf16.mxu0 0
    %2504 = vmatpush1.bf16.xpose.msra.mxu0 0
    %2505 = vmatprep.subr.bf16.mxu0 0
    %2506 = vmatpush1.bf16.xpose.msra.mxu0 0
    %2507 = vmatprep.mubr.bf16.mxu0 0
    %2508 = vmatmul.mubr.bf16.gmra.mrb[0].mxu0 %v2470
    %v2509 = vpop.f32.mrb[0].mxu0
    %v2510 = vadd.f32 0.0, %v2509
    %v2511 = vpop.f32.mrb[0].mxu0
    %v2512 = vpop.f32.mrb[0].mxu0
    %v2513 = vadd.f32 0.0, %v2512
    %v2514 = vpop.f32.mrb[0].mxu0
    %2515 = vdwg.mxu0
    %2517 = vrot.lane.b32.xlu0 %v2466, 120
    %v2518 = vpop.permute.xlu0 %2517
    %2519 = vrot.lane.b32.xlu0 %v887, 56
    %v2520 = vpop.permute.xlu0 %2519
    %v2522 = vsel %vm193, %v2518, 0
    %v2525 = vsel %vm193, %v2520, 0
    %2527 = vmatprep.subr.bf16.mxu0 0
    %2528 = vmatpush1.bf16.xpose.msra.mxu0 %v2525
    %2529 = vmatprep.subr.bf16.mxu0 0
    %2530 = vmatpush1.bf16.xpose.msra.mxu0 0
    %2531 = vmatprep.subr.bf16.mxu0 0
    %2532 = vmatpush1.bf16.xpose.msra.mxu0 0
    %2533 = vmatprep.subr.bf16.mxu0 0
    %2534 = vmatpush1.bf16.xpose.msra.mxu0 0
    %2535 = vmatprep.subr.bf16.mxu0 0
    %2536 = vmatpush1.bf16.xpose.msra.mxu0 0
    %2537 = vmatprep.subr.bf16.mxu0 0
    %2538 = vmatpush1.bf16.xpose.msra.mxu0 0
    %2539 = vmatprep.subr.bf16.mxu0 0
    %2540 = vmatpush1.bf16.xpose.msra.mxu0 0
    %2541 = vmatprep.subr.bf16.mxu0 0
    %2542 = vmatpush1.bf16.xpose.msra.mxu0 0
    %2543 = vmatprep.subr.bf16.mxu0 0
    %2544 = vmatpush1.bf16.xpose.msra.mxu0 0
    %2545 = vmatprep.subr.bf16.mxu0 0
    %2546 = vmatpush1.bf16.xpose.msra.mxu0 0
    %2547 = vmatprep.subr.bf16.mxu0 0
    %2548 = vmatpush1.bf16.xpose.msra.mxu0 0
    %2549 = vmatprep.subr.bf16.mxu0 0
    %2550 = vmatpush1.bf16.xpose.msra.mxu0 0
    %2551 = vmatprep.subr.bf16.mxu0 0
    %2552 = vmatpush1.bf16.xpose.msra.mxu0 0
    %2553 = vmatprep.subr.bf16.mxu0 0
    %2554 = vmatpush1.bf16.xpose.msra.mxu0 0
    %2555 = vmatprep.subr.bf16.mxu0 0
    %2556 = vmatpush1.bf16.xpose.msra.mxu0 0
    %2557 = vmatprep.subr.bf16.mxu0 0
    %2558 = vmatpush1.bf16.xpose.msra.mxu0 0
    %2559 = vmatprep.mubr.bf16.mxu0 0
    %2560 = vmatmul.mubr.bf16.gmra.mrb[0].mxu0 %v2522
    %v2561 = vpop.f32.mrb[0].mxu0
    %v2562 = vadd.f32 0.0, %v2561
    %v2563 = vpop.f32.mrb[0].mxu0
    %v2564 = vpop.f32.mrb[0].mxu0
    %v2565 = vadd.f32 0.0, %v2564
    %v2566 = vpop.f32.mrb[0].mxu0
    %2567 = vdwg.mxu0
    %2568 = vrot.lane.b32.xlu0 %v2466, 112
    %v2569 = vpop.permute.xlu0 %2568
    %2570 = vrot.lane.b32.xlu0 %v887, 48
    %v2571 = vpop.permute.xlu0 %2570
    %v2573 = vsel %vm193, %v2569, 0
    %v2576 = vsel %vm193, %v2571, 0
    %2578 = vmatprep.subr.bf16.mxu0 0
    %2579 = vmatpush1.bf16.xpose.msra.mxu0 %v2576
    %2580 = vmatprep.subr.bf16.mxu0 0
    %2581 = vmatpush1.bf16.xpose.msra.mxu0 0
    %2582 = vmatprep.subr.bf16.mxu0 0
    %2583 = vmatpush1.bf16.xpose.msra.mxu0 0
    %2584 = vmatprep.subr.bf16.mxu0 0
    %2585 = vmatpush1.bf16.xpose.msra.mxu0 0
    %2586 = vmatprep.subr.bf16.mxu0 0
    %2587 = vmatpush1.bf16.xpose.msra.mxu0 0
    %2588 = vmatprep.subr.bf16.mxu0 0
    %2589 = vmatpush1.bf16.xpose.msra.mxu0 0
    %2590 = vmatprep.subr.bf16.mxu0 0
    %2591 = vmatpush1.bf16.xpose.msra.mxu0 0
    %2592 = vmatprep.subr.bf16.mxu0 0
    %2593 = vmatpush1.bf16.xpose.msra.mxu0 0
    %2594 = vmatprep.subr.bf16.mxu0 0
    %2595 = vmatpush1.bf16.xpose.msra.mxu0 0
    %2596 = vmatprep.subr.bf16.mxu0 0
    %2597 = vmatpush1.bf16.xpose.msra.mxu0 0
    %2598 = vmatprep.subr.bf16.mxu0 0
    %2599 = vmatpush1.bf16.xpose.msra.mxu0 0
    %2600 = vmatprep.subr.bf16.mxu0 0
    %2601 = vmatpush1.bf16.xpose.msra.mxu0 0
    %2602 = vmatprep.subr.bf16.mxu0 0
    %2603 = vmatpush1.bf16.xpose.msra.mxu0 0
    %2604 = vmatprep.subr.bf16.mxu0 0
    %2605 = vmatpush1.bf16.xpose.msra.mxu0 0
    %2606 = vmatprep.subr.bf16.mxu0 0
    %2607 = vmatpush1.bf16.xpose.msra.mxu0 0
    %2608 = vmatprep.subr.bf16.mxu0 0
    %2609 = vmatpush1.bf16.xpose.msra.mxu0 0
    %2610 = vmatprep.mubr.bf16.mxu0 0
    %2611 = vmatmul.mubr.bf16.gmra.mrb[0].mxu0 %v2573
    %v2612 = vpop.f32.mrb[0].mxu0
    %v2613 = vadd.f32 0.0, %v2612
    %v2614 = vpop.f32.mrb[0].mxu0
    %v2615 = vpop.f32.mrb[0].mxu0
    %v2616 = vadd.f32 0.0, %v2615
    %v2617 = vpop.f32.mrb[0].mxu0
    %2618 = vdwg.mxu0
    %2619 = vrot.lane.b32.xlu0 %v2466, 104
    %v2620 = vpop.permute.xlu0 %2619
    %2621 = vrot.lane.b32.xlu0 %v887, 40
    %v2622 = vpop.permute.xlu0 %2621
    %v2624 = vsel %vm193, %v2620, 0
    %v2627 = vsel %vm193, %v2622, 0
    %2629 = vmatprep.subr.bf16.mxu0 0
    %2630 = vmatpush1.bf16.xpose.msra.mxu0 %v2627
    %2631 = vmatprep.subr.bf16.mxu0 0
    %2632 = vmatpush1.bf16.xpose.msra.mxu0 0
    %2633 = vmatprep.subr.bf16.mxu0 0
    %2634 = vmatpush1.bf16.xpose.msra.mxu0 0
    %2635 = vmatprep.subr.bf16.mxu0 0
    %2636 = vmatpush1.bf16.xpose.msra.mxu0 0
    %2637 = vmatprep.subr.bf16.mxu0 0
    %2638 = vmatpush1.bf16.xpose.msra.mxu0 0
    %2639 = vmatprep.subr.bf16.mxu0 0
    %2640 = vmatpush1.bf16.xpose.msra.mxu0 0
    %2641 = vmatprep.subr.bf16.mxu0 0
    %2642 = vmatpush1.bf16.xpose.msra.mxu0 0
    %2643 = vmatprep.subr.bf16.mxu0 0
    %2644 = vmatpush1.bf16.xpose.msra.mxu0 0
    %2645 = vmatprep.subr.bf16.mxu0 0
    %2646 = vmatpush1.bf16.xpose.msra.mxu0 0
    %2647 = vmatprep.subr.bf16.mxu0 0
    %2648 = vmatpush1.bf16.xpose.msra.mxu0 0
    %2649 = vmatprep.subr.bf16.mxu0 0
    %2650 = vmatpush1.bf16.xpose.msra.mxu0 0
    %2651 = vmatprep.subr.bf16.mxu0 0
    %2652 = vmatpush1.bf16.xpose.msra.mxu0 0
    %2653 = vmatprep.subr.bf16.mxu0 0
    %2654 = vmatpush1.bf16.xpose.msra.mxu0 0
    %2655 = vmatprep.subr.bf16.mxu0 0
    %2656 = vmatpush1.bf16.xpose.msra.mxu0 0
    %2657 = vmatprep.subr.bf16.mxu0 0
    %2658 = vmatpush1.bf16.xpose.msra.mxu0 0
    %2659 = vmatprep.subr.bf16.mxu0 0
    %2660 = vmatpush1.bf16.xpose.msra.mxu0 0
    %2661 = vmatprep.mubr.bf16.mxu0 0
    %2662 = vmatmul.mubr.bf16.gmra.mrb[0].mxu0 %v2624
    %v2663 = vpop.f32.mrb[0].mxu0
    %v2664 = vadd.f32 0.0, %v2663
    %v2665 = vpop.f32.mrb[0].mxu0
    %v2666 = vpop.f32.mrb[0].mxu0
    %v2667 = vadd.f32 0.0, %v2666
    %v2668 = vpop.f32.mrb[0].mxu0
    %2669 = vdwg.mxu0
    %v2670 = vadd.f32 %v2510, %v50
    %v2671 = vadd.f32 %v2513, %v51
    %v2672 = vadd.f32 %v2562, %v52
    %v2673 = vadd.f32 %v2565, %v53
    %v2674 = vadd.f32 %v2613, %v54
    %v2675 = vadd.f32 %v2616, %v55
    %v2676 = vadd.f32 %v2664, %v56
    %v2677 = vadd.f32 %v2667, %v57
    %v2678 = vsel %vm402, %v2670, -inf
    %2679 = vmax.xlane.f32.xlu0 %v2678
    %v2680 = vpop.xlane.xlu0 %2679
    %v2681 = vsel %vm402, %v2671, -inf
    %2682 = vmax.xlane.f32.xlu0 %v2681
    %v2683 = vpop.xlane.xlu0 %2682
    %v2684 = vsel %vm402, %v2672, -inf
    %2685 = vmax.xlane.f32.xlu0 %v2684
    %v2686 = vpop.xlane.xlu0 %2685
    %v2687 = vsel %vm402, %v2673, -inf
    %2688 = vmax.xlane.f32.xlu0 %v2687
    %v2689 = vpop.xlane.xlu0 %2688
    %v2690 = vsel %vm402, %v2674, -inf
    %2691 = vmax.xlane.f32.xlu0 %v2690
    %v2692 = vpop.xlane.xlu0 %2691
    %v2693 = vsel %vm402, %v2675, -inf
    %2694 = vmax.xlane.f32.xlu0 %v2693
    %v2695 = vpop.xlane.xlu0 %2694
    %v2696 = vsel %vm402, %v2676, -inf
    %2697 = vmax.xlane.f32.xlu0 %v2696
    %v2698 = vpop.xlane.xlu0 %2697
    %v2699 = vsel %vm402, %v2677, -inf
    %2700 = vmax.xlane.f32.xlu0 %v2699
    %v2701 = vpop.xlane.xlu0 %2700
    %v2702 = vsub.f32 %v2670, %v2680
    %v2703 = vsub.f32 %v2671, %v2683
    %v2704 = vsub.f32 %v2672, %v2686
    %v2705 = vsub.f32 %v2673, %v2689
    %v2706 = vsub.f32 %v2674, %v2692
    %v2707 = vsub.f32 %v2675, %v2695
    %v2708 = vsub.f32 %v2676, %v2698
    %v2709 = vsub.f32 %v2677, %v2701
    %v2710 = vmul.f32 %v2702, 1.442695
    %v2711 = vpow.pop %v2710
    %v2712 = vmul.f32 %v2703, 1.442695
    %v2713 = vpow.pop %v2712
    %v2714 = vmul.f32 %v2704, 1.442695
    %v2715 = vpow.pop %v2714
    %v2716 = vmul.f32 %v2705, 1.442695
    %v2717 = vpow.pop %v2716
    %v2718 = vmul.f32 %v2706, 1.442695
    %v2719 = vpow.pop %v2718
    %v2720 = vmul.f32 %v2707, 1.442695
    %v2721 = vpow.pop %v2720
    %v2722 = vmul.f32 %v2708, 1.442695
    %v2723 = vpow.pop %v2722
    %v2724 = vmul.f32 %v2709, 1.442695
    %v2725 = vpow.pop %v2724
    %v2726 = vsel %vm402, %v2711, 0.0
    %2727 = vadd.xlane.f32.xlu0 %v2726
    %v2728 = vpop.xlane.xlu0 %2727
    %v2729 = vsel %vm402, %v2713, 0.0
    %2730 = vadd.xlane.f32.xlu0 %v2729
    %v2731 = vpop.xlane.xlu0 %2730
    %v2732 = vsel %vm402, %v2715, 0.0
    %2733 = vadd.xlane.f32.xlu0 %v2732
    %v2734 = vpop.xlane.xlu0 %2733
    %v2735 = vsel %vm402, %v2717, 0.0
    %2736 = vadd.xlane.f32.xlu0 %v2735
    %v2737 = vpop.xlane.xlu0 %2736
    %v2738 = vsel %vm402, %v2719, 0.0
    %2739 = vadd.xlane.f32.xlu0 %v2738
    %v2740 = vpop.xlane.xlu0 %2739
    %v2741 = vsel %vm402, %v2721, 0.0
    %2742 = vadd.xlane.f32.xlu0 %v2741
    %v2743 = vpop.xlane.xlu0 %2742
    %v2744 = vsel %vm402, %v2723, 0.0
    %2745 = vadd.xlane.f32.xlu0 %v2744
    %v2746 = vpop.xlane.xlu0 %2745
    %v2747 = vsel %vm402, %v2725, 0.0
    %2748 = vadd.xlane.f32.xlu0 %v2747
    %v2749 = vpop.xlane.xlu0 %2748
    %v2750 = vrcp.pop %v2728
    %v2751 = vrcp.pop %v2731
    %v2752 = vrcp.pop %v2734
    %v2753 = vrcp.pop %v2737
    %v2754 = vrcp.pop %v2740
    %v2755 = vrcp.pop %v2743
    %v2756 = vrcp.pop %v2746
    %v2757 = vrcp.pop %v2749
    %v2758 = vmul.f32 %v2711, %v2750
    %v2759 = vmul.f32 %v2713, %v2751
    %v2760 = vmul.f32 %v2715, %v2752
    %v2761 = vmul.f32 %v2717, %v2753
    %v2762 = vmul.f32 %v2719, %v2754
    %v2763 = vmul.f32 %v2721, %v2755
    %v2764 = vmul.f32 %v2723, %v2756
    %v2765 = vmul.f32 %v2725, %v2757
    %v2766 = vpack.c.bf16 %v2759, %v2758
    %v2767 = vpack.c.bf16 %v2761, %v2760
    %v2768 = vpack.c.bf16 %v2763, %v2762
    %v2769 = vpack.c.bf16 %v2765, %v2764
    %2770 = vrot.lane.b32.xlu0 %v887, 32
    %v2771 = vpop.permute.xlu0 %2770
    %v2774 = vsel %vm402, %v2766, 0
    %2776 = vmatprep.subr.bf16.mxu0 0
    %2777 = vmatpush1.bf16.msra.mxu0 %v2771
    %2778 = vmatprep.subr.bf16.mxu0 0
    %2779 = vmatpush1.bf16.msra.mxu0 0
    %2780 = vmatprep.subr.bf16.mxu0 0
    %2781 = vmatpush1.bf16.msra.mxu0 0
    %2782 = vmatprep.subr.bf16.mxu0 0
    %2783 = vmatpush1.bf16.msra.mxu0 0
    %2784 = vmatprep.subr.bf16.mxu0 0
    %2785 = vmatpush1.bf16.msra.mxu0 0
    %2786 = vmatprep.subr.bf16.mxu0 0
    %2787 = vmatpush1.bf16.msra.mxu0 0
    %2788 = vmatprep.subr.bf16.mxu0 0
    %2789 = vmatpush1.bf16.msra.mxu0 0
    %2790 = vmatprep.subr.bf16.mxu0 0
    %2791 = vmatpush1.bf16.msra.mxu0 0
    %2792 = vmatprep.subr.bf16.mxu0 0
    %2793 = vmatpush1.bf16.msra.mxu0 0
    %2794 = vmatprep.subr.bf16.mxu0 0
    %2795 = vmatpush1.bf16.msra.mxu0 0
    %2796 = vmatprep.subr.bf16.mxu0 0
    %2797 = vmatpush1.bf16.msra.mxu0 0
    %2798 = vmatprep.subr.bf16.mxu0 0
    %2799 = vmatpush1.bf16.msra.mxu0 0
    %2800 = vmatprep.subr.bf16.mxu0 0
    %2801 = vmatpush1.bf16.msra.mxu0 0
    %2802 = vmatprep.subr.bf16.mxu0 0
    %2803 = vmatpush1.bf16.msra.mxu0 0
    %2804 = vmatprep.subr.bf16.mxu0 0
    %2805 = vmatpush1.bf16.msra.mxu0 0
    %2806 = vmatprep.subr.bf16.mxu0 0
    %2807 = vmatpush1.bf16.msra.mxu0 0
    %2808 = vmatprep.mubr.bf16.mxu0 0
    %2809 = vmatmul.mubr.bf16.gmra.mrb[0].mxu0 %v2774
    %v2810 = vpop.f32.mrb[0].mxu0
    %v2811 = vadd.f32 0.0, %v2810
    %v2812 = vpop.f32.mrb[0].mxu0
    %v2813 = vpop.f32.mrb[0].mxu0
    %v2814 = vadd.f32 0.0, %v2813
    %v2815 = vpop.f32.mrb[0].mxu0
    %2816 = vdwg.mxu0
    %2817 = vrot.lane.b32.xlu0 %v887, 24
    %v2818 = vpop.permute.xlu0 %2817
    %v2821 = vsel %vm402, %v2767, 0
    %2823 = vmatprep.subr.bf16.mxu0 0
    %2824 = vmatpush1.bf16.msra.mxu0 %v2818
    %2825 = vmatprep.subr.bf16.mxu0 0
    %2826 = vmatpush1.bf16.msra.mxu0 0
    %2827 = vmatprep.subr.bf16.mxu0 0
    %2828 = vmatpush1.bf16.msra.mxu0 0
    %2829 = vmatprep.subr.bf16.mxu0 0
    %2830 = vmatpush1.bf16.msra.mxu0 0
    %2831 = vmatprep.subr.bf16.mxu0 0
    %2832 = vmatpush1.bf16.msra.mxu0 0
    %2833 = vmatprep.subr.bf16.mxu0 0
    %2834 = vmatpush1.bf16.msra.mxu0 0
    %2835 = vmatprep.subr.bf16.mxu0 0
    %2836 = vmatpush1.bf16.msra.mxu0 0
    %2837 = vmatprep.subr.bf16.mxu0 0
    %2838 = vmatpush1.bf16.msra.mxu0 0
    %2839 = vmatprep.subr.bf16.mxu0 0
    %2840 = vmatpush1.bf16.msra.mxu0 0
    %2841 = vmatprep.subr.bf16.mxu0 0
    %2842 = vmatpush1.bf16.msra.mxu0 0
    %2843 = vmatprep.subr.bf16.mxu0 0
    %2844 = vmatpush1.bf16.msra.mxu0 0
    %2845 = vmatprep.subr.bf16.mxu0 0
    %2846 = vmatpush1.bf16.msra.mxu0 0
    %2847 = vmatprep.subr.bf16.mxu0 0
    %2848 = vmatpush1.bf16.msra.mxu0 0
    %2849 = vmatprep.subr.bf16.mxu0 0
    %2850 = vmatpush1.bf16.msra.mxu0 0
    %2851 = vmatprep.subr.bf16.mxu0 0
    %2852 = vmatpush1.bf16.msra.mxu0 0
    %2853 = vmatprep.subr.bf16.mxu0 0
    %2854 = vmatpush1.bf16.msra.mxu0 0
    %2855 = vmatprep.mubr.bf16.mxu0 0
    %2856 = vmatmul.mubr.bf16.gmra.mrb[0].mxu0 %v2821
    %v2857 = vpop.f32.mrb[0].mxu0
    %v2858 = vadd.f32 0.0, %v2857
    %v2859 = vpop.f32.mrb[0].mxu0
    %v2860 = vpop.f32.mrb[0].mxu0
    %v2861 = vadd.f32 0.0, %v2860
    %v2862 = vpop.f32.mrb[0].mxu0
    %2863 = vdwg.mxu0
    %2864 = vrot.lane.b32.xlu0 %v887, 16
    %v2865 = vpop.permute.xlu0 %2864
    %v2868 = vsel %vm402, %v2768, 0
    %2870 = vmatprep.subr.bf16.mxu0 0
    %2871 = vmatpush1.bf16.msra.mxu0 %v2865
    %2872 = vmatprep.subr.bf16.mxu0 0
    %2873 = vmatpush1.bf16.msra.mxu0 0
    %2874 = vmatprep.subr.bf16.mxu0 0
    %2875 = vmatpush1.bf16.msra.mxu0 0
    %2876 = vmatprep.subr.bf16.mxu0 0
    %2877 = vmatpush1.bf16.msra.mxu0 0
    %2878 = vmatprep.subr.bf16.mxu0 0
    %2879 = vmatpush1.bf16.msra.mxu0 0
    %2880 = vmatprep.subr.bf16.mxu0 0
    %2881 = vmatpush1.bf16.msra.mxu0 0
    %2882 = vmatprep.subr.bf16.mxu0 0
    %2883 = vmatpush1.bf16.msra.mxu0 0
    %2884 = vmatprep.subr.bf16.mxu0 0
    %2885 = vmatpush1.bf16.msra.mxu0 0
    %2886 = vmatprep.subr.bf16.mxu0 0
    %2887 = vmatpush1.bf16.msra.mxu0 0
    %2888 = vmatprep.subr.bf16.mxu0 0
    %2889 = vmatpush1.bf16.msra.mxu0 0
    %2890 = vmatprep.subr.bf16.mxu0 0
    %2891 = vmatpush1.bf16.msra.mxu0 0
    %2892 = vmatprep.subr.bf16.mxu0 0
    %2893 = vmatpush1.bf16.msra.mxu0 0
    %2894 = vmatprep.subr.bf16.mxu0 0
    %2895 = vmatpush1.bf16.msra.mxu0 0
    %2896 = vmatprep.subr.bf16.mxu0 0
    %2897 = vmatpush1.bf16.msra.mxu0 0
    %2898 = vmatprep.subr.bf16.mxu0 0
    %2899 = vmatpush1.bf16.msra.mxu0 0
    %2900 = vmatprep.subr.bf16.mxu0 0
    %2901 = vmatpush1.bf16.msra.mxu0 0
    %2902 = vmatprep.mubr.bf16.mxu0 0
    %2903 = vmatmul.mubr.bf16.gmra.mrb[0].mxu0 %v2868
    %v2904 = vpop.f32.mrb[0].mxu0
    %v2905 = vadd.f32 0.0, %v2904
    %v2906 = vpop.f32.mrb[0].mxu0
    %v2907 = vpop.f32.mrb[0].mxu0
    %v2908 = vadd.f32 0.0, %v2907
    %v2909 = vpop.f32.mrb[0].mxu0
    %2910 = vdwg.mxu0
    %2911 = vrot.lane.b32.xlu0 %v887, 8
    %v2912 = vpop.permute.xlu0 %2911
    %v2915 = vsel %vm402, %v2769, 0
    %2917 = vmatprep.subr.bf16.mxu0 0
    %2918 = vmatpush1.bf16.msra.mxu0 %v2912
    %2919 = vmatprep.subr.bf16.mxu0 0
    %2920 = vmatpush1.bf16.msra.mxu0 0
    %2921 = vmatprep.subr.bf16.mxu0 0
    %2922 = vmatpush1.bf16.msra.mxu0 0
    %2923 = vmatprep.subr.bf16.mxu0 0
    %2924 = vmatpush1.bf16.msra.mxu0 0
    %2925 = vmatprep.subr.bf16.mxu0 0
    %2926 = vmatpush1.bf16.msra.mxu0 0
    %2927 = vmatprep.subr.bf16.mxu0 0
    %2928 = vmatpush1.bf16.msra.mxu0 0
    %2929 = vmatprep.subr.bf16.mxu0 0
    %2930 = vmatpush1.bf16.msra.mxu0 0
    %2931 = vmatprep.subr.bf16.mxu0 0
    %2932 = vmatpush1.bf16.msra.mxu0 0
    %2933 = vmatprep.subr.bf16.mxu0 0
    %2934 = vmatpush1.bf16.msra.mxu0 0
    %2935 = vmatprep.subr.bf16.mxu0 0
    %2936 = vmatpush1.bf16.msra.mxu0 0
    %2937 = vmatprep.subr.bf16.mxu0 0
    %2938 = vmatpush1.bf16.msra.mxu0 0
    %2939 = vmatprep.subr.bf16.mxu0 0
    %2940 = vmatpush1.bf16.msra.mxu0 0
    %2941 = vmatprep.subr.bf16.mxu0 0
    %2942 = vmatpush1.bf16.msra.mxu0 0
    %2943 = vmatprep.subr.bf16.mxu0 0
    %2944 = vmatpush1.bf16.msra.mxu0 0
    %2945 = vmatprep.subr.bf16.mxu0 0
    %2946 = vmatpush1.bf16.msra.mxu0 0
    %2947 = vmatprep.subr.bf16.mxu0 0
    %2948 = vmatpush1.bf16.msra.mxu0 0
    %2949 = vmatprep.mubr.bf16.mxu0 0
    %2950 = vmatmul.mubr.bf16.gmra.mrb[0].mxu0 %v2915
    %v2951 = vpop.f32.mrb[0].mxu0
    %v2952 = vadd.f32 0.0, %v2951
    %v2953 = vpop.f32.mrb[0].mxu0
    %v2954 = vpop.f32.mrb[0].mxu0
    %v2955 = vadd.f32 0.0, %v2954
    %v2956 = vpop.f32.mrb[0].mxu0
    %2957 = vdwg.mxu0
    %2960 = vrot.lane.b32.xlu0 %v2858, 8
    %v2961 = vpop.permute.xlu0 %2960
    %2962 = vrot.lane.b32.xlu0 %v2861, 8
    %v2963 = vpop.permute.xlu0 %2962
    %2968 = vrot.lane.b32.xlu0 %v2905, 16
    %v2969 = vpop.permute.xlu0 %2968
    %2970 = vrot.lane.b32.xlu0 %v2908, 16
    %v2971 = vpop.permute.xlu0 %2970
    %2976 = vrot.lane.b32.xlu0 %v2952, 24
    %v2977 = vpop.permute.xlu0 %2976
    %2978 = vrot.lane.b32.xlu0 %v2955, 24
    %v2979 = vpop.permute.xlu0 %2978
    %v2982 = vsel %vm193, %v2811, %v2961
    %v2983 = vsel %vm193, %v2814, %v2963
    %v2984 = vsel %vm402, %v2982, %v2969
    %v2985 = vsel %vm402, %v2983, %v2971
    %v2986 = vsel %vm711, %v2984, %v2977
    %v2987 = vsel %vm711, %v2985, %v2979
    %v2988 = vpack.c.bf16 %v2987, %v2986
    %v2989 = vlaneseq
    %v2990 = vshrl.u32 %v2989, 7
    %v2991 = vsub.s32 1, %v2990
    %v2992 = vrot.slane %v1703, %v2991
    %v2997 = vunpack.c.l.b16 %v2462
    %v2998 = vunpack.c.l.b16 %v2463
    %v2999 = vunpack.c.l.b16 %v2464
    %v3000 = vunpack.c.l.b16 %v2465
    %v3001 = vpack.c.b16 %v2998, %v2997
    %v3002 = vpack.c.b16 %v3000, %v2999
    %v3006 = vsel %vm77, %v2988, 0
    %3008 = vmatprep.subr.bf16.mxu0 0
    %3009 = vmatpush1.bf16.msra.mxu0 %v3001
    %3010 = vmatprep.subr.bf16.mxu0 0
    %3011 = vmatpush1.bf16.msra.mxu0 %v3002
    %3012 = vmatprep.subr.bf16.mxu0 0
    %3013 = vmatpush1.bf16.msra.mxu0 0
    %3014 = vmatprep.subr.bf16.mxu0 0
    %3015 = vmatpush1.bf16.msra.mxu0 0
    %3016 = vmatprep.subr.bf16.mxu0 0
    %3017 = vmatpush1.bf16.msra.mxu0 0
    %3018 = vmatprep.subr.bf16.mxu0 0
    %3019 = vmatpush1.bf16.msra.mxu0 0
    %3020 = vmatprep.subr.bf16.mxu0 0
    %3021 = vmatpush1.bf16.msra.mxu0 0
    %3022 = vmatprep.subr.bf16.mxu0 0
    %3023 = vmatpush1.bf16.msra.mxu0 0
    %3024 = vmatprep.subr.bf16.mxu0 0
    %3025 = vmatpush1.bf16.msra.mxu0 0
    %3026 = vmatprep.subr.bf16.mxu0 0
    %3027 = vmatpush1.bf16.msra.mxu0 0
    %3028 = vmatprep.subr.bf16.mxu0 0
    %3029 = vmatpush1.bf16.msra.mxu0 0
    %3030 = vmatprep.subr.bf16.mxu0 0
    %3031 = vmatpush1.bf16.msra.mxu0 0
    %3032 = vmatprep.subr.bf16.mxu0 0
    %3033 = vmatpush1.bf16.msra.mxu0 0
    %3034 = vmatprep.subr.bf16.mxu0 0
    %3035 = vmatpush1.bf16.msra.mxu0 0
    %3036 = vmatprep.subr.bf16.mxu0 0
    %3037 = vmatpush1.bf16.msra.mxu0 0
    %3038 = vmatprep.subr.bf16.mxu0 0
    %3039 = vmatpush1.bf16.msra.mxu0 0
    %3040 = vmatprep.mubr.bf16.mxu0 0
    %3041 = vmatmul.mubr.bf16.gmra.mrb[0].mxu0 %v3006
    %v3042 = vpop.f32.mrb[0].mxu0
    %v3043 = vadd.f32 %v2992, %v3042
    %v3044 = vpop.f32.mrb[0].mxu0
    %v3045 = vpop.f32.mrb[0].mxu0
    %v3046 = vadd.f32 %v2992, %v3045
    %v3047 = vpop.f32.mrb[0].mxu0
    %3048 = vdwg.mxu0
    %v3049 = vadd.f32 %v2397, %v3043
    %v3050 = vadd.f32 %v2398, %v3046
    %v3051 = vsel %vm77, %v3049, 0.0
    %3052 = vadd.xlane.f32.xlu0 %v3051
    %v3053 = vpop.xlane.xlu0 %3052
    %v3054 = vsel %vm77, %v3050, 0.0
    %3055 = vadd.xlane.f32.xlu0 %v3054
    %v3056 = vpop.xlane.xlu0 %3055
    %v3057 = vmul.f32 %v3053, %v783
    %v3058 = vmul.f32 %v3056, %v783
    %v3059 = vmul.f32 %v3049, %v3049
    %v3060 = vmul.f32 %v3050, %v3050
    %v3061 = vsel %vm77, %v3059, 0.0
    %3062 = vadd.xlane.f32.xlu0 %v3061
    %v3063 = vpop.xlane.xlu0 %3062
    %v3064 = vsel %vm77, %v3060, 0.0
    %3065 = vadd.xlane.f32.xlu0 %v3064
    %v3066 = vpop.xlane.xlu0 %3065
    %v3067 = vmul.f32 %v3063, %v783
    %v3068 = vmul.f32 %v3066, %v783
    %v3069 = vsub.f32 %v3049, %v3057
    %v3070 = vsub.f32 %v3050, %v3058
    %v3071 = vmul.f32 %v3057, %v3057
    %v3072 = vmul.f32 %v3058, %v3058
    %v3073 = vsub.f32 %v3067, %v3071
    %v3074 = vsub.f32 %v3068, %v3072
    %v3075 = vadd.f32 %v3073, 1e-05
    %v3076 = vadd.f32 %v3074, 1e-05
    %v3077 = vrsqrt.pop %v3075
    %v3078 = vrsqrt.pop %v3076
    %v3079 = vmul.f32 %v3069, %v3077
    %v3080 = vmul.f32 %v3070, %v3078
    %v3081 = vlaneseq
    %v3082 = vshrl.u32 %v3081, 7
    %v3083 = vsub.s32 5, %v3082
    %v3084 = vrot.slane %v1703, %v3083
    %v3085 = vmul.f32 %v3079, %v3084
    %v3086 = vmul.f32 %v3080, %v3084
    %v3087 = vlaneseq
    %v3088 = vshrl.u32 %v3087, 7
    %v3089 = vsub.s32 6, %v3088
    %v3090 = vrot.slane %v1703, %v3089
    %v3091 = vadd.f32 %v3085, %v3090
    %v3092 = vadd.f32 %v3086, %v3090
    %v3093 = vpack.c.bf16 %v3092, %v3091
    %s3094 = scalar_lea.vmem %s8, 16
    %v3095 = vld [vmem:[%s3094] sm:$0xf]
    %v3096 = vld [vmem:[%s3094 + $0x4] sm:$0xf]
    %v3097 = vld [vmem:[%s3094 + $0x8] sm:$0xf]
    %v3098 = vld [vmem:[%s3094 + $0xc] sm:$0xf]
    %v3103 = vunpack.c.l.b16 %v3095
    %v3104 = vunpack.c.l.b16 %v3096
    %v3105 = vunpack.c.l.b16 %v3097
    %v3106 = vunpack.c.l.b16 %v3098
    %v3107 = vpack.c.b16 %v3104, %v3103
    %v3108 = vpack.c.b16 %v3106, %v3105
    %v3112 = vsel %vm77, %v3093, 0
    %3114 = vmatprep.subr.bf16.mxu0 0
    %3115 = vmatpush1.bf16.msra.mxu0 %v3107
    %3116 = vmatprep.subr.bf16.mxu0 0
    %3117 = vmatpush1.bf16.msra.mxu0 %v3108
    %3118 = vmatprep.subr.bf16.mxu0 0
    %3119 = vmatpush1.bf16.msra.mxu0 0
    %3120 = vmatprep.subr.bf16.mxu0 0
    %3121 = vmatpush1.bf16.msra.mxu0 0
    %3122 = vmatprep.subr.bf16.mxu0 0
    %3123 = vmatpush1.bf16.msra.mxu0 0
    %3124 = vmatprep.subr.bf16.mxu0 0
    %3125 = vmatpush1.bf16.msra.mxu0 0
    %3126 = vmatprep.subr.bf16.mxu0 0
    %3127 = vmatpush1.bf16.msra.mxu0 0
    %3128 = vmatprep.subr.bf16.mxu0 0
    %3129 = vmatpush1.bf16.msra.mxu0 0
    %3130 = vmatprep.subr.bf16.mxu0 0
    %3131 = vmatpush1.bf16.msra.mxu0 0
    %3132 = vmatprep.subr.bf16.mxu0 0
    %3133 = vmatpush1.bf16.msra.mxu0 0
    %3134 = vmatprep.subr.bf16.mxu0 0
    %3135 = vmatpush1.bf16.msra.mxu0 0
    %3136 = vmatprep.subr.bf16.mxu0 0
    %3137 = vmatpush1.bf16.msra.mxu0 0
    %3138 = vmatprep.subr.bf16.mxu0 0
    %3139 = vmatpush1.bf16.msra.mxu0 0
    %3140 = vmatprep.subr.bf16.mxu0 0
    %3141 = vmatpush1.bf16.msra.mxu0 0
    %3142 = vmatprep.subr.bf16.mxu0 0
    %3143 = vmatpush1.bf16.msra.mxu0 0
    %3144 = vmatprep.subr.bf16.mxu0 0
    %3145 = vmatpush1.bf16.msra.mxu0 0
    %3146 = vmatprep.mubr.bf16.mxu0 0
    %3147 = vmatmul.mubr.bf16.gmra.mrb[0].mxu0 %v3112
    %v3148 = vpop.f32.mrb[0].mxu0
    %v3149 = vadd.f32 0.0, %v3148
    %v3150 = vpop.f32.mrb[0].mxu0
    %v3151 = vpop.f32.mrb[0].mxu0
    %v3152 = vadd.f32 0.0, %v3151
    %v3153 = vpop.f32.mrb[0].mxu0
    %3154 = vdwg.mxu0
    %v3155 = vmax.f32 %v3149, 0.0
    %v3156 = vmax.f32 %v3152, 0.0
    %v3157 = vpack.c.bf16 %v3156, %v3155
    %s3158 = scalar_lea.vmem %s9, 32
    %v3159 = vld [vmem:[%s3158] sm:$0xf]
    %v3160 = vld [vmem:[%s3158 + $0x4] sm:$0xf]
    %v3161 = vld [vmem:[%s3158 + $0x8] sm:$0xf]
    %v3162 = vld [vmem:[%s3158 + $0xc] sm:$0xf]
    %v3163 = vld [vmem:[%s3158 + $0x10] sm:$0xf]
    %v3164 = vld [vmem:[%s3158 + $0x14] sm:$0xf]
    %v3165 = vld [vmem:[%s3158 + $0x18] sm:$0xf]
    %v3166 = vld [vmem:[%s3158 + $0x1c] sm:$0xf]
    %v3167 = vlaneseq
    %v3168 = vshrl.u32 %v3167, 7
    %v3169 = vsub.s32 2, %v3168
    %v3170 = vrot.slane %v1703, %v3169
    %v3179 = vunpack.c.l.b16 %v3159
    %v3180 = vunpack.c.l.b16 %v3160
    %v3181 = vunpack.c.l.b16 %v3161
    %v3182 = vunpack.c.l.b16 %v3162
    %v3183 = vunpack.c.l.b16 %v3163
    %v3184 = vunpack.c.l.b16 %v3164
    %v3185 = vunpack.c.l.b16 %v3165
    %v3186 = vunpack.c.l.b16 %v3166
    %v3187 = vpack.c.b16 %v3180, %v3179
    %v3188 = vpack.c.b16 %v3182, %v3181
    %v3189 = vpack.c.b16 %v3184, %v3183
    %v3190 = vpack.c.b16 %v3186, %v3185
    %v3196 = vsel %vm1613, %v3157, 0
    %3198 = vmatprep.subr.bf16.mxu0 0
    %3199 = vmatpush1.bf16.msra.mxu0 %v3187
    %3200 = vmatprep.subr.bf16.mxu0 0
    %3201 = vmatpush1.bf16.msra.mxu0 %v3188
    %3202 = vmatprep.subr.bf16.mxu0 0
    %3203 = vmatpush1.bf16.msra.mxu0 %v3189
    %3204 = vmatprep.subr.bf16.mxu0 0
    %3205 = vmatpush1.bf16.msra.mxu0 %v3190
    %3206 = vmatprep.subr.bf16.mxu0 0
    %3207 = vmatpush1.bf16.msra.mxu0 0
    %3208 = vmatprep.subr.bf16.mxu0 0
    %3209 = vmatpush1.bf16.msra.mxu0 0
    %3210 = vmatprep.subr.bf16.mxu0 0
    %3211 = vmatpush1.bf16.msra.mxu0 0
    %3212 = vmatprep.subr.bf16.mxu0 0
    %3213 = vmatpush1.bf16.msra.mxu0 0
    %3214 = vmatprep.subr.bf16.mxu0 0
    %3215 = vmatpush1.bf16.msra.mxu0 0
    %3216 = vmatprep.subr.bf16.mxu0 0
    %3217 = vmatpush1.bf16.msra.mxu0 0
    %3218 = vmatprep.subr.bf16.mxu0 0
    %3219 = vmatpush1.bf16.msra.mxu0 0
    %3220 = vmatprep.subr.bf16.mxu0 0
    %3221 = vmatpush1.bf16.msra.mxu0 0
    %3222 = vmatprep.subr.bf16.mxu0 0
    %3223 = vmatpush1.bf16.msra.mxu0 0
    %3224 = vmatprep.subr.bf16.mxu0 0
    %3225 = vmatpush1.bf16.msra.mxu0 0
    %3226 = vmatprep.subr.bf16.mxu0 0
    %3227 = vmatpush1.bf16.msra.mxu0 0
    %3228 = vmatprep.subr.bf16.mxu0 0
    %3229 = vmatpush1.bf16.msra.mxu0 0
    %3230 = vmatprep.mubr.bf16.mxu0 0
    %3231 = vmatmul.mubr.bf16.gmra.mrb[0].mxu0 %v3196
    %v3232 = vpop.f32.mrb[0].mxu0
    %v3233 = vadd.f32 %v3170, %v3232
    %v3234 = vpop.f32.mrb[0].mxu0
    %v3235 = vpop.f32.mrb[0].mxu0
    %v3236 = vadd.f32 %v3170, %v3235
    %v3237 = vpop.f32.mrb[0].mxu0
    %3238 = vdwg.mxu0
    %v3239 = vadd.f32 %v3091, %v3233
    %v3240 = vadd.f32 %v3092, %v3236
    %v3241 = vsel %vm77, %v3239, 0.0
    %3242 = vadd.xlane.f32.xlu0 %v3241
    %v3243 = vpop.xlane.xlu0 %3242
    %v3244 = vsel %vm77, %v3240, 0.0
    %3245 = vadd.xlane.f32.xlu0 %v3244
    %v3246 = vpop.xlane.xlu0 %3245
    %v3247 = vmul.f32 %v3243, %v783
    %v3248 = vmul.f32 %v3246, %v783
    %v3249 = vmul.f32 %v3239, %v3239
    %v3250 = vmul.f32 %v3240, %v3240
    %v3251 = vsel %vm77, %v3249, 0.0
    %3252 = vadd.xlane.f32.xlu0 %v3251
    %v3253 = vpop.xlane.xlu0 %3252
    %v3254 = vsel %vm77, %v3250, 0.0
    %3255 = vadd.xlane.f32.xlu0 %v3254
    %v3256 = vpop.xlane.xlu0 %3255
    %v3257 = vmul.f32 %v3253, %v783
    %v3258 = vmul.f32 %v3256, %v783
    %v3259 = vsub.f32 %v3239, %v3247
    %v3260 = vsub.f32 %v3240, %v3248
    %v3261 = vmul.f32 %v3247, %v3247
    %v3262 = vmul.f32 %v3248, %v3248
    %v3263 = vsub.f32 %v3257, %v3261
    %v3264 = vsub.f32 %v3258, %v3262
    %v3265 = vadd.f32 %v3263, 1e-05
    %v3266 = vadd.f32 %v3264, 1e-05
    %v3267 = vrsqrt.pop %v3265
    %v3268 = vrsqrt.pop %v3266
    %v3269 = vmul.f32 %v3259, %v3267
    %v3270 = vmul.f32 %v3260, %v3268
    %v3271 = vlaneseq
    %v3272 = vshrl.u32 %v3271, 7
    %v3273 = vsub.s32 7, %v3272
    %v3274 = vrot.slane %v1703, %v3273
    %v3275 = vmul.f32 %v3269, %v3274
    %v3276 = vmul.f32 %v3270, %v3274
    %v3277 = vlaneseq
    %v3278 = vshrl.u32 %v3277, 7
    %v3279 = vsub.s32 0, %v3278
    %v3280 = vrot.slane %v1704, %v3279
    %v3281 = vadd.f32 %v3275, %v3280
    %v3282 = vadd.f32 %v3276, %v3280
    %3283 = vst.msk [vmem:[#allocation2] sm:$0xff] %vm77, %v3281
    %3284 = vst.msk [vmem:[#allocation2 + $0x8] sm:$0xff] %vm77, %v3282
    // Predicated region
    $region46: #{tpu_custom_call.1} parent=1 // pred_check
      _
    $region47: #{tpu_custom_call.1} parent=1 // pred_check_branch
      %3286 = sbr.rel (0) target = $region49
    $region48: #{tpu_custom_call.1} parent=1 // pred_region
      %s3288 = ssub.s32 256, 256
      %3289 = vsyncadd [#allocation3], %s3288
      %s3290 = sshll.u32 [#allocation2], 4
      %s3291 = int_to_ptr.vmem [resolvable:$true] %s3290
      %3296 = dma.vmem_to_hbm [thread:$0]  %s3291, 256, %s11, [#allocation3], 128, 128, 8
    $region49: #{tpu_custom_call.1} parent=1 // pred_fallthru
      _
    // Predicated region
    $region50: #{tpu_custom_call.1} parent=1 // pred_check
      _
    $region51: #{tpu_custom_call.1} parent=1 // pred_check_branch
      %3298 = sbr.rel (0) target = $region53
    $region52: #{tpu_custom_call.1} parent=1 // pred_region
      %3299 = dma.done [#allocation3], 256
    $region53: #{tpu_custom_call.1} parent=1 // pred_fallthru
      _
    %3300 = vsyncpa [#allocation3], 1

</llo_original>
